<compile_context>
chip_gen: v7x
topology: tpu7x:2x2x1
jax: 0.10.0
libtpu: 0.0.40
codegen_flags: <defaults>
</compile_context>

<pallas_src>
import math
import functools
import numpy as np
import jax
import jax.numpy as jnp
from jax.experimental import pallas as pl
from jax.experimental.pallas import tpu as pltpu

# ---------------- stand-in for cfg ----------------
FEAT_STRIDE = 16
ANCHOR_SCALES = (8.0, 16.0, 32.0)
ANCHOR_RATIOS = (1.0,)
ANCHOR_NUM = [len(ANCHOR_SCALES) * len(ANCHOR_RATIOS)]   # [3]  -> A = 3
RPN_HIDDEN = 512                                         # nn.Conv2d(din, 512, 3, 1, 1)
POST_TOPK = 64                                           # proposals kept per image


# ====================== Pallas kernel ======================

def _rpn_fused_kernel(xw_ref, wc_ref, bc_ref, wh_ref, bh_ref, head_ref,
                      *, W, th, A):
    """Fused 3x3-conv + ReLU + 1x1 heads for one (batch, row-tile) grid step.

    xw_ref  : ((th+2)*W, 3*Cin) bf16  halo'd, dx-concatenated input pixels
    wc_ref  : (3, 3*Cin, 512)   bf16  conv weight, one (3*Cin,512) slab per dy
    bc_ref  : (1, 512)          f32   conv bias
    wh_ref  : (512, NH)         bf16  fused head weight [fg-bg | bbox | 0-pad]
    bh_ref  : (1, NH)           f32   fused head bias
    head_ref: (th*W, NH)        f32   [fg prob | bbox pred | 0] lane-dense
    """
    tm = th * W
    # 3x3 conv as 3 dy-shifted matmuls of the dx-concatenated input (K = 3*Cin).
    acc = None
    for dy in range(3):
        tap = xw_ref[pl.ds(dy * W, tm), :]                        # (tm, 3*Cin) bf16
        part = jnp.dot(tap, wc_ref[dy], preferred_element_type=jnp.float32)
        acc = part if acc is None else acc + part
    conv = jnp.maximum(acc + bc_ref[...], 0.0)                    # (tm, 512) f32, VMEM only

    # Fused 1x1 heads on the in-VMEM activation (conv never touches HBM).
    head = jnp.dot(conv.astype(wh_ref.dtype), wh_ref[...],
                   preferred_element_type=jnp.float32) + bh_ref[...]   # (tm, NH)
    # Pairwise softmax fg-prob == sigmoid(fg_logit - bg_logit); the (fg-bg)
    # weight difference was folded into wh columns [0, A).
    prob = pl.reciprocal(1.0 + jnp.exp(-head), approx=True)
    lane = jax.lax.broadcasted_iota(jnp.int32, head.shape, dimension=1)
    head_ref[...] = jnp.where(lane < A, prob, head)


# ====================== wrapper ======================

def _choose_th(H, W, target_rows=512):
    """Row-tile height: ~target_rows pixels per tile, th*W a multiple of 8."""
    th = max(1, min(H, target_rows // max(W, 1)))
    step = 8 // math.gcd(W, 8)
    th = max(step, (th // step) * step)
    return th


def rpn_conv_heads(x_nhwc, w_conv, b_conv, w_cls, b_cls, w_box, b_box, A,
                   target_rows=512):
    """relu(Conv2d(Cin,512,3,1,1)) + fused 1x1 cls/bbox heads, one pallas_call.

    Returns (fg_prob (B,H,W,A), bbox_pred (B,H,W,4A)).
    """
    B, H, W, Cin = x_nhwc.shape
    Cout = w_conv.shape[-1]
    NH = max(128, ((5 * A + 127) // 128) * 128)          # lane-dense head width

    # Fused head params: [ (fg - bg) cls logit | bbox deltas | zero pad ].
    w_diff = w_cls[:, A:2 * A] - w_cls[:, :A]
    b_diff = b_cls[A:2 * A] - b_cls[:A]
    wh = jnp.zeros((Cout, NH), jnp.float32)
    wh = wh.at[:, :A].set(w_diff).at[:, A:5 * A].set(w_box)
    bh = jnp.zeros((1, NH), jnp.float32)
    bh = bh.at[:, :A].set(b_diff).at[:, A:5 * A].set(b_box)

    th = _choose_th(H, W, target_rows)
    n_tiles = -(-H // th)
    Hp = n_tiles * th

    # Cast to bf16 FIRST so all XLA-side copies (pad/concat/window stack) move
    # half the bytes; the kernel consumes bf16 on the MXU anyway.
    xb = x_nhwc.astype(jnp.bfloat16)
    # Pad: 1 halo row top, (Hp-H+1) rows bottom, 1 column each side.
    xp = jnp.pad(xb, ((0, 0), (1, Hp - H + 1), (1, 1), (0, 0)))           # (B,Hp+2,W+2,Cin)
    # dx (width) im2col only: 3x channel concat; dy handled in-kernel.
    xcat = jnp.concatenate([xp[:, :, d:d + W, :] for d in range(3)], axis=-1)  # (B,Hp+2,W,3Cin)
    # Overlapping (halo'd) row windows; only a 2-row duplication per tile.
    wins = jnp.stack([xcat[:, t * th: t * th + th + 2] for t in range(n_tiles)], axis=1)
    wins = wins.reshape(B * n_tiles, (th + 2) * W, 3 * Cin)

    wc = w_conv.reshape(3, 3 * Cin, Cout).astype(jnp.bfloat16)   # (dy, dx*Cin+c, o)
    bc = b_conv.reshape(1, Cout).astype(jnp.float32)
    whb = wh.astype(jnp.bfloat16)
    bhf = bh.astype(jnp.float32)

    tm = th * W
    M = B * n_tiles * tm
    kernel = functools.partial(_rpn_fused_kernel, W=W, th=th, A=A)

    head = pl.pallas_call(
        kernel,
        out_shape=jax.ShapeDtypeStruct((M, NH), jnp.float32),
        grid=(B * n_tiles,),
        in_specs=[pl.BlockSpec((None, (th + 2) * W, 3 * Cin), lambda i: (i, 0, 0)),
                  pl.BlockSpec((3, 3 * Cin, Cout), lambda i: (0, 0, 0)),
                  pl.BlockSpec((1, Cout), lambda i: (0, 0)),
                  pl.BlockSpec((Cout, NH), lambda i: (0, 0)),
                  pl.BlockSpec((1, NH), lambda i: (0, 0))],
        out_specs=pl.BlockSpec((tm, NH), lambda i: (i, 0)),
        compiler_params=pltpu.CompilerParams(dimension_semantics=("parallel",)),
    )(wins, wc, bc, whb, bhf)

    head = head.reshape(B, Hp, W, NH)[:, :H]
    fg_prob = head[..., :A]
    bbox_pred = head[..., A:5 * A]
    return fg_prob, bbox_pred


# ====================== anchors / proposal layer (glue) ======================

def _whctrs(a):
    w = a[2] - a[0] + 1.0
    h = a[3] - a[1] + 1.0
    return w, h, a[0] + 0.5 * (w - 1.0), a[1] + 0.5 * (h - 1.0)


def _mkanchors(ws, hs, x_ctr, y_ctr):
    ws = ws[:, None]
    hs = hs[:, None]
    return np.hstack((x_ctr - 0.5 * (ws - 1), y_ctr - 0.5 * (hs - 1),
                      x_ctr + 0.5 * (ws - 1), y_ctr + 0.5 * (hs - 1)))


def generate_anchors(base_size=16, ratios=ANCHOR_RATIOS, scales=ANCHOR_SCALES):
    base = np.array([1.0, 1.0, base_size, base_size], dtype=np.float64) - 1.0
    w, h, x, y = _whctrs(base)
    size = w * h
    size_ratios = size / np.array(ratios, dtype=np.float64)
    ws = np.round(np.sqrt(size_ratios))
    hs = np.round(ws * np.array(ratios, dtype=np.float64))
    ratio_anchors = _mkanchors(ws, hs, x, y)
    out = []
    for i in range(ratio_anchors.shape[0]):
        w, h, x, y = _whctrs(ratio_anchors[i])
        out.append(_mkanchors(w * np.array(scales), h * np.array(scales), x, y))
    return np.vstack(out).astype(np.float32)


def proposal_layer(fg_prob, bbox_deltas, im_info, anchors_np, feat_stride, topk):
    """Anchor decode + clip + top-k (no NMS).  fg_prob: (B,H,W,A), deltas: (B,H,W,4A)."""
    B, H, W, A = fg_prob.shape
    shift_x = jnp.arange(W, dtype=jnp.float32) * feat_stride
    shift_y = jnp.arange(H, dtype=jnp.float32) * feat_stride
    sx, sy = jnp.meshgrid(shift_x, shift_y)                      # (H, W), xy indexing
    shifts = jnp.stack([sx, sy, sx, sy], axis=-1).reshape(H * W, 1, 4)
    anchors = jnp.asarray(anchors_np).reshape(1, A, 4) + shifts  # (H*W, A, 4)
    anchors = anchors.reshape(1, H * W * A, 4)

    deltas = bbox_deltas.reshape(B, H * W * A, 4)
    scores = fg_prob.reshape(B, H * W * A)

    widths = anchors[..., 2] - anchors[..., 0] + 1.0
    heights = anchors[..., 3] - anchors[..., 1] + 1.0
    ctr_x = anchors[..., 0] + 0.5 * widths
    ctr_y = anchors[..., 1] + 0.5 * heights
    dx, dy, dw, dh = deltas[..., 0], deltas[..., 1], deltas[..., 2], deltas[..., 3]
    pcx = dx * widths + ctr_x
    pcy = dy * heights + ctr_y
    pw = jnp.exp(dw) * widths
    ph = jnp.exp(dh) * heights
    x1, y1 = pcx - 0.5 * pw, pcy - 0.5 * ph
    x2, y2 = pcx + 0.5 * pw, pcy + 0.5 * ph

    imh = im_info[:, 0:1]
    imw = im_info[:, 1:2]
    x1 = jnp.clip(x1, 0.0, imw - 1.0)
    x2 = jnp.clip(x2, 0.0, imw - 1.0)
    y1 = jnp.clip(y1, 0.0, imh - 1.0)
    y2 = jnp.clip(y2, 0.0, imh - 1.0)
    boxes = jnp.stack([x1, y1, x2, y2], axis=-1)                 # (B, N, 4)

    _, order = jax.lax.top_k(scores, topk)                       # cheaper than argsort
    top_boxes = jnp.take_along_axis(boxes, order[..., None], axis=1)
    # TODO(synk): NMS of _ProposalLayer has no clean Pallas/TPU equivalent; top-k by score only.
    bidx = jnp.broadcast_to(jnp.arange(B, dtype=jnp.float32)[:, None, None], (B, topk, 1))
    return jnp.concatenate([bidx, top_boxes], axis=-1)           # (B, topk, 5)


# ====================== full RPN forward ======================

def init_params(key, din, A):
    k0, k1, k2 = jax.random.split(key, 3)
    return dict(
        w_conv=0.01 * jax.random.normal(k0, (3, 3, din, RPN_HIDDEN), jnp.float32),  # HWIO
        b_conv=jnp.zeros((RPN_HIDDEN,), jnp.float32),
        w_cls=0.01 * jax.random.normal(k1, (RPN_HIDDEN, 2 * A), jnp.float32),
        b_cls=jnp.zeros((2 * A,), jnp.float32),
        w_box=0.01 * jax.random.normal(k2, (RPN_HIDDEN, 4 * A), jnp.float32),
        b_box=jnp.zeros((4 * A,), jnp.float32),
    )


def rpn_forward(base_feat_nchw, im_info, gt_boxes, num_boxes, cls_ind, params):
    cls_ind = 0                              # cfg.rpn_univ path
    A = ANCHOR_NUM[cls_ind]
    x = jnp.transpose(base_feat_nchw, (0, 2, 3, 1))              # NCHW -> NHWC

    fg_prob, bbox_pred = rpn_conv_heads(
        x, params["w_conv"], params["b_conv"], params["w_cls"], params["b_cls"],
        params["w_box"], params["b_box"], A)

    anchors = generate_anchors(16, ANCHOR_RATIOS, ANCHOR_SCALES)
    rois = proposal_layer(fg_prob, bbox_pred, im_info, anchors, FEAT_STRIDE, POST_TOPK)

    # TODO(synk): training branch (_AnchorTargetLayer, cross-entropy, smooth-L1 losses)
    #             not implemented -- eval-mode forward returns zero losses as in PyTorch.
    del gt_boxes, num_boxes
    aux = dict(fg_prob=fg_prob, bbox_pred=bbox_pred)
    return rois, jnp.zeros((), jnp.float32), jnp.zeros((), jnp.float32), aux


# ====================== main ======================

if __name__ == "__main__":
    key = jax.random.PRNGKey(0)
    kx, kp = jax.random.split(key)

    B, Cin, H, W = 2, 16, 16, 16                       # small synthetic base_feat (NCHW)
    base_feat = jax.random.normal(kx, (B, Cin, H, W), jnp.float32)
    im_info = jnp.array([[H * FEAT_STRIDE, W * FEAT_STRIDE, 1.0]] * B, jnp.float32)
    A = ANCHOR_NUM[0]
    params = init_params(kp, Cin, A)

    rois, loss_cls, loss_box, aux = rpn_forward(base_feat, im_info, None, None, 0, params)
    jax.block_until_ready(rois)
    assert rois.shape == (B, POST_TOPK, 5)

    # sanity-check the fused Pallas kernel end-to-end against an XLA reference
    x_nhwc = jnp.transpose(base_feat, (0, 2, 3, 1))
    ref_conv = jax.lax.conv_general_dilated(
        x_nhwc, params["w_conv"], window_strides=(1, 1), padding="SAME",
        dimension_numbers=("NHWC", "HWIO", "NHWC"))
    ref_conv = jnp.maximum(ref_conv + params["b_conv"], 0.0)
    cls = jnp.einsum("bhwc,co->bhwo", ref_conv, params["w_cls"]) + params["b_cls"]
    sb, sf = cls[..., :A], cls[..., A:]
    ref_pf = jnp.exp(sf) / (jnp.exp(sb) + jnp.exp(sf))            # pairwise softmax (fg)
    ref_box = jnp.einsum("bhwc,co->bhwo", ref_conv, params["w_box"]) + params["b_box"]

    assert jnp.allclose(aux["fg_prob"], ref_pf, atol=2e-2, rtol=2e-2), "cls prob mismatch"
    assert jnp.allclose(aux["bbox_pred"], ref_box, atol=2e-3, rtol=2e-2), "bbox mismatch"

    print("KERNEL_OK")
</pallas_src>

<mosaic_0001>
module attributes {stable_mosaic.version = 11 : i64} {
  func.func @_rpn_fused_kernel(%arg0: i32, %arg1: memref<1x288x48xbf16, #tpu.memory_space<vmem>>, %arg2: memref<3x48x512xbf16, #tpu.memory_space<vmem>>, %arg3: memref<1x512xf32, #tpu.memory_space<vmem>>, %arg4: memref<512x128xbf16, #tpu.memory_space<vmem>>, %arg5: memref<1x128xf32, #tpu.memory_space<vmem>>, %arg6: memref<256x128xf32, #tpu.memory_space<vmem>>) attributes {dimension_semantics = [#tpu.dimension_semantics<parallel>], iteration_bounds = array<i64: 2>, scalar_prefetch = 0 : i64, scratch_operands = 0 : i64, tpu.core_type = #tpu.core_type<tc>, window_params = [{transform_indices = @transform_0, window_bounds = array<i64: 1, 288, 48>}, {pipeline_mode = #tpu.pipeline_mode<synchronous>, transform_indices = @transform_1, window_bounds = array<i64: 3, 48, 512>}, {pipeline_mode = #tpu.pipeline_mode<synchronous>, transform_indices = @transform_2, window_bounds = array<i64: 1, 512>}, {pipeline_mode = #tpu.pipeline_mode<synchronous>, transform_indices = @transform_3, window_bounds = array<i64: 512, 128>}, {pipeline_mode = #tpu.pipeline_mode<synchronous>, transform_indices = @transform_4, window_bounds = array<i64: 1, 128>}, {transform_indices = @transform_5, window_bounds = array<i64: 256, 128>}]} {
    %c0 = arith.constant 0 : index
    %c0_0 = arith.constant 0 : index
    %c0_1 = arith.constant 0 : index
    %0 = vector.load %arg1[%c0, %c0_0, %c0_1] : memref<1x288x48xbf16, #tpu.memory_space<vmem>>, vector<1x256x48xbf16>
    %1 = vector.shape_cast %0 : vector<1x256x48xbf16> to vector<256x48xbf16>
    %c0_2 = arith.constant 0 : index
    %c0_3 = arith.constant 0 : index
    %c0_4 = arith.constant 0 : index
    %2 = vector.load %arg2[%c0_2, %c0_3, %c0_4] : memref<3x48x512xbf16, #tpu.memory_space<vmem>>, vector<1x48x512xbf16>
    %3 = vector.shape_cast %2 : vector<1x48x512xbf16> to vector<48x512xbf16>
    %cst = arith.constant dense<0.000000e+00> : vector<256x512xf32>
    %4 = tpu.matmul %1, %3, %cst {dimension_numbers = #tpu.dot_dimension_numbers<[1], [0], [0], [1], [0, 0, 1, 1], [], []>} : vector<256x48xbf16>, vector<48x512xbf16>, vector<256x512xf32> -> vector<256x512xf32>
    %c0_5 = arith.constant 0 : index
    %c16 = arith.constant 16 : index
    %c0_6 = arith.constant 0 : index
    %5 = vector.load %arg1[%c0_5, %c16, %c0_6] : memref<1x288x48xbf16, #tpu.memory_space<vmem>>, vector<1x256x48xbf16>
    %6 = vector.shape_cast %5 : vector<1x256x48xbf16> to vector<256x48xbf16>
    %c1 = arith.constant 1 : index
    %c0_7 = arith.constant 0 : index
    %c0_8 = arith.constant 0 : index
    %7 = vector.load %arg2[%c1, %c0_7, %c0_8] : memref<3x48x512xbf16, #tpu.memory_space<vmem>>, vector<1x48x512xbf16>
    %8 = vector.shape_cast %7 : vector<1x48x512xbf16> to vector<48x512xbf16>
    %cst_9 = arith.constant dense<0.000000e+00> : vector<256x512xf32>
    %9 = tpu.matmul %6, %8, %cst_9 {dimension_numbers = #tpu.dot_dimension_numbers<[1], [0], [0], [1], [0, 0, 1, 1], [], []>} : vector<256x48xbf16>, vector<48x512xbf16>, vector<256x512xf32> -> vector<256x512xf32>
    %10 = arith.addf %4, %9 : vector<256x512xf32>
    %c0_10 = arith.constant 0 : index
    %c32 = arith.constant 32 : index
    %c0_11 = arith.constant 0 : index
    %11 = vector.load %arg1[%c0_10, %c32, %c0_11] : memref<1x288x48xbf16, #tpu.memory_space<vmem>>, vector<1x256x48xbf16>
    %12 = vector.shape_cast %11 : vector<1x256x48xbf16> to vector<256x48xbf16>
    %c2 = arith.constant 2 : index
    %c0_12 = arith.constant 0 : index
    %c0_13 = arith.constant 0 : index
    %13 = vector.load %arg2[%c2, %c0_12, %c0_13] : memref<3x48x512xbf16, #tpu.memory_space<vmem>>, vector<1x48x512xbf16>
    %14 = vector.shape_cast %13 : vector<1x48x512xbf16> to vector<48x512xbf16>
    %cst_14 = arith.constant dense<0.000000e+00> : vector<256x512xf32>
    %15 = tpu.matmul %12, %14, %cst_14 {dimension_numbers = #tpu.dot_dimension_numbers<[1], [0], [0], [1], [0, 0, 1, 1], [], []>} : vector<256x48xbf16>, vector<48x512xbf16>, vector<256x512xf32> -> vector<256x512xf32>
    %16 = arith.addf %10, %15 : vector<256x512xf32>
    %c0_15 = arith.constant 0 : index
    %c0_16 = arith.constant 0 : index
    %17 = vector.load %arg3[%c0_15, %c0_16] : memref<1x512xf32, #tpu.memory_space<vmem>>, vector<1x512xf32>
    %18 = vector.broadcast %17 : vector<1x512xf32> to vector<256x512xf32>
    %19 = arith.addf %16, %18 : vector<256x512xf32>
    %cst_17 = arith.constant 0.000000e+00 : f32
    %20 = vector.broadcast %cst_17 : f32 to vector<256x512xf32>
    %21 = arith.maximumf %19, %20 : vector<256x512xf32>
    %22 = arith.truncf %21 : vector<256x512xf32> to vector<256x512xbf16>
    %c0_18 = arith.constant 0 : index
    %c0_19 = arith.constant 0 : index
    %23 = vector.load %arg4[%c0_18, %c0_19] : memref<512x128xbf16, #tpu.memory_space<vmem>>, vector<512x128xbf16>
    %cst_20 = arith.constant dense<0.000000e+00> : vector<256x128xf32>
    %24 = tpu.matmul %22, %23, %cst_20 {dimension_numbers = #tpu.dot_dimension_numbers<[1], [0], [0], [1], [0, 0, 1, 1], [], []>} : vector<256x512xbf16>, vector<512x128xbf16>, vector<256x128xf32> -> vector<256x128xf32>
    %c0_21 = arith.constant 0 : index
    %c0_22 = arith.constant 0 : index
    %25 = vector.load %arg5[%c0_21, %c0_22] : memref<1x128xf32, #tpu.memory_space<vmem>>, vector<1x128xf32>
    %26 = vector.broadcast %25 : vector<1x128xf32> to vector<256x128xf32>
    %27 = arith.addf %24, %26 : vector<256x128xf32>
    %cst_23 = arith.constant 0.000000e+00 : f32
    %28 = vector.broadcast %cst_23 : f32 to vector<256x128xf32>
    %29 = arith.subf %28, %27 : vector<256x128xf32>
    %30 = math.exp %29 : vector<256x128xf32>
    %cst_24 = arith.constant 1.000000e+00 : f32
    %31 = vector.broadcast %cst_24 : f32 to vector<256x128xf32>
    %32 = arith.addf %31, %30 : vector<256x128xf32>
    %33 = tpu.reciprocal %32 {approx = true} : vector<256x128xf32> -> vector<256x128xf32>
    %34 = tpu.iota {dimensions = array<i32: 1>} : vector<256x128xi32>
    %c3_i32 = arith.constant 3 : i32
    %35 = vector.broadcast %c3_i32 : i32 to vector<256x128xi32>
    %36 = arith.cmpi slt, %34, %35 : vector<256x128xi32>
    %37 = arith.select %36, %33, %27 : vector<256x128xi1>, vector<256x128xf32>
    %c0_25 = arith.constant 0 : index
    %c0_26 = arith.constant 0 : index
    %38 = vector.load %arg6[%c0_25, %c0_26] : memref<256x128xf32, #tpu.memory_space<vmem>>, vector<256x128xf32>
    tpu.vector_store %arg6[%c0_25, %c0_26], %37 {strides = array<i32>} : memref<256x128xf32, #tpu.memory_space<vmem>>, vector<256x128xf32>,
    return
  }
  func.func @transform_0(%arg0: i32) -> (i32, i32, i32) {
    %c0_i32 = arith.constant 0 : i32
    %c0_i32_0 = arith.constant 0 : i32
    %c0_i32_1 = arith.constant 0 : i32
    return %arg0, %c0_i32, %c0_i32_0 : i32, i32, i32
  }
  func.func @transform_1(%arg0: i32) -> (i32, i32, i32) {
    %c0_i32 = arith.constant 0 : i32
    %c0_i32_0 = arith.constant 0 : i32
    %c0_i32_1 = arith.constant 0 : i32
    %c0_i32_2 = arith.constant 0 : i32
    return %c0_i32, %c0_i32_0, %c0_i32_1 : i32, i32, i32
  }
  func.func @transform_2(%arg0: i32) -> (i32, i32) {
    %c0_i32 = arith.constant 0 : i32
    %c0_i32_0 = arith.constant 0 : i32
    %c0_i32_1 = arith.constant 0 : i32
    return %c0_i32, %c0_i32_0 : i32, i32
  }
  func.func @transform_3(%arg0: i32) -> (i32, i32) {
    %c0_i32 = arith.constant 0 : i32
    %c0_i32_0 = arith.constant 0 : i32
    %c0_i32_1 = arith.constant 0 : i32
    return %c0_i32, %c0_i32_0 : i32, i32
  }
  func.func @transform_4(%arg0: i32) -> (i32, i32) {
    %c0_i32 = arith.constant 0 : i32
    %c0_i32_0 = arith.constant 0 : i32
    %c0_i32_1 = arith.constant 0 : i32
    return %c0_i32, %c0_i32_0 : i32, i32
  }
  func.func @transform_5(%arg0: i32) -> (i32, i32) {
    %c0_i32 = arith.constant 0 : i32
    %c0_i32_0 = arith.constant 0 : i32
    return %arg0, %c0_i32 : i32, i32
  }
}

</mosaic_0001>

<llo_original>
// kernel: tpu_custom_call.1
$region0: #{tpu_custom_call.1}
  #allocation0 [shape = 'u32[]', space=smem, size = 0x4, offset = 0x4, fixed_abs, tag = 'smem constant byte address 0x4 - core index']
  #allocation1 [shape = 'u32[144,128]{1,0:T(1,128)}', space=vmem, size = 0x12000, scoped, tag = 'internal scratch']
  %s0 = inlined_call_operand.vmem [shape: bf16[2,288,48], index: 0, kind: input, shape index: {}]
  %s1 = inlined_call_operand.vmem [shape: bf16[3,48,512], index: 1, kind: input, shape index: {}]
  %s2 = inlined_call_operand.vmem [shape: f32[1,512], index: 2, kind: input, shape index: {}]
  %s3 = inlined_call_operand.hbm [shape: bf16[512,128], index: 3, kind: input, shape index: {}]
  %s4 = inlined_call_operand.vmem [shape: f32[1,128], index: 4, kind: input, shape index: {}]
  %s5 = inlined_call_operand.hbm [shape: f32[512,128], index: 5, kind: output, shape index: {}]
  %s6 = sld [smem:[#allocation0]]
  $region57: #{tpu_custom_call.1} parent=0
    _
  %s8 = ssub.s32 1, %s6
  %s9 = scalar_select 0, %s8, %s6
  $region1: #{tpu_custom_call.1} parent=0
    #allocation2 [shape = 'u8[131072]{0}', space=vmem, size = 0x20000, scoped, tag = 'input window, operand 3, single buffered']
    #allocation3 [shape = 's32[2]{0}', space=sflag, size = 0x8, scoped, tag = 'scoped memory for tpu_custom_call.1']
    #allocation4 [shape = 's32[2]{0}', space=sflag, size = 0x8, scoped, tag = 'scoped memory for tpu_custom_call.1']
    #allocation5 [shape = 'u8[262144]{0}', space=vmem, size = 0x40000, scoped, tag = 'output window, operand 0']
    %10 = vsyncpa [#allocation3], 0
    %11 = vsyncpa [#allocation4], 0
    %s12 = scalar_lea.sflag [#allocation4], 1
    %13 = vsyncpa %s12, 0
    loop: start=0, step=1, limit=4
    $region2: #{tpu_custom_call.1} parent=1 // loop_pre_header
      _
    $region3: #{tpu_custom_call.1} parent=1 // loop_header
      %s15 = sphi 0, %s19
      %p16 = scmp.ge.s32.totalorder %s15, 4
      %s25 = sphi 0, %s27
      %s28 = sphi 0, %s25
      %s29 = sphi 0, %s28
      %s45 = sphi 0, %s29
      %s49 = sphi 0, %s49
      %s51 = sphi 0, %s49
      %s52 = sphi 0, %s51
      %s66 = sphi 0, %s52
      %s70 = sphi 0, %s70
      %s72 = sphi 0, %s70
      %s73 = sphi 0, %s72
      %s87 = sphi 0, %s73
      %s91 = sphi 0, %s91
      %s93 = sphi 0, %s91
      %s94 = sphi 0, %s93
      %s108 = sphi 0, %s94
      %s112 = sphi 0, %s112
      %s114 = sphi 0, %s112
      %s115 = sphi 0, %s114
      %s129 = sphi 0, %s115
      %s135 = sphi 0, %s137
      %s138 = sphi 0, %s135
      %s139 = sphi 0, %s138
      %s155 = sphi 0, %s139
    $region4: #{tpu_custom_call.1} parent=1 // loop_header_branch
      %18 = sbr.rel (%p16) target = $region8
    $region5: #{tpu_custom_call.1} parent=1 // loop_body
      %s20 = ssub.s32 %s15, 1
      %s21 = ssub.s32 %s15, 2
      %s22 = sadd.s32 %s15, 1
      %s23 = ssub.s32 %s15, %s22
      %p24 = scmp.eq.s32.totalorder %s23, 0
      %s26 = sadd.s32 %s25, 1
      %s27 = scalar_select %p24, %s25, %s26
      %p30 = pneg %p24
      %p31 = scmp.eq.s32.totalorder %s15, 1
      %p32 = por %p30, %p31
      %p33 = scmp.ne.s32.totalorder %s25, %s28
      %p34 = scmp.eq.s32.totalorder %s15, 0
      %p35 = por %p33, %p34
      %p36 = scmp.ne.s32.totalorder %s25, %s28
      %p37 = scmp.eq.s32.totalorder %s20, 1
      %p38 = por %p36, %p37
      %p39 = scmp.ne.s32.totalorder %s28, %s29
      %p40 = scmp.eq.s32.totalorder %s20, 0
      %p41 = por %p39, %p40
      %p42 = scmp.ne.s32.totalorder %s28, %s29
      %p43 = scmp.eq.s32.totalorder %s21, 1
      %p44 = por %p42, %p43
      %p46 = scmp.ne.s32.totalorder %s29, %s45
      %p47 = scmp.eq.s32.totalorder %s21, 0
      %p48 = por %p46, %p47
      %s50 = sadd.s32 %s49, 1
      %p53 = scmp.eq.s32.totalorder %s15, 1
      %p54 = scmp.ne.s32.totalorder %s49, %s51
      %p55 = scmp.eq.s32.totalorder %s15, 0
      %p56 = por %p54, %p55
      %p57 = scmp.ne.s32.totalorder %s49, %s51
      %p58 = scmp.eq.s32.totalorder %s20, 1
      %p59 = por %p57, %p58
      %p60 = scmp.ne.s32.totalorder %s51, %s52
      %p61 = scmp.eq.s32.totalorder %s20, 0
      %p62 = por %p60, %p61
      %p63 = scmp.ne.s32.totalorder %s51, %s52
      %p64 = scmp.eq.s32.totalorder %s21, 1
      %p65 = por %p63, %p64
      %p67 = scmp.ne.s32.totalorder %s52, %s66
      %p68 = scmp.eq.s32.totalorder %s21, 0
      %p69 = por %p67, %p68
      %s71 = sadd.s32 %s70, 1
      %p74 = scmp.eq.s32.totalorder %s15, 1
      %p75 = scmp.ne.s32.totalorder %s70, %s72
      %p76 = scmp.eq.s32.totalorder %s15, 0
      %p77 = por %p75, %p76
      %p78 = scmp.ne.s32.totalorder %s70, %s72
      %p79 = scmp.eq.s32.totalorder %s20, 1
      %p80 = por %p78, %p79
      %p81 = scmp.ne.s32.totalorder %s72, %s73
      %p82 = scmp.eq.s32.totalorder %s20, 0
      %p83 = por %p81, %p82
      %p84 = scmp.ne.s32.totalorder %s72, %s73
      %p85 = scmp.eq.s32.totalorder %s21, 1
      %p86 = por %p84, %p85
      %p88 = scmp.ne.s32.totalorder %s73, %s87
      %p89 = scmp.eq.s32.totalorder %s21, 0
      %p90 = por %p88, %p89
      %s92 = sadd.s32 %s91, 1
      %p95 = scmp.eq.s32.totalorder %s15, 1
      %p96 = scmp.ne.s32.totalorder %s91, %s93
      %p97 = scmp.eq.s32.totalorder %s15, 0
      %p98 = por %p96, %p97
      %p99 = scmp.ne.s32.totalorder %s91, %s93
      %p100 = scmp.eq.s32.totalorder %s20, 1
      %p101 = por %p99, %p100
      %p102 = scmp.ne.s32.totalorder %s93, %s94
      %p103 = scmp.eq.s32.totalorder %s20, 0
      %p104 = por %p102, %p103
      %p105 = scmp.ne.s32.totalorder %s93, %s94
      %p106 = scmp.eq.s32.totalorder %s21, 1
      %p107 = por %p105, %p106
      %p109 = scmp.ne.s32.totalorder %s94, %s108
      %p110 = scmp.eq.s32.totalorder %s21, 0
      %p111 = por %p109, %p110
      %s113 = sadd.s32 %s112, 1
      %p116 = scmp.eq.s32.totalorder %s15, 1
      %p117 = scmp.ne.s32.totalorder %s112, %s114
      %p118 = scmp.eq.s32.totalorder %s15, 0
      %p119 = por %p117, %p118
      %p120 = scmp.ne.s32.totalorder %s112, %s114
      %p121 = scmp.eq.s32.totalorder %s20, 1
      %p122 = por %p120, %p121
      %p123 = scmp.ne.s32.totalorder %s114, %s115
      %p124 = scmp.eq.s32.totalorder %s20, 0
      %p125 = por %p123, %p124
      %p126 = scmp.ne.s32.totalorder %s114, %s115
      %p127 = scmp.eq.s32.totalorder %s21, 1
      %p128 = por %p126, %p127
      %p130 = scmp.ne.s32.totalorder %s115, %s129
      %p131 = scmp.eq.s32.totalorder %s21, 0
      %p132 = por %p130, %p131
      %s133 = ssub.s32 %s15, %s22
      %p134 = scmp.eq.s32.totalorder %s133, 0
      %s136 = sadd.s32 %s135, 1
      %s137 = scalar_select %p134, %s135, %s136
      %p140 = pneg %p134
      %p141 = scmp.eq.s32.totalorder %s15, 1
      %p142 = por %p140, %p141
      %p143 = scmp.ne.s32.totalorder %s135, %s138
      %p144 = scmp.eq.s32.totalorder %s15, 0
      %p145 = por %p143, %p144
      %p146 = scmp.ne.s32.totalorder %s135, %s138
      %p147 = scmp.eq.s32.totalorder %s20, 1
      %p148 = por %p146, %p147
      %p149 = scmp.ne.s32.totalorder %s138, %s139
      %p150 = scmp.eq.s32.totalorder %s20, 0
      %p151 = por %p149, %p150
      %p152 = scmp.ne.s32.totalorder %s138, %s139
      %p153 = scmp.eq.s32.totalorder %s21, 1
      %p154 = por %p152, %p153
      %p156 = scmp.ne.s32.totalorder %s139, %s155
      %p157 = scmp.eq.s32.totalorder %s21, 0
      %p158 = por %p156, %p157
      %p159 = scmp.le.s32.totalorder 1, %s15
      %p160 = scmp.lt.s32.totalorder %s15, 3
      %p161 = pnand %p159, %p160
      %p162 = pneg %p161
      // Predicated region
      $region9: #{tpu_custom_call.1} parent=5 // pred_check
        _
      $region10: #{tpu_custom_call.1} parent=5 // pred_check_branch
        %164 = sbr.rel (%p161) target = $region12
      $region11: #{tpu_custom_call.1} parent=5 // pred_region
        %s165 = ssub.s32 %s15, 1
        // Predicated region
        $region13: #{tpu_custom_call.1} parent=11 // pred_check
          %p166 = pneg %p62
        $region14: #{tpu_custom_call.1} parent=11 // pred_check_branch
          %168 = sbr.rel (%p166) target = $region16
        $region15: #{tpu_custom_call.1} parent=11 // pred_region
          _
        $region16: #{tpu_custom_call.1} parent=11 // pred_fallthru
          _
        // Predicated region
        $region17: #{tpu_custom_call.1} parent=11 // pred_check
          %p169 = pneg %p83
        $region18: #{tpu_custom_call.1} parent=11 // pred_check_branch
          %171 = sbr.rel (%p169) target = $region20
        $region19: #{tpu_custom_call.1} parent=11 // pred_region
          _
        $region20: #{tpu_custom_call.1} parent=11 // pred_fallthru
          _
        // Predicated region
        $region21: #{tpu_custom_call.1} parent=11 // pred_check
          %p172 = pneg %p104
        $region22: #{tpu_custom_call.1} parent=11 // pred_check_branch
          %174 = sbr.rel (%p172) target = $region24
        $region23: #{tpu_custom_call.1} parent=11 // pred_region
          %s176 = ssub.s32 4096, 4096
          %177 = vsyncadd [#allocation3], %s176
          %s178 = sshll.u32 [#allocation2], 4
          %s179 = int_to_ptr.vmem [resolvable:$true] %s178
          %184 = dma.hbm_to_vmem [thread:$0]  %s3, 4096, %s179, [#allocation3], 64, 64, 4
        $region24: #{tpu_custom_call.1} parent=11 // pred_fallthru
          _
        // Predicated region
        $region25: #{tpu_custom_call.1} parent=11 // pred_check
          %p185 = pneg %p125
        $region26: #{tpu_custom_call.1} parent=11 // pred_check_branch
          %187 = sbr.rel (%p185) target = $region28
        $region27: #{tpu_custom_call.1} parent=11 // pred_region
          _
        $region28: #{tpu_custom_call.1} parent=11 // pred_fallthru
          _
      $region12: #{tpu_custom_call.1} parent=5 // pred_fallthru
        _
      %p188 = scmp.lt.s32.totalorder %s15, 2
      // Predicated region
      $region29: #{tpu_custom_call.1} parent=5 // pred_check
        %p189 = pneg %p188
      $region30: #{tpu_custom_call.1} parent=5 // pred_check_branch
        %191 = sbr.rel (%p189) target = $region32
      $region31: #{tpu_custom_call.1} parent=5 // pred_region
        // Predicated region
        $region33: #{tpu_custom_call.1} parent=31 // pred_check
          %p192 = pneg %p35
        $region34: #{tpu_custom_call.1} parent=31 // pred_check_branch
          %194 = sbr.rel (%p192) target = $region36
        $region35: #{tpu_custom_call.1} parent=31 // pred_region
          %p195 = scmp.lt.s32.totalorder %s15, 1
          %s196 = scalar_select %p195, %s15, 1
          %s197 = smul.addr %s196, 36
          %s198 = smul.addr %s197, 4
          %s199 = scalar_lea.vmem %s0, %s198
        $region36: #{tpu_custom_call.1} parent=31 // pred_fallthru
          _
      $region32: #{tpu_custom_call.1} parent=5 // pred_fallthru
        _
      %p200 = scmp.le.s32.totalorder 1, %s15
      %p201 = scmp.lt.s32.totalorder %s15, 3
      %p202 = pnand %p200, %p201
      %p203 = pneg %p202
      // Predicated region
      $region37: #{tpu_custom_call.1} parent=5 // pred_check
        _
      $region38: #{tpu_custom_call.1} parent=5 // pred_check_branch
        %205 = sbr.rel (%p202) target = $region40
      $region39: #{tpu_custom_call.1} parent=5 // pred_region
        %s206 = ssub.s32 %s15, 1
        // Predicated region
        $region41: #{tpu_custom_call.1} parent=39 // pred_check
          %p207 = pneg %p104
        $region42: #{tpu_custom_call.1} parent=39 // pred_check_branch
          %209 = sbr.rel (%p207) target = $region44
        $region43: #{tpu_custom_call.1} parent=39 // pred_region
          %210 = dma.done [#allocation3], 4096
        $region44: #{tpu_custom_call.1} parent=39 // pred_fallthru
          _
        %p211 = scmp.lt.s32.totalorder %s20, 1
        %s212 = scalar_select %p211, %s20, 1
        %s213 = smul.addr %s212, 36
        %s214 = smul.addr %s213, 4
        %s215 = scalar_lea.vmem %s0, %s214
        %p216 = pneg %p41
        %p217 = pneg %p38
        %p218 = pneg %p62
        %p219 = pneg %p59
        %p220 = pneg %p83
        %p221 = pneg %p80
        %p222 = pneg %p104
        %p223 = pneg %p101
        %p224 = pneg %p125
        %p225 = pneg %p122
        %p226 = pneg %p151
        %p227 = pneg %p148
        %s228 = sand.u32 %s138, 1
        %s229 = scalar_lea.sflag [#allocation4], %s228
        %s230 = sand.u32 %s138, 1
        %s231 = smul.addr %s230, 256
        %s232 = scalar_lea.vmem [#allocation5], %s231
        %p233 = scmp.lt.s32.totalorder %s20, 1
        %s234 = scalar_select %p233, %s20, 1
        %s235 = smul.addr %s234, 36
        %s236 = smul.addr %s235, 4
        %s237 = scalar_lea.vmem %s0, %s236
        %s238 = smul.u32 32, %s20
        %v240 = vld [vmem:[%s237] sm:$0xf]
        %v241 = vld [vmem:[%s237 + $0x4] sm:$0xf]
        %v242 = vld [vmem:[%s237 + $0x8] sm:$0xf]
        %v243 = vld [vmem:[%s237 + $0xc] sm:$0xf]
        %v244 = vld [vmem:[%s237 + $0x10] sm:$0xf]
        %v245 = vld [vmem:[%s237 + $0x14] sm:$0xf]
        %v246 = vld [vmem:[%s237 + $0x18] sm:$0xf]
        %v247 = vld [vmem:[%s237 + $0x1c] sm:$0xf]
        %v248 = vld [vmem:[%s237 + $0x20] sm:$0xf]
        %v249 = vld [vmem:[%s237 + $0x24] sm:$0xf]
        %v250 = vld [vmem:[%s237 + $0x28] sm:$0xf]
        %v251 = vld [vmem:[%s237 + $0x2c] sm:$0xf]
        %v252 = vld [vmem:[%s237 + $0x30] sm:$0xf]
        %v253 = vld [vmem:[%s237 + $0x34] sm:$0xf]
        %v254 = vld [vmem:[%s237 + $0x38] sm:$0xf]
        %v255 = vld [vmem:[%s237 + $0x3c] sm:$0xf]
        %v256 = vld [vmem:[%s237 + $0x40] sm:$0xf]
        %v257 = vld [vmem:[%s237 + $0x44] sm:$0xf]
        %v258 = vld [vmem:[%s237 + $0x48] sm:$0xf]
        %v259 = vld [vmem:[%s237 + $0x4c] sm:$0xf]
        %v260 = vld [vmem:[%s237 + $0x50] sm:$0xf]
        %v261 = vld [vmem:[%s237 + $0x54] sm:$0xf]
        %v262 = vld [vmem:[%s237 + $0x58] sm:$0xf]
        %v263 = vld [vmem:[%s237 + $0x5c] sm:$0xf]
        %v264 = vld [vmem:[%s237 + $0x60] sm:$0xf]
        %v265 = vld [vmem:[%s237 + $0x64] sm:$0xf]
        %v266 = vld [vmem:[%s237 + $0x68] sm:$0xf]
        %v267 = vld [vmem:[%s237 + $0x6c] sm:$0xf]
        %v268 = vld [vmem:[%s237 + $0x70] sm:$0xf]
        %v269 = vld [vmem:[%s237 + $0x74] sm:$0xf]
        %v270 = vld [vmem:[%s237 + $0x78] sm:$0xf]
        %v271 = vld [vmem:[%s237 + $0x7c] sm:$0xf]
        %v272 = vld [vmem:[%s1] sm:$0xff]
        %v273 = vld [vmem:[%s1 + $0x8] sm:$0xff]
        %v274 = vld [vmem:[%s1 + $0x10] sm:$0xff]
        %v275 = vld [vmem:[%s1 + $0x18] sm:$0xff]
        %v276 = vld [vmem:[%s1 + $0x20] sm:$0xff]
        %v277 = vld [vmem:[%s1 + $0x28] sm:$0xff]
        %v278 = vld [vmem:[%s1 + $0x30] sm:$0xff]
        %v279 = vld [vmem:[%s1 + $0x38] sm:$0xff]
        %v280 = vld [vmem:[%s1 + $0x40] sm:$0xff]
        %v281 = vld [vmem:[%s1 + $0x48] sm:$0xff]
        %v282 = vld [vmem:[%s1 + $0x50] sm:$0xff]
        %v283 = vld [vmem:[%s1 + $0x58] sm:$0xff]
        %v284 = vld [vmem:[%s237 + $0x80] sm:$0xf]
        %v285 = vld [vmem:[%s237 + $0x84] sm:$0xf]
        %s286 = scalar_lea.vmem %s1, 96
        %v287 = vld [vmem:[%s286] sm:$0xff]
        %v288 = vld [vmem:[%s286 + $0x8] sm:$0xff]
        %v289 = vld [vmem:[%s286 + $0x10] sm:$0xff]
        %v290 = vld [vmem:[%s286 + $0x18] sm:$0xff]
        %v291 = vld [vmem:[%s286 + $0x20] sm:$0xff]
        %v292 = vld [vmem:[%s286 + $0x28] sm:$0xff]
        %v293 = vld [vmem:[%s286 + $0x30] sm:$0xff]
        %v294 = vld [vmem:[%s286 + $0x38] sm:$0xff]
        %v295 = vld [vmem:[%s286 + $0x40] sm:$0xff]
        %v296 = vld [vmem:[%s286 + $0x48] sm:$0xff]
        %v297 = vld [vmem:[%s286 + $0x50] sm:$0xff]
        %v298 = vld [vmem:[%s286 + $0x58] sm:$0xff]
        %v331 = vunpack.c.l.b16 %v242
        %v332 = vunpack.c.l.b16 %v243
        %v333 = vunpack.c.l.b16 %v244
        %v334 = vunpack.c.l.b16 %v245
        %v335 = vunpack.c.l.b16 %v246
        %v336 = vunpack.c.l.b16 %v247
        %v337 = vunpack.c.l.b16 %v248
        %v338 = vunpack.c.l.b16 %v249
        %v339 = vunpack.c.l.b16 %v250
        %v340 = vunpack.c.l.b16 %v251
        %v341 = vunpack.c.l.b16 %v252
        %v342 = vunpack.c.l.b16 %v253
        %v343 = vunpack.c.l.b16 %v254
        %v344 = vunpack.c.l.b16 %v255
        %v345 = vunpack.c.l.b16 %v256
        %v346 = vunpack.c.l.b16 %v257
        %v347 = vunpack.c.l.b16 %v258
        %v348 = vunpack.c.l.b16 %v259
        %v349 = vunpack.c.l.b16 %v260
        %v350 = vunpack.c.l.b16 %v261
        %v351 = vunpack.c.l.b16 %v262
        %v352 = vunpack.c.l.b16 %v263
        %v353 = vunpack.c.l.b16 %v264
        %v354 = vunpack.c.l.b16 %v265
        %v355 = vunpack.c.l.b16 %v266
        %v356 = vunpack.c.l.b16 %v267
        %v357 = vunpack.c.l.b16 %v268
        %v358 = vunpack.c.l.b16 %v269
        %v359 = vunpack.c.l.b16 %v270
        %v360 = vunpack.c.l.b16 %v271
        %v361 = vunpack.c.l.b16 %v284
        %v362 = vunpack.c.l.b16 %v285
        %v363 = vpack.c.b16 %v332, %v331
        %v364 = vpack.c.b16 %v334, %v333
        %v365 = vpack.c.b16 %v336, %v335
        %v366 = vpack.c.b16 %v338, %v337
        %v367 = vpack.c.b16 %v340, %v339
        %v368 = vpack.c.b16 %v342, %v341
        %v369 = vpack.c.b16 %v344, %v343
        %v370 = vpack.c.b16 %v346, %v345
        %v371 = vpack.c.b16 %v348, %v347
        %v372 = vpack.c.b16 %v350, %v349
        %v373 = vpack.c.b16 %v352, %v351
        %v374 = vpack.c.b16 %v354, %v353
        %v375 = vpack.c.b16 %v356, %v355
        %v376 = vpack.c.b16 %v358, %v357
        %v377 = vpack.c.b16 %v360, %v359
        %v378 = vpack.c.b16 %v362, %v361
        %v391 = vunpack.c.l.b16 %v287
        %v392 = vunpack.c.h.b16 %v287
        %v393 = vunpack.c.l.b16 %v288
        %v394 = vunpack.c.h.b16 %v288
        %v395 = vunpack.c.l.b16 %v289
        %v396 = vunpack.c.h.b16 %v289
        %v397 = vunpack.c.l.b16 %v290
        %v398 = vunpack.c.h.b16 %v290
        %v399 = vunpack.c.l.b16 %v291
        %v400 = vunpack.c.h.b16 %v291
        %v401 = vunpack.c.l.b16 %v292
        %v402 = vunpack.c.h.b16 %v292
        %v403 = vunpack.c.l.b16 %v293
        %v404 = vunpack.c.h.b16 %v293
        %v405 = vunpack.c.l.b16 %v294
        %v406 = vunpack.c.h.b16 %v294
        %v407 = vunpack.c.l.b16 %v295
        %v408 = vunpack.c.h.b16 %v295
        %v409 = vunpack.c.l.b16 %v296
        %v410 = vunpack.c.h.b16 %v296
        %v411 = vunpack.c.l.b16 %v297
        %v412 = vunpack.c.h.b16 %v297
        %v413 = vunpack.c.l.b16 %v298
        %v414 = vunpack.c.h.b16 %v298
        %v415 = vpack.c.b16 %v395, %v391
        %v416 = vpack.c.b16 %v396, %v392
        %v417 = vpack.c.b16 %v397, %v393
        %v418 = vpack.c.b16 %v398, %v394
        %v419 = vpack.c.b16 %v403, %v399
        %v420 = vpack.c.b16 %v404, %v400
        %v421 = vpack.c.b16 %v405, %v401
        %v422 = vpack.c.b16 %v406, %v402
        %v423 = vpack.c.b16 %v411, %v407
        %v424 = vpack.c.b16 %v412, %v408
        %v425 = vpack.c.b16 %v413, %v409
        %v426 = vpack.c.b16 %v414, %v410
        %vm439 = vcmask 392192
        %v441 = vsel %vm439, %v363, 0
        %v444 = vsel %vm439, %v364, 0
        %v447 = vsel %vm439, %v365, 0
        %v450 = vsel %vm439, %v366, 0
        %v453 = vsel %vm439, %v367, 0
        %v456 = vsel %vm439, %v368, 0
        %v459 = vsel %vm439, %v369, 0
        %v462 = vsel %vm439, %v370, 0
        %v465 = vsel %vm439, %v371, 0
        %v468 = vsel %vm439, %v372, 0
        %v471 = vsel %vm439, %v373, 0
        %v474 = vsel %vm439, %v374, 0
        %v477 = vsel %vm439, %v375, 0
        %v480 = vsel %vm439, %v376, 0
        %v483 = vsel %vm439, %v377, 0
        %v486 = vsel %vm439, %v378, 0
        %488 = vmatprep.subr.bf16.mxu0 %v416
        %489 = vmatpush1.bf16.msra.mxu0 %v415
        %490 = vmatprep.subr.bf16.mxu0 %v420
        %491 = vmatpush1.bf16.msra.mxu0 %v419
        %492 = vmatprep.subr.bf16.mxu0 %v424
        %493 = vmatpush1.bf16.msra.mxu0 %v423
        %494 = vmatprep.subr.bf16.mxu0 0
        %495 = vmatpush1.bf16.msra.mxu0 0
        %496 = vmatprep.subr.bf16.mxu0 0
        %497 = vmatpush1.bf16.msra.mxu0 0
        %498 = vmatprep.subr.bf16.mxu0 0
        %499 = vmatpush1.bf16.msra.mxu0 0
        %500 = vmatprep.subr.bf16.mxu0 0
        %501 = vmatpush1.bf16.msra.mxu0 0
        %502 = vmatprep.subr.bf16.mxu0 0
        %503 = vmatpush1.bf16.msra.mxu0 0
        %504 = vmatprep.subr.bf16.mxu0 0
        %505 = vmatpush1.bf16.msra.mxu0 0
        %506 = vmatprep.subr.bf16.mxu0 0
        %507 = vmatpush1.bf16.msra.mxu0 0
        %508 = vmatprep.subr.bf16.mxu0 0
        %509 = vmatpush1.bf16.msra.mxu0 0
        %510 = vmatprep.subr.bf16.mxu0 0
        %511 = vmatpush1.bf16.msra.mxu0 0
        %512 = vmatprep.subr.bf16.mxu0 0
        %513 = vmatpush1.bf16.msra.mxu0 0
        %514 = vmatprep.subr.bf16.mxu0 0
        %515 = vmatpush1.bf16.msra.mxu0 0
        %516 = vmatprep.subr.bf16.mxu0 0
        %517 = vmatpush1.bf16.msra.mxu0 0
        %518 = vmatprep.subr.bf16.mxu0 0
        %519 = vmatpush1.bf16.msra.mxu0 0
        %520 = vmatprep.mubr.bf16.mxu0 0
        %521 = vmatmul.mubr.bf16.gmra.mrb[0].mxu0 %v441
        %v522 = vpop.f32.mrb[0].mxu0
        %v523 = vadd.f32 0.0, %v522
        %v524 = vpop.f32.mrb[0].mxu0
        %v525 = vadd.f32 0.0, %v524
        %v526 = vpop.f32.mrb[0].mxu0
        %v527 = vadd.f32 0.0, %v526
        %v528 = vpop.f32.mrb[0].mxu0
        %v529 = vadd.f32 0.0, %v528
        %530 = vmatprep.mubr.bf16.mxu0 0
        %531 = vmatmul.mubr.bf16.gmra.mrb[0].mxu0 %v444
        %v532 = vpop.f32.mrb[0].mxu0
        %v533 = vadd.f32 0.0, %v532
        %v534 = vpop.f32.mrb[0].mxu0
        %v535 = vadd.f32 0.0, %v534
        %v536 = vpop.f32.mrb[0].mxu0
        %v537 = vadd.f32 0.0, %v536
        %v538 = vpop.f32.mrb[0].mxu0
        %v539 = vadd.f32 0.0, %v538
        %540 = vmatprep.mubr.bf16.mxu0 0
        %541 = vmatmul.mubr.bf16.gmra.mrb[0].mxu0 %v447
        %v542 = vpop.f32.mrb[0].mxu0
        %v543 = vadd.f32 0.0, %v542
        %v544 = vpop.f32.mrb[0].mxu0
        %v545 = vadd.f32 0.0, %v544
        %v546 = vpop.f32.mrb[0].mxu0
        %v547 = vadd.f32 0.0, %v546
        %v548 = vpop.f32.mrb[0].mxu0
        %v549 = vadd.f32 0.0, %v548
        %550 = vmatprep.mubr.bf16.mxu0 0
        %551 = vmatmul.mubr.bf16.gmra.mrb[0].mxu0 %v450
        %v552 = vpop.f32.mrb[0].mxu0
        %v553 = vadd.f32 0.0, %v552
        %v554 = vpop.f32.mrb[0].mxu0
        %v555 = vadd.f32 0.0, %v554
        %v556 = vpop.f32.mrb[0].mxu0
        %v557 = vadd.f32 0.0, %v556
        %v558 = vpop.f32.mrb[0].mxu0
        %v559 = vadd.f32 0.0, %v558
        %560 = vmatprep.mubr.bf16.mxu0 0
        %561 = vmatmul.mubr.bf16.gmra.mrb[0].mxu0 %v453
        %v562 = vpop.f32.mrb[0].mxu0
        %v563 = vadd.f32 0.0, %v562
        %v564 = vpop.f32.mrb[0].mxu0
        %v565 = vadd.f32 0.0, %v564
        %v566 = vpop.f32.mrb[0].mxu0
        %v567 = vadd.f32 0.0, %v566
        %v568 = vpop.f32.mrb[0].mxu0
        %v569 = vadd.f32 0.0, %v568
        %570 = vmatprep.mubr.bf16.mxu0 0
        %571 = vmatmul.mubr.bf16.gmra.mrb[0].mxu0 %v456
        %v572 = vpop.f32.mrb[0].mxu0
        %v573 = vadd.f32 0.0, %v572
        %v574 = vpop.f32.mrb[0].mxu0
        %v575 = vadd.f32 0.0, %v574
        %v576 = vpop.f32.mrb[0].mxu0
        %v577 = vadd.f32 0.0, %v576
        %v578 = vpop.f32.mrb[0].mxu0
        %v579 = vadd.f32 0.0, %v578
        %580 = vmatprep.mubr.bf16.mxu0 0
        %581 = vmatmul.mubr.bf16.gmra.mrb[0].mxu0 %v459
        %v582 = vpop.f32.mrb[0].mxu0
        %v583 = vadd.f32 0.0, %v582
        %v584 = vpop.f32.mrb[0].mxu0
        %v585 = vadd.f32 0.0, %v584
        %v586 = vpop.f32.mrb[0].mxu0
        %v587 = vadd.f32 0.0, %v586
        %v588 = vpop.f32.mrb[0].mxu0
        %v589 = vadd.f32 0.0, %v588
        %590 = vmatprep.mubr.bf16.mxu0 0
        %591 = vmatmul.mubr.bf16.gmra.mrb[0].mxu0 %v462
        %v592 = vpop.f32.mrb[0].mxu0
        %v593 = vadd.f32 0.0, %v592
        %v594 = vpop.f32.mrb[0].mxu0
        %v595 = vadd.f32 0.0, %v594
        %v596 = vpop.f32.mrb[0].mxu0
        %v597 = vadd.f32 0.0, %v596
        %v598 = vpop.f32.mrb[0].mxu0
        %v599 = vadd.f32 0.0, %v598
        %600 = vmatprep.mubr.bf16.mxu0 0
        %601 = vmatmul.mubr.bf16.gmra.mrb[0].mxu0 %v465
        %v602 = vpop.f32.mrb[0].mxu0
        %v603 = vadd.f32 0.0, %v602
        %v604 = vpop.f32.mrb[0].mxu0
        %v605 = vadd.f32 0.0, %v604
        %v606 = vpop.f32.mrb[0].mxu0
        %v607 = vadd.f32 0.0, %v606
        %v608 = vpop.f32.mrb[0].mxu0
        %v609 = vadd.f32 0.0, %v608
        %610 = vmatprep.mubr.bf16.mxu0 0
        %611 = vmatmul.mubr.bf16.gmra.mrb[0].mxu0 %v468
        %v612 = vpop.f32.mrb[0].mxu0
        %v613 = vadd.f32 0.0, %v612
        %v614 = vpop.f32.mrb[0].mxu0
        %v615 = vadd.f32 0.0, %v614
        %v616 = vpop.f32.mrb[0].mxu0
        %v617 = vadd.f32 0.0, %v616
        %v618 = vpop.f32.mrb[0].mxu0
        %v619 = vadd.f32 0.0, %v618
        %620 = vmatprep.mubr.bf16.mxu0 0
        %621 = vmatmul.mubr.bf16.gmra.mrb[0].mxu0 %v471
        %v622 = vpop.f32.mrb[0].mxu0
        %v623 = vadd.f32 0.0, %v622
        %v624 = vpop.f32.mrb[0].mxu0
        %v625 = vadd.f32 0.0, %v624
        %v626 = vpop.f32.mrb[0].mxu0
        %v627 = vadd.f32 0.0, %v626
        %v628 = vpop.f32.mrb[0].mxu0
        %v629 = vadd.f32 0.0, %v628
        %630 = vmatprep.mubr.bf16.mxu0 0
        %631 = vmatmul.mubr.bf16.gmra.mrb[0].mxu0 %v474
        %v632 = vpop.f32.mrb[0].mxu0
        %v633 = vadd.f32 0.0, %v632
        %v634 = vpop.f32.mrb[0].mxu0
        %v635 = vadd.f32 0.0, %v634
        %v636 = vpop.f32.mrb[0].mxu0
        %v637 = vadd.f32 0.0, %v636
        %v638 = vpop.f32.mrb[0].mxu0
        %v639 = vadd.f32 0.0, %v638
        %640 = vmatprep.mubr.bf16.mxu0 0
        %641 = vmatmul.mubr.bf16.gmra.mrb[0].mxu0 %v477
        %v642 = vpop.f32.mrb[0].mxu0
        %v643 = vadd.f32 0.0, %v642
        %v644 = vpop.f32.mrb[0].mxu0
        %v645 = vadd.f32 0.0, %v644
        %v646 = vpop.f32.mrb[0].mxu0
        %v647 = vadd.f32 0.0, %v646
        %v648 = vpop.f32.mrb[0].mxu0
        %v649 = vadd.f32 0.0, %v648
        %650 = vmatprep.mubr.bf16.mxu0 0
        %651 = vmatmul.mubr.bf16.gmra.mrb[0].mxu0 %v480
        %v652 = vpop.f32.mrb[0].mxu0
        %v653 = vadd.f32 0.0, %v652
        %v654 = vpop.f32.mrb[0].mxu0
        %v655 = vadd.f32 0.0, %v654
        %v656 = vpop.f32.mrb[0].mxu0
        %v657 = vadd.f32 0.0, %v656
        %v658 = vpop.f32.mrb[0].mxu0
        %v659 = vadd.f32 0.0, %v658
        %660 = vmatprep.mubr.bf16.mxu0 0
        %661 = vmatmul.mubr.bf16.gmra.mrb[0].mxu0 %v483
        %v662 = vpop.f32.mrb[0].mxu0
        %v663 = vadd.f32 0.0, %v662
        %v664 = vpop.f32.mrb[0].mxu0
        %v665 = vadd.f32 0.0, %v664
        %v666 = vpop.f32.mrb[0].mxu0
        %v667 = vadd.f32 0.0, %v666
        %v668 = vpop.f32.mrb[0].mxu0
        %v669 = vadd.f32 0.0, %v668
        %670 = vmatprep.mubr.bf16.mxu0 0
        %671 = vmatmul.mubr.bf16.gmra.mrb[0].mxu0 %v486
        %v672 = vpop.f32.mrb[0].mxu0
        %v673 = vadd.f32 0.0, %v672
        %v674 = vpop.f32.mrb[0].mxu0
        %v675 = vadd.f32 0.0, %v674
        %v676 = vpop.f32.mrb[0].mxu0
        %v677 = vadd.f32 0.0, %v676
        %v678 = vpop.f32.mrb[0].mxu0
        %v679 = vadd.f32 0.0, %v678
        %680 = vdwg.mxu0
        %681 = vmatprep.subr.bf16.mxu0 %v418
        %682 = vmatpush1.bf16.msra.mxu0 %v417
        %683 = vmatprep.subr.bf16.mxu0 %v422
        %684 = vmatpush1.bf16.msra.mxu0 %v421
        %685 = vmatprep.subr.bf16.mxu0 %v426
        %686 = vmatpush1.bf16.msra.mxu0 %v425
        %687 = vmatprep.subr.bf16.mxu0 0
        %688 = vmatpush1.bf16.msra.mxu0 0
        %689 = vmatprep.subr.bf16.mxu0 0
        %690 = vmatpush1.bf16.msra.mxu0 0
        %691 = vmatprep.subr.bf16.mxu0 0
        %692 = vmatpush1.bf16.msra.mxu0 0
        %693 = vmatprep.subr.bf16.mxu0 0
        %694 = vmatpush1.bf16.msra.mxu0 0
        %695 = vmatprep.subr.bf16.mxu0 0
        %696 = vmatpush1.bf16.msra.mxu0 0
        %697 = vmatprep.subr.bf16.mxu0 0
        %698 = vmatpush1.bf16.msra.mxu0 0
        %699 = vmatprep.subr.bf16.mxu0 0
        %700 = vmatpush1.bf16.msra.mxu0 0
        %701 = vmatprep.subr.bf16.mxu0 0
        %702 = vmatpush1.bf16.msra.mxu0 0
        %703 = vmatprep.subr.bf16.mxu0 0
        %704 = vmatpush1.bf16.msra.mxu0 0
        %705 = vmatprep.subr.bf16.mxu0 0
        %706 = vmatpush1.bf16.msra.mxu0 0
        %707 = vmatprep.subr.bf16.mxu0 0
        %708 = vmatpush1.bf16.msra.mxu0 0
        %709 = vmatprep.subr.bf16.mxu0 0
        %710 = vmatpush1.bf16.msra.mxu0 0
        %711 = vmatprep.subr.bf16.mxu0 0
        %712 = vmatpush1.bf16.msra.mxu0 0
        %713 = vmatprep.mubr.bf16.mxu0 0
        %714 = vmatmul.mubr.bf16.gmra.mrb[0].mxu0 %v441
        %v715 = vpop.f32.mrb[0].mxu0
        %v716 = vadd.f32 0.0, %v715
        %v717 = vpop.f32.mrb[0].mxu0
        %v718 = vadd.f32 0.0, %v717
        %v719 = vpop.f32.mrb[0].mxu0
        %v720 = vadd.f32 0.0, %v719
        %v721 = vpop.f32.mrb[0].mxu0
        %v722 = vadd.f32 0.0, %v721
        %723 = vmatprep.mubr.bf16.mxu0 0
        %724 = vmatmul.mubr.bf16.gmra.mrb[0].mxu0 %v444
        %v725 = vpop.f32.mrb[0].mxu0
        %v726 = vadd.f32 0.0, %v725
        %v727 = vpop.f32.mrb[0].mxu0
        %v728 = vadd.f32 0.0, %v727
        %v729 = vpop.f32.mrb[0].mxu0
        %v730 = vadd.f32 0.0, %v729
        %v731 = vpop.f32.mrb[0].mxu0
        %v732 = vadd.f32 0.0, %v731
        %733 = vmatprep.mubr.bf16.mxu0 0
        %734 = vmatmul.mubr.bf16.gmra.mrb[0].mxu0 %v447
        %v735 = vpop.f32.mrb[0].mxu0
        %v736 = vadd.f32 0.0, %v735
        %v737 = vpop.f32.mrb[0].mxu0
        %v738 = vadd.f32 0.0, %v737
        %v739 = vpop.f32.mrb[0].mxu0
        %v740 = vadd.f32 0.0, %v739
        %v741 = vpop.f32.mrb[0].mxu0
        %v742 = vadd.f32 0.0, %v741
        %743 = vmatprep.mubr.bf16.mxu0 0
        %744 = vmatmul.mubr.bf16.gmra.mrb[0].mxu0 %v450
        %v745 = vpop.f32.mrb[0].mxu0
        %v746 = vadd.f32 0.0, %v745
        %v747 = vpop.f32.mrb[0].mxu0
        %v748 = vadd.f32 0.0, %v747
        %v749 = vpop.f32.mrb[0].mxu0
        %v750 = vadd.f32 0.0, %v749
        %v751 = vpop.f32.mrb[0].mxu0
        %v752 = vadd.f32 0.0, %v751
        %753 = vmatprep.mubr.bf16.mxu0 0
        %754 = vmatmul.mubr.bf16.gmra.mrb[0].mxu0 %v453
        %v755 = vpop.f32.mrb[0].mxu0
        %v756 = vadd.f32 0.0, %v755
        %v757 = vpop.f32.mrb[0].mxu0
        %v758 = vadd.f32 0.0, %v757
        %v759 = vpop.f32.mrb[0].mxu0
        %v760 = vadd.f32 0.0, %v759
        %v761 = vpop.f32.mrb[0].mxu0
        %v762 = vadd.f32 0.0, %v761
        %763 = vmatprep.mubr.bf16.mxu0 0
        %764 = vmatmul.mubr.bf16.gmra.mrb[0].mxu0 %v456
        %v765 = vpop.f32.mrb[0].mxu0
        %v766 = vadd.f32 0.0, %v765
        %v767 = vpop.f32.mrb[0].mxu0
        %v768 = vadd.f32 0.0, %v767
        %v769 = vpop.f32.mrb[0].mxu0
        %v770 = vadd.f32 0.0, %v769
        %v771 = vpop.f32.mrb[0].mxu0
        %v772 = vadd.f32 0.0, %v771
        %773 = vmatprep.mubr.bf16.mxu0 0
        %774 = vmatmul.mubr.bf16.gmra.mrb[0].mxu0 %v459
        %v775 = vpop.f32.mrb[0].mxu0
        %v776 = vadd.f32 0.0, %v775
        %v777 = vpop.f32.mrb[0].mxu0
        %v778 = vadd.f32 0.0, %v777
        %v779 = vpop.f32.mrb[0].mxu0
        %v780 = vadd.f32 0.0, %v779
        %v781 = vpop.f32.mrb[0].mxu0
        %v782 = vadd.f32 0.0, %v781
        %783 = vmatprep.mubr.bf16.mxu0 0
        %784 = vmatmul.mubr.bf16.gmra.mrb[0].mxu0 %v462
        %v785 = vpop.f32.mrb[0].mxu0
        %v786 = vadd.f32 0.0, %v785
        %v787 = vpop.f32.mrb[0].mxu0
        %v788 = vadd.f32 0.0, %v787
        %v789 = vpop.f32.mrb[0].mxu0
        %v790 = vadd.f32 0.0, %v789
        %v791 = vpop.f32.mrb[0].mxu0
        %v792 = vadd.f32 0.0, %v791
        %793 = vmatprep.mubr.bf16.mxu0 0
        %794 = vmatmul.mubr.bf16.gmra.mrb[0].mxu0 %v465
        %v795 = vpop.f32.mrb[0].mxu0
        %v796 = vadd.f32 0.0, %v795
        %v797 = vpop.f32.mrb[0].mxu0
        %v798 = vadd.f32 0.0, %v797
        %v799 = vpop.f32.mrb[0].mxu0
        %v800 = vadd.f32 0.0, %v799
        %v801 = vpop.f32.mrb[0].mxu0
        %v802 = vadd.f32 0.0, %v801
        %803 = vmatprep.mubr.bf16.mxu0 0
        %804 = vmatmul.mubr.bf16.gmra.mrb[0].mxu0 %v468
        %v805 = vpop.f32.mrb[0].mxu0
        %v806 = vadd.f32 0.0, %v805
        %v807 = vpop.f32.mrb[0].mxu0
        %v808 = vadd.f32 0.0, %v807
        %v809 = vpop.f32.mrb[0].mxu0
        %v810 = vadd.f32 0.0, %v809
        %v811 = vpop.f32.mrb[0].mxu0
        %v812 = vadd.f32 0.0, %v811
        %813 = vmatprep.mubr.bf16.mxu0 0
        %814 = vmatmul.mubr.bf16.gmra.mrb[0].mxu0 %v471
        %v815 = vpop.f32.mrb[0].mxu0
        %v816 = vadd.f32 0.0, %v815
        %v817 = vpop.f32.mrb[0].mxu0
        %v818 = vadd.f32 0.0, %v817
        %v819 = vpop.f32.mrb[0].mxu0
        %v820 = vadd.f32 0.0, %v819
        %v821 = vpop.f32.mrb[0].mxu0
        %v822 = vadd.f32 0.0, %v821
        %823 = vmatprep.mubr.bf16.mxu0 0
        %824 = vmatmul.mubr.bf16.gmra.mrb[0].mxu0 %v474
        %v825 = vpop.f32.mrb[0].mxu0
        %v826 = vadd.f32 0.0, %v825
        %v827 = vpop.f32.mrb[0].mxu0
        %v828 = vadd.f32 0.0, %v827
        %v829 = vpop.f32.mrb[0].mxu0
        %v830 = vadd.f32 0.0, %v829
        %v831 = vpop.f32.mrb[0].mxu0
        %v832 = vadd.f32 0.0, %v831
        %833 = vmatprep.mubr.bf16.mxu0 0
        %834 = vmatmul.mubr.bf16.gmra.mrb[0].mxu0 %v477
        %v835 = vpop.f32.mrb[0].mxu0
        %v836 = vadd.f32 0.0, %v835
        %v837 = vpop.f32.mrb[0].mxu0
        %v838 = vadd.f32 0.0, %v837
        %v839 = vpop.f32.mrb[0].mxu0
        %v840 = vadd.f32 0.0, %v839
        %v841 = vpop.f32.mrb[0].mxu0
        %v842 = vadd.f32 0.0, %v841
        %843 = vmatprep.mubr.bf16.mxu0 0
        %844 = vmatmul.mubr.bf16.gmra.mrb[0].mxu0 %v480
        %v845 = vpop.f32.mrb[0].mxu0
        %v846 = vadd.f32 0.0, %v845
        %v847 = vpop.f32.mrb[0].mxu0
        %v848 = vadd.f32 0.0, %v847
        %v849 = vpop.f32.mrb[0].mxu0
        %v850 = vadd.f32 0.0, %v849
        %v851 = vpop.f32.mrb[0].mxu0
        %v852 = vadd.f32 0.0, %v851
        %853 = vmatprep.mubr.bf16.mxu0 0
        %854 = vmatmul.mubr.bf16.gmra.mrb[0].mxu0 %v483
        %v855 = vpop.f32.mrb[0].mxu0
        %v856 = vadd.f32 0.0, %v855
        %v857 = vpop.f32.mrb[0].mxu0
        %v858 = vadd.f32 0.0, %v857
        %v859 = vpop.f32.mrb[0].mxu0
        %v860 = vadd.f32 0.0, %v859
        %v861 = vpop.f32.mrb[0].mxu0
        %v862 = vadd.f32 0.0, %v861
        %863 = vmatprep.mubr.bf16.mxu0 0
        %864 = vmatmul.mubr.bf16.gmra.mrb[0].mxu0 %v486
        %v865 = vpop.f32.mrb[0].mxu0
        %v866 = vadd.f32 0.0, %v865
        %v867 = vpop.f32.mrb[0].mxu0
        %v868 = vadd.f32 0.0, %v867
        %v869 = vpop.f32.mrb[0].mxu0
        %v870 = vadd.f32 0.0, %v869
        %v871 = vpop.f32.mrb[0].mxu0
        %v872 = vadd.f32 0.0, %v871
        %873 = vdwg.mxu0
        %v876 = vunpack.c.l.b16 %v240
        %v877 = vunpack.c.l.b16 %v241
        %v878 = vpack.c.b16 %v877, %v876
        %v891 = vunpack.c.l.b16 %v272
        %v892 = vunpack.c.h.b16 %v272
        %v893 = vunpack.c.l.b16 %v273
        %v894 = vunpack.c.h.b16 %v273
        %v895 = vunpack.c.l.b16 %v274
        %v896 = vunpack.c.h.b16 %v274
        %v897 = vunpack.c.l.b16 %v275
        %v898 = vunpack.c.h.b16 %v275
        %v899 = vunpack.c.l.b16 %v276
        %v900 = vunpack.c.h.b16 %v276
        %v901 = vunpack.c.l.b16 %v277
        %v902 = vunpack.c.h.b16 %v277
        %v903 = vunpack.c.l.b16 %v278
        %v904 = vunpack.c.h.b16 %v278
        %v905 = vunpack.c.l.b16 %v279
        %v906 = vunpack.c.h.b16 %v279
        %v907 = vunpack.c.l.b16 %v280
        %v908 = vunpack.c.h.b16 %v280
        %v909 = vunpack.c.l.b16 %v281
        %v910 = vunpack.c.h.b16 %v281
        %v911 = vunpack.c.l.b16 %v282
        %v912 = vunpack.c.h.b16 %v282
        %v913 = vunpack.c.l.b16 %v283
        %v914 = vunpack.c.h.b16 %v283
        %v915 = vpack.c.b16 %v895, %v891
        %v916 = vpack.c.b16 %v896, %v892
        %v917 = vpack.c.b16 %v897, %v893
        %v918 = vpack.c.b16 %v898, %v894
        %v919 = vpack.c.b16 %v903, %v899
        %v920 = vpack.c.b16 %v904, %v900
        %v921 = vpack.c.b16 %v905, %v901
        %v922 = vpack.c.b16 %v906, %v902
        %v923 = vpack.c.b16 %v911, %v907
        %v924 = vpack.c.b16 %v912, %v908
        %v925 = vpack.c.b16 %v913, %v909
        %v926 = vpack.c.b16 %v914, %v910
        %v940 = vsel %vm439, %v878, 0
        %942 = vmatprep.subr.bf16.mxu0 %v916
        %943 = vmatpush1.bf16.msra.mxu0 %v915
        %944 = vmatprep.subr.bf16.mxu0 %v920
        %945 = vmatpush1.bf16.msra.mxu0 %v919
        %946 = vmatprep.subr.bf16.mxu0 %v924
        %947 = vmatpush1.bf16.msra.mxu0 %v923
        %948 = vmatprep.subr.bf16.mxu0 0
        %949 = vmatpush1.bf16.msra.mxu0 0
        %950 = vmatprep.subr.bf16.mxu0 0
        %951 = vmatpush1.bf16.msra.mxu0 0
        %952 = vmatprep.subr.bf16.mxu0 0
        %953 = vmatpush1.bf16.msra.mxu0 0
        %954 = vmatprep.subr.bf16.mxu0 0
        %955 = vmatpush1.bf16.msra.mxu0 0
        %956 = vmatprep.subr.bf16.mxu0 0
        %957 = vmatpush1.bf16.msra.mxu0 0
        %958 = vmatprep.subr.bf16.mxu0 0
        %959 = vmatpush1.bf16.msra.mxu0 0
        %960 = vmatprep.subr.bf16.mxu0 0
        %961 = vmatpush1.bf16.msra.mxu0 0
        %962 = vmatprep.subr.bf16.mxu0 0
        %963 = vmatpush1.bf16.msra.mxu0 0
        %964 = vmatprep.subr.bf16.mxu0 0
        %965 = vmatpush1.bf16.msra.mxu0 0
        %966 = vmatprep.subr.bf16.mxu0 0
        %967 = vmatpush1.bf16.msra.mxu0 0
        %968 = vmatprep.subr.bf16.mxu0 0
        %969 = vmatpush1.bf16.msra.mxu0 0
        %970 = vmatprep.subr.bf16.mxu0 0
        %971 = vmatpush1.bf16.msra.mxu0 0
        %972 = vmatprep.subr.bf16.mxu0 0
        %973 = vmatpush1.bf16.msra.mxu0 0
        %974 = vmatprep.mubr.bf16.mxu0 0
        %975 = vmatmul.mubr.bf16.gmra.mrb[0].mxu0 %v940
        %v976 = vpop.f32.mrb[0].mxu0
        %v977 = vadd.f32 %v523, %v976
        %v978 = vpop.f32.mrb[0].mxu0
        %v979 = vadd.f32 %v525, %v978
        %v980 = vpop.f32.mrb[0].mxu0
        %v981 = vadd.f32 %v527, %v980
        %v982 = vpop.f32.mrb[0].mxu0
        %v983 = vadd.f32 %v529, %v982
        %984 = vmatprep.mubr.bf16.mxu0 0
        %985 = vmatmul.mubr.bf16.gmra.mrb[0].mxu0 %v441
        %v986 = vpop.f32.mrb[0].mxu0
        %v987 = vadd.f32 %v533, %v986
        %v988 = vpop.f32.mrb[0].mxu0
        %v989 = vadd.f32 %v535, %v988
        %v990 = vpop.f32.mrb[0].mxu0
        %v991 = vadd.f32 %v537, %v990
        %v992 = vpop.f32.mrb[0].mxu0
        %v993 = vadd.f32 %v539, %v992
        %994 = vmatprep.mubr.bf16.mxu0 0
        %995 = vmatmul.mubr.bf16.gmra.mrb[0].mxu0 %v444
        %v996 = vpop.f32.mrb[0].mxu0
        %v997 = vadd.f32 %v543, %v996
        %v998 = vpop.f32.mrb[0].mxu0
        %v999 = vadd.f32 %v545, %v998
        %v1000 = vpop.f32.mrb[0].mxu0
        %v1001 = vadd.f32 %v547, %v1000
        %v1002 = vpop.f32.mrb[0].mxu0
        %v1003 = vadd.f32 %v549, %v1002
        %1004 = vmatprep.mubr.bf16.mxu0 0
        %1005 = vmatmul.mubr.bf16.gmra.mrb[0].mxu0 %v447
        %v1006 = vpop.f32.mrb[0].mxu0
        %v1007 = vadd.f32 %v553, %v1006
        %v1008 = vpop.f32.mrb[0].mxu0
        %v1009 = vadd.f32 %v555, %v1008
        %v1010 = vpop.f32.mrb[0].mxu0
        %v1011 = vadd.f32 %v557, %v1010
        %v1012 = vpop.f32.mrb[0].mxu0
        %v1013 = vadd.f32 %v559, %v1012
        %1014 = vmatprep.mubr.bf16.mxu0 0
        %1015 = vmatmul.mubr.bf16.gmra.mrb[0].mxu0 %v450
        %v1016 = vpop.f32.mrb[0].mxu0
        %v1017 = vadd.f32 %v563, %v1016
        %v1018 = vpop.f32.mrb[0].mxu0
        %v1019 = vadd.f32 %v565, %v1018
        %v1020 = vpop.f32.mrb[0].mxu0
        %v1021 = vadd.f32 %v567, %v1020
        %v1022 = vpop.f32.mrb[0].mxu0
        %v1023 = vadd.f32 %v569, %v1022
        %1024 = vmatprep.mubr.bf16.mxu0 0
        %1025 = vmatmul.mubr.bf16.gmra.mrb[0].mxu0 %v453
        %v1026 = vpop.f32.mrb[0].mxu0
        %v1027 = vadd.f32 %v573, %v1026
        %v1028 = vpop.f32.mrb[0].mxu0
        %v1029 = vadd.f32 %v575, %v1028
        %v1030 = vpop.f32.mrb[0].mxu0
        %v1031 = vadd.f32 %v577, %v1030
        %v1032 = vpop.f32.mrb[0].mxu0
        %v1033 = vadd.f32 %v579, %v1032
        %1034 = vmatprep.mubr.bf16.mxu0 0
        %1035 = vmatmul.mubr.bf16.gmra.mrb[0].mxu0 %v456
        %v1036 = vpop.f32.mrb[0].mxu0
        %v1037 = vadd.f32 %v583, %v1036
        %v1038 = vpop.f32.mrb[0].mxu0
        %v1039 = vadd.f32 %v585, %v1038
        %v1040 = vpop.f32.mrb[0].mxu0
        %v1041 = vadd.f32 %v587, %v1040
        %v1042 = vpop.f32.mrb[0].mxu0
        %v1043 = vadd.f32 %v589, %v1042
        %1044 = vmatprep.mubr.bf16.mxu0 0
        %1045 = vmatmul.mubr.bf16.gmra.mrb[0].mxu0 %v459
        %v1046 = vpop.f32.mrb[0].mxu0
        %v1047 = vadd.f32 %v593, %v1046
        %v1048 = vpop.f32.mrb[0].mxu0
        %v1049 = vadd.f32 %v595, %v1048
        %v1050 = vpop.f32.mrb[0].mxu0
        %v1051 = vadd.f32 %v597, %v1050
        %v1052 = vpop.f32.mrb[0].mxu0
        %v1053 = vadd.f32 %v599, %v1052
        %1054 = vmatprep.mubr.bf16.mxu0 0
        %1055 = vmatmul.mubr.bf16.gmra.mrb[0].mxu0 %v462
        %v1056 = vpop.f32.mrb[0].mxu0
        %v1057 = vadd.f32 %v603, %v1056
        %v1058 = vpop.f32.mrb[0].mxu0
        %v1059 = vadd.f32 %v605, %v1058
        %v1060 = vpop.f32.mrb[0].mxu0
        %v1061 = vadd.f32 %v607, %v1060
        %v1062 = vpop.f32.mrb[0].mxu0
        %v1063 = vadd.f32 %v609, %v1062
        %1064 = vmatprep.mubr.bf16.mxu0 0
        %1065 = vmatmul.mubr.bf16.gmra.mrb[0].mxu0 %v465
        %v1066 = vpop.f32.mrb[0].mxu0
        %v1067 = vadd.f32 %v613, %v1066
        %v1068 = vpop.f32.mrb[0].mxu0
        %v1069 = vadd.f32 %v615, %v1068
        %v1070 = vpop.f32.mrb[0].mxu0
        %v1071 = vadd.f32 %v617, %v1070
        %v1072 = vpop.f32.mrb[0].mxu0
        %v1073 = vadd.f32 %v619, %v1072
        %1074 = vmatprep.mubr.bf16.mxu0 0
        %1075 = vmatmul.mubr.bf16.gmra.mrb[0].mxu0 %v468
        %v1076 = vpop.f32.mrb[0].mxu0
        %v1077 = vadd.f32 %v623, %v1076
        %v1078 = vpop.f32.mrb[0].mxu0
        %v1079 = vadd.f32 %v625, %v1078
        %v1080 = vpop.f32.mrb[0].mxu0
        %v1081 = vadd.f32 %v627, %v1080
        %v1082 = vpop.f32.mrb[0].mxu0
        %v1083 = vadd.f32 %v629, %v1082
        %1084 = vmatprep.mubr.bf16.mxu0 0
        %1085 = vmatmul.mubr.bf16.gmra.mrb[0].mxu0 %v471
        %v1086 = vpop.f32.mrb[0].mxu0
        %v1087 = vadd.f32 %v633, %v1086
        %v1088 = vpop.f32.mrb[0].mxu0
        %v1089 = vadd.f32 %v635, %v1088
        %v1090 = vpop.f32.mrb[0].mxu0
        %v1091 = vadd.f32 %v637, %v1090
        %v1092 = vpop.f32.mrb[0].mxu0
        %v1093 = vadd.f32 %v639, %v1092
        %1094 = vmatprep.mubr.bf16.mxu0 0
        %1095 = vmatmul.mubr.bf16.gmra.mrb[0].mxu0 %v474
        %v1096 = vpop.f32.mrb[0].mxu0
        %v1097 = vadd.f32 %v643, %v1096
        %v1098 = vpop.f32.mrb[0].mxu0
        %v1099 = vadd.f32 %v645, %v1098
        %v1100 = vpop.f32.mrb[0].mxu0
        %v1101 = vadd.f32 %v647, %v1100
        %v1102 = vpop.f32.mrb[0].mxu0
        %v1103 = vadd.f32 %v649, %v1102
        %1104 = vmatprep.mubr.bf16.mxu0 0
        %1105 = vmatmul.mubr.bf16.gmra.mrb[0].mxu0 %v477
        %v1106 = vpop.f32.mrb[0].mxu0
        %v1107 = vadd.f32 %v653, %v1106
        %v1108 = vpop.f32.mrb[0].mxu0
        %v1109 = vadd.f32 %v655, %v1108
        %v1110 = vpop.f32.mrb[0].mxu0
        %v1111 = vadd.f32 %v657, %v1110
        %v1112 = vpop.f32.mrb[0].mxu0
        %v1113 = vadd.f32 %v659, %v1112
        %1114 = vmatprep.mubr.bf16.mxu0 0
        %1115 = vmatmul.mubr.bf16.gmra.mrb[0].mxu0 %v480
        %v1116 = vpop.f32.mrb[0].mxu0
        %v1117 = vadd.f32 %v663, %v1116
        %v1118 = vpop.f32.mrb[0].mxu0
        %v1119 = vadd.f32 %v665, %v1118
        %v1120 = vpop.f32.mrb[0].mxu0
        %v1121 = vadd.f32 %v667, %v1120
        %v1122 = vpop.f32.mrb[0].mxu0
        %v1123 = vadd.f32 %v669, %v1122
        %1124 = vmatprep.mubr.bf16.mxu0 0
        %1125 = vmatmul.mubr.bf16.gmra.mrb[0].mxu0 %v483
        %v1126 = vpop.f32.mrb[0].mxu0
        %v1127 = vadd.f32 %v673, %v1126
        %v1128 = vpop.f32.mrb[0].mxu0
        %v1129 = vadd.f32 %v675, %v1128
        %v1130 = vpop.f32.mrb[0].mxu0
        %v1131 = vadd.f32 %v677, %v1130
        %v1132 = vpop.f32.mrb[0].mxu0
        %v1133 = vadd.f32 %v679, %v1132
        %1134 = vdwg.mxu0
        %1135 = vmatprep.subr.bf16.mxu0 %v918
        %1136 = vmatpush1.bf16.msra.mxu0 %v917
        %1137 = vmatprep.subr.bf16.mxu0 %v922
        %1138 = vmatpush1.bf16.msra.mxu0 %v921
        %1139 = vmatprep.subr.bf16.mxu0 %v926
        %1140 = vmatpush1.bf16.msra.mxu0 %v925
        %1141 = vmatprep.subr.bf16.mxu0 0
        %1142 = vmatpush1.bf16.msra.mxu0 0
        %1143 = vmatprep.subr.bf16.mxu0 0
        %1144 = vmatpush1.bf16.msra.mxu0 0
        %1145 = vmatprep.subr.bf16.mxu0 0
        %1146 = vmatpush1.bf16.msra.mxu0 0
        %1147 = vmatprep.subr.bf16.mxu0 0
        %1148 = vmatpush1.bf16.msra.mxu0 0
        %1149 = vmatprep.subr.bf16.mxu0 0
        %1150 = vmatpush1.bf16.msra.mxu0 0
        %1151 = vmatprep.subr.bf16.mxu0 0
        %1152 = vmatpush1.bf16.msra.mxu0 0
        %1153 = vmatprep.subr.bf16.mxu0 0
        %1154 = vmatpush1.bf16.msra.mxu0 0
        %1155 = vmatprep.subr.bf16.mxu0 0
        %1156 = vmatpush1.bf16.msra.mxu0 0
        %1157 = vmatprep.subr.bf16.mxu0 0
        %1158 = vmatpush1.bf16.msra.mxu0 0
        %1159 = vmatprep.subr.bf16.mxu0 0
        %1160 = vmatpush1.bf16.msra.mxu0 0
        %1161 = vmatprep.subr.bf16.mxu0 0
        %1162 = vmatpush1.bf16.msra.mxu0 0
        %1163 = vmatprep.subr.bf16.mxu0 0
        %1164 = vmatpush1.bf16.msra.mxu0 0
        %1165 = vmatprep.subr.bf16.mxu0 0
        %1166 = vmatpush1.bf16.msra.mxu0 0
        %1167 = vmatprep.mubr.bf16.mxu0 0
        %1168 = vmatmul.mubr.bf16.gmra.mrb[0].mxu0 %v940
        %v1169 = vpop.f32.mrb[0].mxu0
        %v1170 = vadd.f32 %v716, %v1169
        %v1171 = vpop.f32.mrb[0].mxu0
        %v1172 = vadd.f32 %v718, %v1171
        %v1173 = vpop.f32.mrb[0].mxu0
        %v1174 = vadd.f32 %v720, %v1173
        %v1175 = vpop.f32.mrb[0].mxu0
        %v1176 = vadd.f32 %v722, %v1175
        %1177 = vmatprep.mubr.bf16.mxu0 0
        %1178 = vmatmul.mubr.bf16.gmra.mrb[0].mxu0 %v441
        %v1179 = vpop.f32.mrb[0].mxu0
        %v1180 = vadd.f32 %v726, %v1179
        %v1181 = vpop.f32.mrb[0].mxu0
        %v1182 = vadd.f32 %v728, %v1181
        %v1183 = vpop.f32.mrb[0].mxu0
        %v1184 = vadd.f32 %v730, %v1183
        %v1185 = vpop.f32.mrb[0].mxu0
        %v1186 = vadd.f32 %v732, %v1185
        %1187 = vmatprep.mubr.bf16.mxu0 0
        %1188 = vmatmul.mubr.bf16.gmra.mrb[0].mxu0 %v444
        %v1189 = vpop.f32.mrb[0].mxu0
        %v1190 = vadd.f32 %v736, %v1189
        %v1191 = vpop.f32.mrb[0].mxu0
        %v1192 = vadd.f32 %v738, %v1191
        %v1193 = vpop.f32.mrb[0].mxu0
        %v1194 = vadd.f32 %v740, %v1193
        %v1195 = vpop.f32.mrb[0].mxu0
        %v1196 = vadd.f32 %v742, %v1195
        %1197 = vmatprep.mubr.bf16.mxu0 0
        %1198 = vmatmul.mubr.bf16.gmra.mrb[0].mxu0 %v447
        %v1199 = vpop.f32.mrb[0].mxu0
        %v1200 = vadd.f32 %v746, %v1199
        %v1201 = vpop.f32.mrb[0].mxu0
        %v1202 = vadd.f32 %v748, %v1201
        %v1203 = vpop.f32.mrb[0].mxu0
        %v1204 = vadd.f32 %v750, %v1203
        %v1205 = vpop.f32.mrb[0].mxu0
        %v1206 = vadd.f32 %v752, %v1205
        %1207 = vmatprep.mubr.bf16.mxu0 0
        %1208 = vmatmul.mubr.bf16.gmra.mrb[0].mxu0 %v450
        %v1209 = vpop.f32.mrb[0].mxu0
        %v1210 = vadd.f32 %v756, %v1209
        %v1211 = vpop.f32.mrb[0].mxu0
        %v1212 = vadd.f32 %v758, %v1211
        %v1213 = vpop.f32.mrb[0].mxu0
        %v1214 = vadd.f32 %v760, %v1213
        %v1215 = vpop.f32.mrb[0].mxu0
        %v1216 = vadd.f32 %v762, %v1215
        %1217 = vmatprep.mubr.bf16.mxu0 0
        %1218 = vmatmul.mubr.bf16.gmra.mrb[0].mxu0 %v453
        %v1219 = vpop.f32.mrb[0].mxu0
        %v1220 = vadd.f32 %v766, %v1219
        %v1221 = vpop.f32.mrb[0].mxu0
        %v1222 = vadd.f32 %v768, %v1221
        %v1223 = vpop.f32.mrb[0].mxu0
        %v1224 = vadd.f32 %v770, %v1223
        %v1225 = vpop.f32.mrb[0].mxu0
        %v1226 = vadd.f32 %v772, %v1225
        %1227 = vmatprep.mubr.bf16.mxu0 0
        %1228 = vmatmul.mubr.bf16.gmra.mrb[0].mxu0 %v456
        %v1229 = vpop.f32.mrb[0].mxu0
        %v1230 = vadd.f32 %v776, %v1229
        %v1231 = vpop.f32.mrb[0].mxu0
        %v1232 = vadd.f32 %v778, %v1231
        %v1233 = vpop.f32.mrb[0].mxu0
        %v1234 = vadd.f32 %v780, %v1233
        %v1235 = vpop.f32.mrb[0].mxu0
        %v1236 = vadd.f32 %v782, %v1235
        %1237 = vmatprep.mubr.bf16.mxu0 0
        %1238 = vmatmul.mubr.bf16.gmra.mrb[0].mxu0 %v459
        %v1239 = vpop.f32.mrb[0].mxu0
        %v1240 = vadd.f32 %v786, %v1239
        %v1241 = vpop.f32.mrb[0].mxu0
        %v1242 = vadd.f32 %v788, %v1241
        %v1243 = vpop.f32.mrb[0].mxu0
        %v1244 = vadd.f32 %v790, %v1243
        %v1245 = vpop.f32.mrb[0].mxu0
        %v1246 = vadd.f32 %v792, %v1245
        %1247 = vmatprep.mubr.bf16.mxu0 0
        %1248 = vmatmul.mubr.bf16.gmra.mrb[0].mxu0 %v462
        %v1249 = vpop.f32.mrb[0].mxu0
        %v1250 = vadd.f32 %v796, %v1249
        %v1251 = vpop.f32.mrb[0].mxu0
        %v1252 = vadd.f32 %v798, %v1251
        %v1253 = vpop.f32.mrb[0].mxu0
        %v1254 = vadd.f32 %v800, %v1253
        %v1255 = vpop.f32.mrb[0].mxu0
        %v1256 = vadd.f32 %v802, %v1255
        %1257 = vmatprep.mubr.bf16.mxu0 0
        %1258 = vmatmul.mubr.bf16.gmra.mrb[0].mxu0 %v465
        %v1259 = vpop.f32.mrb[0].mxu0
        %v1260 = vadd.f32 %v806, %v1259
        %v1261 = vpop.f32.mrb[0].mxu0
        %v1262 = vadd.f32 %v808, %v1261
        %v1263 = vpop.f32.mrb[0].mxu0
        %v1264 = vadd.f32 %v810, %v1263
        %v1265 = vpop.f32.mrb[0].mxu0
        %v1266 = vadd.f32 %v812, %v1265
        %1267 = vmatprep.mubr.bf16.mxu0 0
        %1268 = vmatmul.mubr.bf16.gmra.mrb[0].mxu0 %v468
        %v1269 = vpop.f32.mrb[0].mxu0
        %v1270 = vadd.f32 %v816, %v1269
        %v1271 = vpop.f32.mrb[0].mxu0
        %v1272 = vadd.f32 %v818, %v1271
        %v1273 = vpop.f32.mrb[0].mxu0
        %v1274 = vadd.f32 %v820, %v1273
        %v1275 = vpop.f32.mrb[0].mxu0
        %v1276 = vadd.f32 %v822, %v1275
        %1277 = vmatprep.mubr.bf16.mxu0 0
        %1278 = vmatmul.mubr.bf16.gmra.mrb[0].mxu0 %v471
        %v1279 = vpop.f32.mrb[0].mxu0
        %v1280 = vadd.f32 %v826, %v1279
        %v1281 = vpop.f32.mrb[0].mxu0
        %v1282 = vadd.f32 %v828, %v1281
        %v1283 = vpop.f32.mrb[0].mxu0
        %v1284 = vadd.f32 %v830, %v1283
        %v1285 = vpop.f32.mrb[0].mxu0
        %v1286 = vadd.f32 %v832, %v1285
        %1287 = vmatprep.mubr.bf16.mxu0 0
        %1288 = vmatmul.mubr.bf16.gmra.mrb[0].mxu0 %v474
        %v1289 = vpop.f32.mrb[0].mxu0
        %v1290 = vadd.f32 %v836, %v1289
        %v1291 = vpop.f32.mrb[0].mxu0
        %v1292 = vadd.f32 %v838, %v1291
        %v1293 = vpop.f32.mrb[0].mxu0
        %v1294 = vadd.f32 %v840, %v1293
        %v1295 = vpop.f32.mrb[0].mxu0
        %v1296 = vadd.f32 %v842, %v1295
        %1297 = vmatprep.mubr.bf16.mxu0 0
        %1298 = vmatmul.mubr.bf16.gmra.mrb[0].mxu0 %v477
        %v1299 = vpop.f32.mrb[0].mxu0
        %v1300 = vadd.f32 %v846, %v1299
        %v1301 = vpop.f32.mrb[0].mxu0
        %v1302 = vadd.f32 %v848, %v1301
        %v1303 = vpop.f32.mrb[0].mxu0
        %v1304 = vadd.f32 %v850, %v1303
        %v1305 = vpop.f32.mrb[0].mxu0
        %v1306 = vadd.f32 %v852, %v1305
        %1307 = vmatprep.mubr.bf16.mxu0 0
        %1308 = vmatmul.mubr.bf16.gmra.mrb[0].mxu0 %v480
        %v1309 = vpop.f32.mrb[0].mxu0
        %v1310 = vadd.f32 %v856, %v1309
        %v1311 = vpop.f32.mrb[0].mxu0
        %v1312 = vadd.f32 %v858, %v1311
        %v1313 = vpop.f32.mrb[0].mxu0
        %v1314 = vadd.f32 %v860, %v1313
        %v1315 = vpop.f32.mrb[0].mxu0
        %v1316 = vadd.f32 %v862, %v1315
        %1317 = vmatprep.mubr.bf16.mxu0 0
        %1318 = vmatmul.mubr.bf16.gmra.mrb[0].mxu0 %v483
        %v1319 = vpop.f32.mrb[0].mxu0
        %v1320 = vadd.f32 %v866, %v1319
        %v1321 = vpop.f32.mrb[0].mxu0
        %v1322 = vadd.f32 %v868, %v1321
        %v1323 = vpop.f32.mrb[0].mxu0
        %v1324 = vadd.f32 %v870, %v1323
        %v1325 = vpop.f32.mrb[0].mxu0
        %v1326 = vadd.f32 %v872, %v1325
        %1327 = vdwg.mxu0
        %v1328 = vld [vmem:[%s237 + $0x10] sm:$0xf]
        %v1329 = vld [vmem:[%s237 + $0x14] sm:$0xf]
        %v1330 = vld [vmem:[%s237 + $0x18] sm:$0xf]
        %v1331 = vld [vmem:[%s237 + $0x1c] sm:$0xf]
        %v1332 = vld [vmem:[%s237 + $0x20] sm:$0xf]
        %v1333 = vld [vmem:[%s237 + $0x24] sm:$0xf]
        %v1334 = vld [vmem:[%s237 + $0x28] sm:$0xf]
        %v1335 = vld [vmem:[%s237 + $0x2c] sm:$0xf]
        %v1336 = vld [vmem:[%s237 + $0x30] sm:$0xf]
        %v1337 = vld [vmem:[%s237 + $0x34] sm:$0xf]
        %v1338 = vld [vmem:[%s237 + $0x38] sm:$0xf]
        %v1339 = vld [vmem:[%s237 + $0x3c] sm:$0xf]
        %v1340 = vld [vmem:[%s237 + $0x40] sm:$0xf]
        %v1341 = vld [vmem:[%s237 + $0x44] sm:$0xf]
        %v1342 = vld [vmem:[%s237 + $0x48] sm:$0xf]
        %v1343 = vld [vmem:[%s237 + $0x4c] sm:$0xf]
        %v1344 = vld [vmem:[%s237 + $0x50] sm:$0xf]
        %v1345 = vld [vmem:[%s237 + $0x54] sm:$0xf]
        %v1346 = vld [vmem:[%s237 + $0x58] sm:$0xf]
        %v1347 = vld [vmem:[%s237 + $0x5c] sm:$0xf]
        %v1348 = vld [vmem:[%s237 + $0x60] sm:$0xf]
        %v1349 = vld [vmem:[%s237 + $0x64] sm:$0xf]
        %v1350 = vld [vmem:[%s237 + $0x68] sm:$0xf]
        %v1351 = vld [vmem:[%s237 + $0x6c] sm:$0xf]
        %v1352 = vld [vmem:[%s237 + $0x70] sm:$0xf]
        %v1353 = vld [vmem:[%s237 + $0x74] sm:$0xf]
        %v1354 = vld [vmem:[%s237 + $0x78] sm:$0xf]
        %v1355 = vld [vmem:[%s237 + $0x7c] sm:$0xf]
        %v1356 = vld [vmem:[%s237 + $0x80] sm:$0xf]
        %v1357 = vld [vmem:[%s237 + $0x84] sm:$0xf]
        %v1358 = vld [vmem:[%s237 + $0x88] sm:$0xf]
        %v1359 = vld [vmem:[%s237 + $0x8c] sm:$0xf]
        %s1360 = scalar_lea.vmem %s1, 192
        %v1361 = vld [vmem:[%s1360] sm:$0xff]
        %v1362 = vld [vmem:[%s1360 + $0x8] sm:$0xff]
        %v1363 = vld [vmem:[%s1360 + $0x10] sm:$0xff]
        %v1364 = vld [vmem:[%s1360 + $0x18] sm:$0xff]
        %v1365 = vld [vmem:[%s1360 + $0x20] sm:$0xff]
        %v1366 = vld [vmem:[%s1360 + $0x28] sm:$0xff]
        %v1367 = vld [vmem:[%s1360 + $0x30] sm:$0xff]
        %v1368 = vld [vmem:[%s1360 + $0x38] sm:$0xff]
        %v1369 = vld [vmem:[%s1360 + $0x40] sm:$0xff]
        %v1370 = vld [vmem:[%s1360 + $0x48] sm:$0xff]
        %v1371 = vld [vmem:[%s1360 + $0x50] sm:$0xff]
        %v1372 = vld [vmem:[%s1360 + $0x58] sm:$0xff]
        %v1405 = vunpack.c.l.b16 %v1328
        %v1406 = vunpack.c.l.b16 %v1329
        %v1407 = vunpack.c.l.b16 %v1330
        %v1408 = vunpack.c.l.b16 %v1331
        %v1409 = vunpack.c.l.b16 %v1332
        %v1410 = vunpack.c.l.b16 %v1333
        %v1411 = vunpack.c.l.b16 %v1334
        %v1412 = vunpack.c.l.b16 %v1335
        %v1413 = vunpack.c.l.b16 %v1336
        %v1414 = vunpack.c.l.b16 %v1337
        %v1415 = vunpack.c.l.b16 %v1338
        %v1416 = vunpack.c.l.b16 %v1339
        %v1417 = vunpack.c.l.b16 %v1340
        %v1418 = vunpack.c.l.b16 %v1341
        %v1419 = vunpack.c.l.b16 %v1342
        %v1420 = vunpack.c.l.b16 %v1343
        %v1421 = vunpack.c.l.b16 %v1344
        %v1422 = vunpack.c.l.b16 %v1345
        %v1423 = vunpack.c.l.b16 %v1346
        %v1424 = vunpack.c.l.b16 %v1347
        %v1425 = vunpack.c.l.b16 %v1348
        %v1426 = vunpack.c.l.b16 %v1349
        %v1427 = vunpack.c.l.b16 %v1350
        %v1428 = vunpack.c.l.b16 %v1351
        %v1429 = vunpack.c.l.b16 %v1352
        %v1430 = vunpack.c.l.b16 %v1353
        %v1431 = vunpack.c.l.b16 %v1354
        %v1432 = vunpack.c.l.b16 %v1355
        %v1433 = vunpack.c.l.b16 %v1356
        %v1434 = vunpack.c.l.b16 %v1357
        %v1435 = vunpack.c.l.b16 %v1358
        %v1436 = vunpack.c.l.b16 %v1359
        %v1437 = vpack.c.b16 %v1406, %v1405
        %v1438 = vpack.c.b16 %v1408, %v1407
        %v1439 = vpack.c.b16 %v1410, %v1409
        %v1440 = vpack.c.b16 %v1412, %v1411
        %v1441 = vpack.c.b16 %v1414, %v1413
        %v1442 = vpack.c.b16 %v1416, %v1415
        %v1443 = vpack.c.b16 %v1418, %v1417
        %v1444 = vpack.c.b16 %v1420, %v1419
        %v1445 = vpack.c.b16 %v1422, %v1421
        %v1446 = vpack.c.b16 %v1424, %v1423
        %v1447 = vpack.c.b16 %v1426, %v1425
        %v1448 = vpack.c.b16 %v1428, %v1427
        %v1449 = vpack.c.b16 %v1430, %v1429
        %v1450 = vpack.c.b16 %v1432, %v1431
        %v1451 = vpack.c.b16 %v1434, %v1433
        %v1452 = vpack.c.b16 %v1436, %v1435
        %v1465 = vunpack.c.l.b16 %v1361
        %v1466 = vunpack.c.h.b16 %v1361
        %v1467 = vunpack.c.l.b16 %v1362
        %v1468 = vunpack.c.h.b16 %v1362
        %v1469 = vunpack.c.l.b16 %v1363
        %v1470 = vunpack.c.h.b16 %v1363
        %v1471 = vunpack.c.l.b16 %v1364
        %v1472 = vunpack.c.h.b16 %v1364
        %v1473 = vunpack.c.l.b16 %v1365
        %v1474 = vunpack.c.h.b16 %v1365
        %v1475 = vunpack.c.l.b16 %v1366
        %v1476 = vunpack.c.h.b16 %v1366
        %v1477 = vunpack.c.l.b16 %v1367
        %v1478 = vunpack.c.h.b16 %v1367
        %v1479 = vunpack.c.l.b16 %v1368
        %v1480 = vunpack.c.h.b16 %v1368
        %v1481 = vunpack.c.l.b16 %v1369
        %v1482 = vunpack.c.h.b16 %v1369
        %v1483 = vunpack.c.l.b16 %v1370
        %v1484 = vunpack.c.h.b16 %v1370
        %v1485 = vunpack.c.l.b16 %v1371
        %v1486 = vunpack.c.h.b16 %v1371
        %v1487 = vunpack.c.l.b16 %v1372
        %v1488 = vunpack.c.h.b16 %v1372
        %v1489 = vpack.c.b16 %v1469, %v1465
        %v1490 = vpack.c.b16 %v1470, %v1466
        %v1491 = vpack.c.b16 %v1471, %v1467
        %v1492 = vpack.c.b16 %v1472, %v1468
        %v1493 = vpack.c.b16 %v1477, %v1473
        %v1494 = vpack.c.b16 %v1478, %v1474
        %v1495 = vpack.c.b16 %v1479, %v1475
        %v1496 = vpack.c.b16 %v1480, %v1476
        %v1497 = vpack.c.b16 %v1485, %v1481
        %v1498 = vpack.c.b16 %v1486, %v1482
        %v1499 = vpack.c.b16 %v1487, %v1483
        %v1500 = vpack.c.b16 %v1488, %v1484
        %v1514 = vsel %vm439, %v1437, 0
        %v1517 = vsel %vm439, %v1438, 0
        %v1520 = vsel %vm439, %v1439, 0
        %v1523 = vsel %vm439, %v1440, 0
        %v1526 = vsel %vm439, %v1441, 0
        %v1529 = vsel %vm439, %v1442, 0
        %v1532 = vsel %vm439, %v1443, 0
        %v1535 = vsel %vm439, %v1444, 0
        %v1538 = vsel %vm439, %v1445, 0
        %v1541 = vsel %vm439, %v1446, 0
        %v1544 = vsel %vm439, %v1447, 0
        %v1547 = vsel %vm439, %v1448, 0
        %v1550 = vsel %vm439, %v1449, 0
        %v1553 = vsel %vm439, %v1450, 0
        %v1556 = vsel %vm439, %v1451, 0
        %v1559 = vsel %vm439, %v1452, 0
        %1561 = vmatprep.subr.bf16.mxu0 %v1490
        %1562 = vmatpush1.bf16.msra.mxu0 %v1489
        %1563 = vmatprep.subr.bf16.mxu0 %v1494
        %1564 = vmatpush1.bf16.msra.mxu0 %v1493
        %1565 = vmatprep.subr.bf16.mxu0 %v1498
        %1566 = vmatpush1.bf16.msra.mxu0 %v1497
        %1567 = vmatprep.subr.bf16.mxu0 0
        %1568 = vmatpush1.bf16.msra.mxu0 0
        %1569 = vmatprep.subr.bf16.mxu0 0
        %1570 = vmatpush1.bf16.msra.mxu0 0
        %1571 = vmatprep.subr.bf16.mxu0 0
        %1572 = vmatpush1.bf16.msra.mxu0 0
        %1573 = vmatprep.subr.bf16.mxu0 0
        %1574 = vmatpush1.bf16.msra.mxu0 0
        %1575 = vmatprep.subr.bf16.mxu0 0
        %1576 = vmatpush1.bf16.msra.mxu0 0
        %1577 = vmatprep.subr.bf16.mxu0 0
        %1578 = vmatpush1.bf16.msra.mxu0 0
        %1579 = vmatprep.subr.bf16.mxu0 0
        %1580 = vmatpush1.bf16.msra.mxu0 0
        %1581 = vmatprep.subr.bf16.mxu0 0
        %1582 = vmatpush1.bf16.msra.mxu0 0
        %1583 = vmatprep.subr.bf16.mxu0 0
        %1584 = vmatpush1.bf16.msra.mxu0 0
        %1585 = vmatprep.subr.bf16.mxu0 0
        %1586 = vmatpush1.bf16.msra.mxu0 0
        %1587 = vmatprep.subr.bf16.mxu0 0
        %1588 = vmatpush1.bf16.msra.mxu0 0
        %1589 = vmatprep.subr.bf16.mxu0 0
        %1590 = vmatpush1.bf16.msra.mxu0 0
        %1591 = vmatprep.subr.bf16.mxu0 0
        %1592 = vmatpush1.bf16.msra.mxu0 0
        %1593 = vmatprep.mubr.bf16.mxu0 0
        %1594 = vmatmul.mubr.bf16.gmra.mrb[0].mxu0 %v1514
        %v1595 = vpop.f32.mrb[0].mxu0
        %v1596 = vadd.f32 0.0, %v1595
        %v1597 = vpop.f32.mrb[0].mxu0
        %v1598 = vadd.f32 0.0, %v1597
        %v1599 = vpop.f32.mrb[0].mxu0
        %v1600 = vadd.f32 0.0, %v1599
        %v1601 = vpop.f32.mrb[0].mxu0
        %v1602 = vadd.f32 0.0, %v1601
        %1603 = vmatprep.mubr.bf16.mxu0 0
        %1604 = vmatmul.mubr.bf16.gmra.mrb[0].mxu0 %v1517
        %v1605 = vpop.f32.mrb[0].mxu0
        %v1606 = vadd.f32 0.0, %v1605
        %v1607 = vpop.f32.mrb[0].mxu0
        %v1608 = vadd.f32 0.0, %v1607
        %v1609 = vpop.f32.mrb[0].mxu0
        %v1610 = vadd.f32 0.0, %v1609
        %v1611 = vpop.f32.mrb[0].mxu0
        %v1612 = vadd.f32 0.0, %v1611
        %1613 = vmatprep.mubr.bf16.mxu0 0
        %1614 = vmatmul.mubr.bf16.gmra.mrb[0].mxu0 %v1520
        %v1615 = vpop.f32.mrb[0].mxu0
        %v1616 = vadd.f32 0.0, %v1615
        %v1617 = vpop.f32.mrb[0].mxu0
        %v1618 = vadd.f32 0.0, %v1617
        %v1619 = vpop.f32.mrb[0].mxu0
        %v1620 = vadd.f32 0.0, %v1619
        %v1621 = vpop.f32.mrb[0].mxu0
        %v1622 = vadd.f32 0.0, %v1621
        %1623 = vmatprep.mubr.bf16.mxu0 0
        %1624 = vmatmul.mubr.bf16.gmra.mrb[0].mxu0 %v1523
        %v1625 = vpop.f32.mrb[0].mxu0
        %v1626 = vadd.f32 0.0, %v1625
        %v1627 = vpop.f32.mrb[0].mxu0
        %v1628 = vadd.f32 0.0, %v1627
        %v1629 = vpop.f32.mrb[0].mxu0
        %v1630 = vadd.f32 0.0, %v1629
        %v1631 = vpop.f32.mrb[0].mxu0
        %v1632 = vadd.f32 0.0, %v1631
        %1633 = vmatprep.mubr.bf16.mxu0 0
        %1634 = vmatmul.mubr.bf16.gmra.mrb[0].mxu0 %v1526
        %v1635 = vpop.f32.mrb[0].mxu0
        %v1636 = vadd.f32 0.0, %v1635
        %v1637 = vpop.f32.mrb[0].mxu0
        %v1638 = vadd.f32 0.0, %v1637
        %v1639 = vpop.f32.mrb[0].mxu0
        %v1640 = vadd.f32 0.0, %v1639
        %v1641 = vpop.f32.mrb[0].mxu0
        %v1642 = vadd.f32 0.0, %v1641
        %1643 = vmatprep.mubr.bf16.mxu0 0
        %1644 = vmatmul.mubr.bf16.gmra.mrb[0].mxu0 %v1529
        %v1645 = vpop.f32.mrb[0].mxu0
        %v1646 = vadd.f32 0.0, %v1645
        %v1647 = vpop.f32.mrb[0].mxu0
        %v1648 = vadd.f32 0.0, %v1647
        %v1649 = vpop.f32.mrb[0].mxu0
        %v1650 = vadd.f32 0.0, %v1649
        %v1651 = vpop.f32.mrb[0].mxu0
        %v1652 = vadd.f32 0.0, %v1651
        %1653 = vmatprep.mubr.bf16.mxu0 0
        %1654 = vmatmul.mubr.bf16.gmra.mrb[0].mxu0 %v1532
        %v1655 = vpop.f32.mrb[0].mxu0
        %v1656 = vadd.f32 0.0, %v1655
        %v1657 = vpop.f32.mrb[0].mxu0
        %v1658 = vadd.f32 0.0, %v1657
        %v1659 = vpop.f32.mrb[0].mxu0
        %v1660 = vadd.f32 0.0, %v1659
        %v1661 = vpop.f32.mrb[0].mxu0
        %v1662 = vadd.f32 0.0, %v1661
        %1663 = vmatprep.mubr.bf16.mxu0 0
        %1664 = vmatmul.mubr.bf16.gmra.mrb[0].mxu0 %v1535
        %v1665 = vpop.f32.mrb[0].mxu0
        %v1666 = vadd.f32 0.0, %v1665
        %v1667 = vpop.f32.mrb[0].mxu0
        %v1668 = vadd.f32 0.0, %v1667
        %v1669 = vpop.f32.mrb[0].mxu0
        %v1670 = vadd.f32 0.0, %v1669
        %v1671 = vpop.f32.mrb[0].mxu0
        %v1672 = vadd.f32 0.0, %v1671
        %1673 = vmatprep.mubr.bf16.mxu0 0
        %1674 = vmatmul.mubr.bf16.gmra.mrb[0].mxu0 %v1538
        %v1675 = vpop.f32.mrb[0].mxu0
        %v1676 = vadd.f32 0.0, %v1675
        %v1677 = vpop.f32.mrb[0].mxu0
        %v1678 = vadd.f32 0.0, %v1677
        %v1679 = vpop.f32.mrb[0].mxu0
        %v1680 = vadd.f32 0.0, %v1679
        %v1681 = vpop.f32.mrb[0].mxu0
        %v1682 = vadd.f32 0.0, %v1681
        %1683 = vmatprep.mubr.bf16.mxu0 0
        %1684 = vmatmul.mubr.bf16.gmra.mrb[0].mxu0 %v1541
        %v1685 = vpop.f32.mrb[0].mxu0
        %v1686 = vadd.f32 0.0, %v1685
        %v1687 = vpop.f32.mrb[0].mxu0
        %v1688 = vadd.f32 0.0, %v1687
        %v1689 = vpop.f32.mrb[0].mxu0
        %v1690 = vadd.f32 0.0, %v1689
        %v1691 = vpop.f32.mrb[0].mxu0
        %v1692 = vadd.f32 0.0, %v1691
        %1693 = vmatprep.mubr.bf16.mxu0 0
        %1694 = vmatmul.mubr.bf16.gmra.mrb[0].mxu0 %v1544
        %v1695 = vpop.f32.mrb[0].mxu0
        %v1696 = vadd.f32 0.0, %v1695
        %v1697 = vpop.f32.mrb[0].mxu0
        %v1698 = vadd.f32 0.0, %v1697
        %v1699 = vpop.f32.mrb[0].mxu0
        %v1700 = vadd.f32 0.0, %v1699
        %v1701 = vpop.f32.mrb[0].mxu0
        %v1702 = vadd.f32 0.0, %v1701
        %1703 = vmatprep.mubr.bf16.mxu0 0
        %1704 = vmatmul.mubr.bf16.gmra.mrb[0].mxu0 %v1547
        %v1705 = vpop.f32.mrb[0].mxu0
        %v1706 = vadd.f32 0.0, %v1705
        %v1707 = vpop.f32.mrb[0].mxu0
        %v1708 = vadd.f32 0.0, %v1707
        %v1709 = vpop.f32.mrb[0].mxu0
        %v1710 = vadd.f32 0.0, %v1709
        %v1711 = vpop.f32.mrb[0].mxu0
        %v1712 = vadd.f32 0.0, %v1711
        %1713 = vmatprep.mubr.bf16.mxu0 0
        %1714 = vmatmul.mubr.bf16.gmra.mrb[0].mxu0 %v1550
        %v1715 = vpop.f32.mrb[0].mxu0
        %v1716 = vadd.f32 0.0, %v1715
        %v1717 = vpop.f32.mrb[0].mxu0
        %v1718 = vadd.f32 0.0, %v1717
        %v1719 = vpop.f32.mrb[0].mxu0
        %v1720 = vadd.f32 0.0, %v1719
        %v1721 = vpop.f32.mrb[0].mxu0
        %v1722 = vadd.f32 0.0, %v1721
        %1723 = vmatprep.mubr.bf16.mxu0 0
        %1724 = vmatmul.mubr.bf16.gmra.mrb[0].mxu0 %v1553
        %v1725 = vpop.f32.mrb[0].mxu0
        %v1726 = vadd.f32 0.0, %v1725
        %v1727 = vpop.f32.mrb[0].mxu0
        %v1728 = vadd.f32 0.0, %v1727
        %v1729 = vpop.f32.mrb[0].mxu0
        %v1730 = vadd.f32 0.0, %v1729
        %v1731 = vpop.f32.mrb[0].mxu0
        %v1732 = vadd.f32 0.0, %v1731
        %1733 = vmatprep.mubr.bf16.mxu0 0
        %1734 = vmatmul.mubr.bf16.gmra.mrb[0].mxu0 %v1556
        %v1735 = vpop.f32.mrb[0].mxu0
        %v1736 = vadd.f32 0.0, %v1735
        %v1737 = vpop.f32.mrb[0].mxu0
        %v1738 = vadd.f32 0.0, %v1737
        %v1739 = vpop.f32.mrb[0].mxu0
        %v1740 = vadd.f32 0.0, %v1739
        %v1741 = vpop.f32.mrb[0].mxu0
        %v1742 = vadd.f32 0.0, %v1741
        %1743 = vmatprep.mubr.bf16.mxu0 0
        %1744 = vmatmul.mubr.bf16.gmra.mrb[0].mxu0 %v1559
        %v1745 = vpop.f32.mrb[0].mxu0
        %v1746 = vadd.f32 0.0, %v1745
        %v1747 = vpop.f32.mrb[0].mxu0
        %v1748 = vadd.f32 0.0, %v1747
        %v1749 = vpop.f32.mrb[0].mxu0
        %v1750 = vadd.f32 0.0, %v1749
        %v1751 = vpop.f32.mrb[0].mxu0
        %v1752 = vadd.f32 0.0, %v1751
        %1753 = vdwg.mxu0
        %1754 = vmatprep.subr.bf16.mxu0 %v1492
        %1755 = vmatpush1.bf16.msra.mxu0 %v1491
        %1756 = vmatprep.subr.bf16.mxu0 %v1496
        %1757 = vmatpush1.bf16.msra.mxu0 %v1495
        %1758 = vmatprep.subr.bf16.mxu0 %v1500
        %1759 = vmatpush1.bf16.msra.mxu0 %v1499
        %1760 = vmatprep.subr.bf16.mxu0 0
        %1761 = vmatpush1.bf16.msra.mxu0 0
        %1762 = vmatprep.subr.bf16.mxu0 0
        %1763 = vmatpush1.bf16.msra.mxu0 0
        %1764 = vmatprep.subr.bf16.mxu0 0
        %1765 = vmatpush1.bf16.msra.mxu0 0
        %1766 = vmatprep.subr.bf16.mxu0 0
        %1767 = vmatpush1.bf16.msra.mxu0 0
        %1768 = vmatprep.subr.bf16.mxu0 0
        %1769 = vmatpush1.bf16.msra.mxu0 0
        %1770 = vmatprep.subr.bf16.mxu0 0
        %1771 = vmatpush1.bf16.msra.mxu0 0
        %1772 = vmatprep.subr.bf16.mxu0 0
        %1773 = vmatpush1.bf16.msra.mxu0 0
        %1774 = vmatprep.subr.bf16.mxu0 0
        %1775 = vmatpush1.bf16.msra.mxu0 0
        %1776 = vmatprep.subr.bf16.mxu0 0
        %1777 = vmatpush1.bf16.msra.mxu0 0
        %1778 = vmatprep.subr.bf16.mxu0 0
        %1779 = vmatpush1.bf16.msra.mxu0 0
        %1780 = vmatprep.subr.bf16.mxu0 0
        %1781 = vmatpush1.bf16.msra.mxu0 0
        %1782 = vmatprep.subr.bf16.mxu0 0
        %1783 = vmatpush1.bf16.msra.mxu0 0
        %1784 = vmatprep.subr.bf16.mxu0 0
        %1785 = vmatpush1.bf16.msra.mxu0 0
        %1786 = vmatprep.mubr.bf16.mxu0 0
        %1787 = vmatmul.mubr.bf16.gmra.mrb[0].mxu0 %v1514
        %v1788 = vpop.f32.mrb[0].mxu0
        %v1789 = vadd.f32 0.0, %v1788
        %v1790 = vpop.f32.mrb[0].mxu0
        %v1791 = vadd.f32 0.0, %v1790
        %v1792 = vpop.f32.mrb[0].mxu0
        %v1793 = vadd.f32 0.0, %v1792
        %v1794 = vpop.f32.mrb[0].mxu0
        %v1795 = vadd.f32 0.0, %v1794
        %1796 = vmatprep.mubr.bf16.mxu0 0
        %1797 = vmatmul.mubr.bf16.gmra.mrb[0].mxu0 %v1517
        %v1798 = vpop.f32.mrb[0].mxu0
        %v1799 = vadd.f32 0.0, %v1798
        %v1800 = vpop.f32.mrb[0].mxu0
        %v1801 = vadd.f32 0.0, %v1800
        %v1802 = vpop.f32.mrb[0].mxu0
        %v1803 = vadd.f32 0.0, %v1802
        %v1804 = vpop.f32.mrb[0].mxu0
        %v1805 = vadd.f32 0.0, %v1804
        %1806 = vmatprep.mubr.bf16.mxu0 0
        %1807 = vmatmul.mubr.bf16.gmra.mrb[0].mxu0 %v1520
        %v1808 = vpop.f32.mrb[0].mxu0
        %v1809 = vadd.f32 0.0, %v1808
        %v1810 = vpop.f32.mrb[0].mxu0
        %v1811 = vadd.f32 0.0, %v1810
        %v1812 = vpop.f32.mrb[0].mxu0
        %v1813 = vadd.f32 0.0, %v1812
        %v1814 = vpop.f32.mrb[0].mxu0
        %v1815 = vadd.f32 0.0, %v1814
        %1816 = vmatprep.mubr.bf16.mxu0 0
        %1817 = vmatmul.mubr.bf16.gmra.mrb[0].mxu0 %v1523
        %v1818 = vpop.f32.mrb[0].mxu0
        %v1819 = vadd.f32 0.0, %v1818
        %v1820 = vpop.f32.mrb[0].mxu0
        %v1821 = vadd.f32 0.0, %v1820
        %v1822 = vpop.f32.mrb[0].mxu0
        %v1823 = vadd.f32 0.0, %v1822
        %v1824 = vpop.f32.mrb[0].mxu0
        %v1825 = vadd.f32 0.0, %v1824
        %1826 = vmatprep.mubr.bf16.mxu0 0
        %1827 = vmatmul.mubr.bf16.gmra.mrb[0].mxu0 %v1526
        %v1828 = vpop.f32.mrb[0].mxu0
        %v1829 = vadd.f32 0.0, %v1828
        %v1830 = vpop.f32.mrb[0].mxu0
        %v1831 = vadd.f32 0.0, %v1830
        %v1832 = vpop.f32.mrb[0].mxu0
        %v1833 = vadd.f32 0.0, %v1832
        %v1834 = vpop.f32.mrb[0].mxu0
        %v1835 = vadd.f32 0.0, %v1834
        %1836 = vmatprep.mubr.bf16.mxu0 0
        %1837 = vmatmul.mubr.bf16.gmra.mrb[0].mxu0 %v1529
        %v1838 = vpop.f32.mrb[0].mxu0
        %v1839 = vadd.f32 0.0, %v1838
        %v1840 = vpop.f32.mrb[0].mxu0
        %v1841 = vadd.f32 0.0, %v1840
        %v1842 = vpop.f32.mrb[0].mxu0
        %v1843 = vadd.f32 0.0, %v1842
        %v1844 = vpop.f32.mrb[0].mxu0
        %v1845 = vadd.f32 0.0, %v1844
        %1846 = vmatprep.mubr.bf16.mxu0 0
        %1847 = vmatmul.mubr.bf16.gmra.mrb[0].mxu0 %v1532
        %v1848 = vpop.f32.mrb[0].mxu0
        %v1849 = vadd.f32 0.0, %v1848
        %v1850 = vpop.f32.mrb[0].mxu0
        %v1851 = vadd.f32 0.0, %v1850
        %v1852 = vpop.f32.mrb[0].mxu0
        %v1853 = vadd.f32 0.0, %v1852
        %v1854 = vpop.f32.mrb[0].mxu0
        %v1855 = vadd.f32 0.0, %v1854
        %1856 = vmatprep.mubr.bf16.mxu0 0
        %1857 = vmatmul.mubr.bf16.gmra.mrb[0].mxu0 %v1535
        %v1858 = vpop.f32.mrb[0].mxu0
        %v1859 = vadd.f32 0.0, %v1858
        %v1860 = vpop.f32.mrb[0].mxu0
        %v1861 = vadd.f32 0.0, %v1860
        %v1862 = vpop.f32.mrb[0].mxu0
        %v1863 = vadd.f32 0.0, %v1862
        %v1864 = vpop.f32.mrb[0].mxu0
        %v1865 = vadd.f32 0.0, %v1864
        %1866 = vmatprep.mubr.bf16.mxu0 0
        %1867 = vmatmul.mubr.bf16.gmra.mrb[0].mxu0 %v1538
        %v1868 = vpop.f32.mrb[0].mxu0
        %v1869 = vadd.f32 0.0, %v1868
        %v1870 = vpop.f32.mrb[0].mxu0
        %v1871 = vadd.f32 0.0, %v1870
        %v1872 = vpop.f32.mrb[0].mxu0
        %v1873 = vadd.f32 0.0, %v1872
        %v1874 = vpop.f32.mrb[0].mxu0
        %v1875 = vadd.f32 0.0, %v1874
        %1876 = vmatprep.mubr.bf16.mxu0 0
        %1877 = vmatmul.mubr.bf16.gmra.mrb[0].mxu0 %v1541
        %v1878 = vpop.f32.mrb[0].mxu0
        %v1879 = vadd.f32 0.0, %v1878
        %v1880 = vpop.f32.mrb[0].mxu0
        %v1881 = vadd.f32 0.0, %v1880
        %v1882 = vpop.f32.mrb[0].mxu0
        %v1883 = vadd.f32 0.0, %v1882
        %v1884 = vpop.f32.mrb[0].mxu0
        %v1885 = vadd.f32 0.0, %v1884
        %1886 = vmatprep.mubr.bf16.mxu0 0
        %1887 = vmatmul.mubr.bf16.gmra.mrb[0].mxu0 %v1544
        %v1888 = vpop.f32.mrb[0].mxu0
        %v1889 = vadd.f32 0.0, %v1888
        %v1890 = vpop.f32.mrb[0].mxu0
        %v1891 = vadd.f32 0.0, %v1890
        %v1892 = vpop.f32.mrb[0].mxu0
        %v1893 = vadd.f32 0.0, %v1892
        %v1894 = vpop.f32.mrb[0].mxu0
        %v1895 = vadd.f32 0.0, %v1894
        %1896 = vmatprep.mubr.bf16.mxu0 0
        %1897 = vmatmul.mubr.bf16.gmra.mrb[0].mxu0 %v1547
        %v1898 = vpop.f32.mrb[0].mxu0
        %v1899 = vadd.f32 0.0, %v1898
        %v1900 = vpop.f32.mrb[0].mxu0
        %v1901 = vadd.f32 0.0, %v1900
        %v1902 = vpop.f32.mrb[0].mxu0
        %v1903 = vadd.f32 0.0, %v1902
        %v1904 = vpop.f32.mrb[0].mxu0
        %v1905 = vadd.f32 0.0, %v1904
        %1906 = vmatprep.mubr.bf16.mxu0 0
        %1907 = vmatmul.mubr.bf16.gmra.mrb[0].mxu0 %v1550
        %v1908 = vpop.f32.mrb[0].mxu0
        %v1909 = vadd.f32 0.0, %v1908
        %v1910 = vpop.f32.mrb[0].mxu0
        %v1911 = vadd.f32 0.0, %v1910
        %v1912 = vpop.f32.mrb[0].mxu0
        %v1913 = vadd.f32 0.0, %v1912
        %v1914 = vpop.f32.mrb[0].mxu0
        %v1915 = vadd.f32 0.0, %v1914
        %1916 = vmatprep.mubr.bf16.mxu0 0
        %1917 = vmatmul.mubr.bf16.gmra.mrb[0].mxu0 %v1553
        %v1918 = vpop.f32.mrb[0].mxu0
        %v1919 = vadd.f32 0.0, %v1918
        %v1920 = vpop.f32.mrb[0].mxu0
        %v1921 = vadd.f32 0.0, %v1920
        %v1922 = vpop.f32.mrb[0].mxu0
        %v1923 = vadd.f32 0.0, %v1922
        %v1924 = vpop.f32.mrb[0].mxu0
        %v1925 = vadd.f32 0.0, %v1924
        %1926 = vmatprep.mubr.bf16.mxu0 0
        %1927 = vmatmul.mubr.bf16.gmra.mrb[0].mxu0 %v1556
        %v1928 = vpop.f32.mrb[0].mxu0
        %v1929 = vadd.f32 0.0, %v1928
        %v1930 = vpop.f32.mrb[0].mxu0
        %v1931 = vadd.f32 0.0, %v1930
        %v1932 = vpop.f32.mrb[0].mxu0
        %v1933 = vadd.f32 0.0, %v1932
        %v1934 = vpop.f32.mrb[0].mxu0
        %v1935 = vadd.f32 0.0, %v1934
        %1936 = vmatprep.mubr.bf16.mxu0 0
        %1937 = vmatmul.mubr.bf16.gmra.mrb[0].mxu0 %v1559
        %v1938 = vpop.f32.mrb[0].mxu0
        %v1939 = vadd.f32 0.0, %v1938
        %v1940 = vpop.f32.mrb[0].mxu0
        %v1941 = vadd.f32 0.0, %v1940
        %v1942 = vpop.f32.mrb[0].mxu0
        %v1943 = vadd.f32 0.0, %v1942
        %v1944 = vpop.f32.mrb[0].mxu0
        %v1945 = vadd.f32 0.0, %v1944
        %1946 = vdwg.mxu0
        %v1947 = vadd.f32 %v977, %v1596
        %v1948 = vadd.f32 %v979, %v1598
        %v1949 = vadd.f32 %v1170, %v1789
        %v1950 = vadd.f32 %v1172, %v1791
        %v1951 = vadd.f32 %v981, %v1600
        %v1952 = vadd.f32 %v983, %v1602
        %v1953 = vadd.f32 %v1174, %v1793
        %v1954 = vadd.f32 %v1176, %v1795
        %v1955 = vadd.f32 %v987, %v1606
        %v1956 = vadd.f32 %v989, %v1608
        %v1957 = vadd.f32 %v1180, %v1799
        %v1958 = vadd.f32 %v1182, %v1801
        %v1959 = vadd.f32 %v991, %v1610
        %v1960 = vadd.f32 %v993, %v1612
        %v1961 = vadd.f32 %v1184, %v1803
        %v1962 = vadd.f32 %v1186, %v1805
        %v1963 = vadd.f32 %v997, %v1616
        %v1964 = vadd.f32 %v999, %v1618
        %v1965 = vadd.f32 %v1190, %v1809
        %v1966 = vadd.f32 %v1192, %v1811
        %v1967 = vadd.f32 %v1001, %v1620
        %v1968 = vadd.f32 %v1003, %v1622
        %v1969 = vadd.f32 %v1194, %v1813
        %v1970 = vadd.f32 %v1196, %v1815
        %v1971 = vadd.f32 %v1007, %v1626
        %v1972 = vadd.f32 %v1009, %v1628
        %v1973 = vadd.f32 %v1200, %v1819
        %v1974 = vadd.f32 %v1202, %v1821
        %v1975 = vadd.f32 %v1011, %v1630
        %v1976 = vadd.f32 %v1013, %v1632
        %v1977 = vadd.f32 %v1204, %v1823
        %v1978 = vadd.f32 %v1206, %v1825
        %v1979 = vadd.f32 %v1017, %v1636
        %v1980 = vadd.f32 %v1019, %v1638
        %v1981 = vadd.f32 %v1210, %v1829
        %v1982 = vadd.f32 %v1212, %v1831
        %v1983 = vadd.f32 %v1021, %v1640
        %v1984 = vadd.f32 %v1023, %v1642
        %v1985 = vadd.f32 %v1214, %v1833
        %v1986 = vadd.f32 %v1216, %v1835
        %v1987 = vadd.f32 %v1027, %v1646
        %v1988 = vadd.f32 %v1029, %v1648
        %v1989 = vadd.f32 %v1220, %v1839
        %v1990 = vadd.f32 %v1222, %v1841
        %v1991 = vadd.f32 %v1031, %v1650
        %v1992 = vadd.f32 %v1033, %v1652
        %v1993 = vadd.f32 %v1224, %v1843
        %v1994 = vadd.f32 %v1226, %v1845
        %v1995 = vadd.f32 %v1037, %v1656
        %v1996 = vadd.f32 %v1039, %v1658
        %v1997 = vadd.f32 %v1230, %v1849
        %v1998 = vadd.f32 %v1232, %v1851
        %v1999 = vadd.f32 %v1041, %v1660
        %v2000 = vadd.f32 %v1043, %v1662
        %v2001 = vadd.f32 %v1234, %v1853
        %v2002 = vadd.f32 %v1236, %v1855
        %v2003 = vadd.f32 %v1047, %v1666
        %v2004 = vadd.f32 %v1049, %v1668
        %v2005 = vadd.f32 %v1240, %v1859
        %v2006 = vadd.f32 %v1242, %v1861
        %v2007 = vadd.f32 %v1051, %v1670
        %v2008 = vadd.f32 %v1053, %v1672
        %v2009 = vadd.f32 %v1244, %v1863
        %v2010 = vadd.f32 %v1246, %v1865
        %v2011 = vadd.f32 %v1057, %v1676
        %v2012 = vadd.f32 %v1059, %v1678
        %v2013 = vadd.f32 %v1250, %v1869
        %v2014 = vadd.f32 %v1252, %v1871
        %v2015 = vadd.f32 %v1061, %v1680
        %v2016 = vadd.f32 %v1063, %v1682
        %v2017 = vadd.f32 %v1254, %v1873
        %v2018 = vadd.f32 %v1256, %v1875
        %v2019 = vadd.f32 %v1067, %v1686
        %v2020 = vadd.f32 %v1069, %v1688
        %v2021 = vadd.f32 %v1260, %v1879
        %v2022 = vadd.f32 %v1262, %v1881
        %v2023 = vadd.f32 %v1071, %v1690
        %v2024 = vadd.f32 %v1073, %v1692
        %v2025 = vadd.f32 %v1264, %v1883
        %v2026 = vadd.f32 %v1266, %v1885
        %v2027 = vadd.f32 %v1077, %v1696
        %v2028 = vadd.f32 %v1079, %v1698
        %v2029 = vadd.f32 %v1270, %v1889
        %v2030 = vadd.f32 %v1272, %v1891
        %v2031 = vadd.f32 %v1081, %v1700
        %v2032 = vadd.f32 %v1083, %v1702
        %v2033 = vadd.f32 %v1274, %v1893
        %v2034 = vadd.f32 %v1276, %v1895
        %v2035 = vadd.f32 %v1087, %v1706
        %v2036 = vadd.f32 %v1089, %v1708
        %v2037 = vadd.f32 %v1280, %v1899
        %v2038 = vadd.f32 %v1282, %v1901
        %v2039 = vadd.f32 %v1091, %v1710
        %v2040 = vadd.f32 %v1093, %v1712
        %v2041 = vadd.f32 %v1284, %v1903
        %v2042 = vadd.f32 %v1286, %v1905
        %v2043 = vadd.f32 %v1097, %v1716
        %v2044 = vadd.f32 %v1099, %v1718
        %v2045 = vadd.f32 %v1290, %v1909
        %v2046 = vadd.f32 %v1292, %v1911
        %v2047 = vadd.f32 %v1101, %v1720
        %v2048 = vadd.f32 %v1103, %v1722
        %v2049 = vadd.f32 %v1294, %v1913
        %v2050 = vadd.f32 %v1296, %v1915
        %v2051 = vadd.f32 %v1107, %v1726
        %v2052 = vadd.f32 %v1109, %v1728
        %v2053 = vadd.f32 %v1300, %v1919
        %v2054 = vadd.f32 %v1302, %v1921
        %v2055 = vadd.f32 %v1111, %v1730
        %v2056 = vadd.f32 %v1113, %v1732
        %v2057 = vadd.f32 %v1304, %v1923
        %v2058 = vadd.f32 %v1306, %v1925
        %v2059 = vadd.f32 %v1117, %v1736
        %v2060 = vadd.f32 %v1119, %v1738
        %v2061 = vadd.f32 %v1310, %v1929
        %v2062 = vadd.f32 %v1312, %v1931
        %v2063 = vadd.f32 %v1121, %v1740
        %v2064 = vadd.f32 %v1123, %v1742
        %v2065 = vadd.f32 %v1314, %v1933
        %v2066 = vadd.f32 %v1316, %v1935
        %v2067 = vadd.f32 %v1127, %v1746
        %v2068 = vadd.f32 %v1129, %v1748
        %v2069 = vadd.f32 %v1320, %v1939
        %v2070 = vadd.f32 %v1322, %v1941
        %v2071 = vadd.f32 %v1131, %v1750
        %v2072 = vadd.f32 %v1133, %v1752
        %v2073 = vadd.f32 %v1324, %v1943
        %v2074 = vadd.f32 %v1326, %v1945
        %v2075 = vld [vmem:[%s2] sm:$0xf]
        %v2077 = vlaneseq
        %v2078 = vshrl.u32 %v2077, 7
        %v2079 = vsub.s32 0, %v2078
        %v2080 = vrot.slane %v2075, %v2079
        %v2081 = vlaneseq
        %v2082 = vshrl.u32 %v2081, 7
        %v2083 = vsub.s32 1, %v2082
        %v2084 = vrot.slane %v2075, %v2083
        %v2085 = vlaneseq
        %v2086 = vshrl.u32 %v2085, 7
        %v2087 = vsub.s32 2, %v2086
        %v2088 = vrot.slane %v2075, %v2087
        %v2089 = vlaneseq
        %v2090 = vshrl.u32 %v2089, 7
        %v2091 = vsub.s32 3, %v2090
        %v2092 = vrot.slane %v2075, %v2091
        %v2097 = vadd.f32 %v1947, %v2080
        %v2098 = vadd.f32 %v1948, %v2084
        %v2099 = vadd.f32 %v1949, %v2088
        %v2100 = vadd.f32 %v1950, %v2092
        %v2101 = vadd.f32 %v1951, %v2080
        %v2102 = vadd.f32 %v1952, %v2084
        %v2103 = vadd.f32 %v1953, %v2088
        %v2104 = vadd.f32 %v1954, %v2092
        %v2105 = vadd.f32 %v1955, %v2080
        %v2106 = vadd.f32 %v1956, %v2084
        %v2107 = vadd.f32 %v1957, %v2088
        %v2108 = vadd.f32 %v1958, %v2092
        %v2109 = vadd.f32 %v1959, %v2080
        %v2110 = vadd.f32 %v1960, %v2084
        %v2111 = vadd.f32 %v1961, %v2088
        %v2112 = vadd.f32 %v1962, %v2092
        %v2113 = vadd.f32 %v1963, %v2080
        %v2114 = vadd.f32 %v1964, %v2084
        %v2115 = vadd.f32 %v1965, %v2088
        %v2116 = vadd.f32 %v1966, %v2092
        %v2117 = vadd.f32 %v1967, %v2080
        %v2118 = vadd.f32 %v1968, %v2084
        %v2119 = vadd.f32 %v1969, %v2088
        %v2120 = vadd.f32 %v1970, %v2092
        %v2121 = vadd.f32 %v1971, %v2080
        %v2122 = vadd.f32 %v1972, %v2084
        %v2123 = vadd.f32 %v1973, %v2088
        %v2124 = vadd.f32 %v1974, %v2092
        %v2125 = vadd.f32 %v1975, %v2080
        %v2126 = vadd.f32 %v1976, %v2084
        %v2127 = vadd.f32 %v1977, %v2088
        %v2128 = vadd.f32 %v1978, %v2092
        %v2129 = vadd.f32 %v1979, %v2080
        %v2130 = vadd.f32 %v1980, %v2084
        %v2131 = vadd.f32 %v1981, %v2088
        %v2132 = vadd.f32 %v1982, %v2092
        %v2133 = vadd.f32 %v1983, %v2080
        %v2134 = vadd.f32 %v1984, %v2084
        %v2135 = vadd.f32 %v1985, %v2088
        %v2136 = vadd.f32 %v1986, %v2092
        %v2137 = vadd.f32 %v1987, %v2080
        %v2138 = vadd.f32 %v1988, %v2084
        %v2139 = vadd.f32 %v1989, %v2088
        %v2140 = vadd.f32 %v1990, %v2092
        %v2141 = vadd.f32 %v1991, %v2080
        %v2142 = vadd.f32 %v1992, %v2084
        %v2143 = vadd.f32 %v1993, %v2088
        %v2144 = vadd.f32 %v1994, %v2092
        %v2145 = vadd.f32 %v1995, %v2080
        %v2146 = vadd.f32 %v1996, %v2084
        %v2147 = vadd.f32 %v1997, %v2088
        %v2148 = vadd.f32 %v1998, %v2092
        %v2149 = vadd.f32 %v1999, %v2080
        %v2150 = vadd.f32 %v2000, %v2084
        %v2151 = vadd.f32 %v2001, %v2088
        %v2152 = vadd.f32 %v2002, %v2092
        %v2153 = vadd.f32 %v2003, %v2080
        %v2154 = vadd.f32 %v2004, %v2084
        %v2155 = vadd.f32 %v2005, %v2088
        %v2156 = vadd.f32 %v2006, %v2092
        %v2157 = vadd.f32 %v2007, %v2080
        %v2158 = vadd.f32 %v2008, %v2084
        %v2159 = vadd.f32 %v2009, %v2088
        %v2160 = vadd.f32 %v2010, %v2092
        %v2161 = vadd.f32 %v2011, %v2080
        %v2162 = vadd.f32 %v2012, %v2084
        %v2163 = vadd.f32 %v2013, %v2088
        %v2164 = vadd.f32 %v2014, %v2092
        %v2165 = vadd.f32 %v2015, %v2080
        %v2166 = vadd.f32 %v2016, %v2084
        %v2167 = vadd.f32 %v2017, %v2088
        %v2168 = vadd.f32 %v2018, %v2092
        %v2169 = vadd.f32 %v2019, %v2080
        %v2170 = vadd.f32 %v2020, %v2084
        %v2171 = vadd.f32 %v2021, %v2088
        %v2172 = vadd.f32 %v2022, %v2092
        %v2173 = vadd.f32 %v2023, %v2080
        %v2174 = vadd.f32 %v2024, %v2084
        %v2175 = vadd.f32 %v2025, %v2088
        %v2176 = vadd.f32 %v2026, %v2092
        %v2177 = vadd.f32 %v2027, %v2080
        %v2178 = vadd.f32 %v2028, %v2084
        %v2179 = vadd.f32 %v2029, %v2088
        %v2180 = vadd.f32 %v2030, %v2092
        %v2181 = vadd.f32 %v2031, %v2080
        %v2182 = vadd.f32 %v2032, %v2084
        %v2183 = vadd.f32 %v2033, %v2088
        %v2184 = vadd.f32 %v2034, %v2092
        %v2185 = vadd.f32 %v2035, %v2080
        %v2186 = vadd.f32 %v2036, %v2084
        %v2187 = vadd.f32 %v2037, %v2088
        %v2188 = vadd.f32 %v2038, %v2092
        %v2189 = vadd.f32 %v2039, %v2080
        %v2190 = vadd.f32 %v2040, %v2084
        %v2191 = vadd.f32 %v2041, %v2088
        %v2192 = vadd.f32 %v2042, %v2092
        %v2193 = vadd.f32 %v2043, %v2080
        %v2194 = vadd.f32 %v2044, %v2084
        %v2195 = vadd.f32 %v2045, %v2088
        %v2196 = vadd.f32 %v2046, %v2092
        %v2197 = vadd.f32 %v2047, %v2080
        %v2198 = vadd.f32 %v2048, %v2084
        %v2199 = vadd.f32 %v2049, %v2088
        %v2200 = vadd.f32 %v2050, %v2092
        %v2201 = vadd.f32 %v2051, %v2080
        %v2202 = vadd.f32 %v2052, %v2084
        %v2203 = vadd.f32 %v2053, %v2088
        %v2204 = vadd.f32 %v2054, %v2092
        %v2205 = vadd.f32 %v2055, %v2080
        %v2206 = vadd.f32 %v2056, %v2084
        %v2207 = vadd.f32 %v2057, %v2088
        %v2208 = vadd.f32 %v2058, %v2092
        %v2209 = vadd.f32 %v2059, %v2080
        %v2210 = vadd.f32 %v2060, %v2084
        %v2211 = vadd.f32 %v2061, %v2088
        %v2212 = vadd.f32 %v2062, %v2092
        %v2213 = vadd.f32 %v2063, %v2080
        %v2214 = vadd.f32 %v2064, %v2084
        %v2215 = vadd.f32 %v2065, %v2088
        %v2216 = vadd.f32 %v2066, %v2092
        %v2217 = vadd.f32 %v2067, %v2080
        %v2218 = vadd.f32 %v2068, %v2084
        %v2219 = vadd.f32 %v2069, %v2088
        %v2220 = vadd.f32 %v2070, %v2092
        %v2221 = vadd.f32 %v2071, %v2080
        %v2222 = vadd.f32 %v2072, %v2084
        %v2223 = vadd.f32 %v2073, %v2088
        %v2224 = vadd.f32 %v2074, %v2092
        %v2225 = vmax.f32 %v2097, 0.0
        %v2226 = vmax.f32 %v2098, 0.0
        %v2227 = vmax.f32 %v2099, 0.0
        %v2228 = vmax.f32 %v2100, 0.0
        %v2229 = vmax.f32 %v2101, 0.0
        %v2230 = vmax.f32 %v2102, 0.0
        %v2231 = vmax.f32 %v2103, 0.0
        %v2232 = vmax.f32 %v2104, 0.0
        %v2233 = vmax.f32 %v2105, 0.0
        %v2234 = vmax.f32 %v2106, 0.0
        %v2235 = vmax.f32 %v2107, 0.0
        %v2236 = vmax.f32 %v2108, 0.0
        %v2237 = vmax.f32 %v2109, 0.0
        %v2238 = vmax.f32 %v2110, 0.0
        %v2239 = vmax.f32 %v2111, 0.0
        %v2240 = vmax.f32 %v2112, 0.0
        %v2241 = vmax.f32 %v2113, 0.0
        %v2242 = vmax.f32 %v2114, 0.0
        %v2243 = vmax.f32 %v2115, 0.0
        %v2244 = vmax.f32 %v2116, 0.0
        %v2245 = vmax.f32 %v2117, 0.0
        %v2246 = vmax.f32 %v2118, 0.0
        %v2247 = vmax.f32 %v2119, 0.0
        %v2248 = vmax.f32 %v2120, 0.0
        %v2249 = vmax.f32 %v2121, 0.0
        %v2250 = vmax.f32 %v2122, 0.0
        %v2251 = vmax.f32 %v2123, 0.0
        %v2252 = vmax.f32 %v2124, 0.0
        %v2253 = vmax.f32 %v2125, 0.0
        %v2254 = vmax.f32 %v2126, 0.0
        %v2255 = vmax.f32 %v2127, 0.0
        %v2256 = vmax.f32 %v2128, 0.0
        %v2257 = vmax.f32 %v2129, 0.0
        %v2258 = vmax.f32 %v2130, 0.0
        %v2259 = vmax.f32 %v2131, 0.0
        %v2260 = vmax.f32 %v2132, 0.0
        %v2261 = vmax.f32 %v2133, 0.0
        %v2262 = vmax.f32 %v2134, 0.0
        %v2263 = vmax.f32 %v2135, 0.0
        %v2264 = vmax.f32 %v2136, 0.0
        %v2265 = vmax.f32 %v2137, 0.0
        %v2266 = vmax.f32 %v2138, 0.0
        %v2267 = vmax.f32 %v2139, 0.0
        %v2268 = vmax.f32 %v2140, 0.0
        %v2269 = vmax.f32 %v2141, 0.0
        %v2270 = vmax.f32 %v2142, 0.0
        %v2271 = vmax.f32 %v2143, 0.0
        %v2272 = vmax.f32 %v2144, 0.0
        %v2273 = vmax.f32 %v2145, 0.0
        %v2274 = vmax.f32 %v2146, 0.0
        %v2275 = vmax.f32 %v2147, 0.0
        %v2276 = vmax.f32 %v2148, 0.0
        %v2277 = vmax.f32 %v2149, 0.0
        %v2278 = vmax.f32 %v2150, 0.0
        %v2279 = vmax.f32 %v2151, 0.0
        %v2280 = vmax.f32 %v2152, 0.0
        %v2281 = vmax.f32 %v2153, 0.0
        %v2282 = vmax.f32 %v2154, 0.0
        %v2283 = vmax.f32 %v2155, 0.0
        %v2284 = vmax.f32 %v2156, 0.0
        %v2285 = vmax.f32 %v2157, 0.0
        %v2286 = vmax.f32 %v2158, 0.0
        %v2287 = vmax.f32 %v2159, 0.0
        %v2288 = vmax.f32 %v2160, 0.0
        %v2289 = vmax.f32 %v2161, 0.0
        %v2290 = vmax.f32 %v2162, 0.0
        %v2291 = vmax.f32 %v2163, 0.0
        %v2292 = vmax.f32 %v2164, 0.0
        %v2293 = vmax.f32 %v2165, 0.0
        %v2294 = vmax.f32 %v2166, 0.0
        %v2295 = vmax.f32 %v2167, 0.0
        %v2296 = vmax.f32 %v2168, 0.0
        %v2297 = vmax.f32 %v2169, 0.0
        %v2298 = vmax.f32 %v2170, 0.0
        %v2299 = vmax.f32 %v2171, 0.0
        %v2300 = vmax.f32 %v2172, 0.0
        %v2301 = vmax.f32 %v2173, 0.0
        %v2302 = vmax.f32 %v2174, 0.0
        %v2303 = vmax.f32 %v2175, 0.0
        %v2304 = vmax.f32 %v2176, 0.0
        %v2305 = vmax.f32 %v2177, 0.0
        %v2306 = vmax.f32 %v2178, 0.0
        %v2307 = vmax.f32 %v2179, 0.0
        %v2308 = vmax.f32 %v2180, 0.0
        %v2309 = vmax.f32 %v2181, 0.0
        %v2310 = vmax.f32 %v2182, 0.0
        %v2311 = vmax.f32 %v2183, 0.0
        %v2312 = vmax.f32 %v2184, 0.0
        %v2313 = vmax.f32 %v2185, 0.0
        %v2314 = vmax.f32 %v2186, 0.0
        %v2315 = vmax.f32 %v2187, 0.0
        %v2316 = vmax.f32 %v2188, 0.0
        %v2317 = vmax.f32 %v2189, 0.0
        %v2318 = vmax.f32 %v2190, 0.0
        %v2319 = vmax.f32 %v2191, 0.0
        %v2320 = vmax.f32 %v2192, 0.0
        %v2321 = vmax.f32 %v2193, 0.0
        %v2322 = vmax.f32 %v2194, 0.0
        %v2323 = vmax.f32 %v2195, 0.0
        %v2324 = vmax.f32 %v2196, 0.0
        %v2325 = vmax.f32 %v2197, 0.0
        %v2326 = vmax.f32 %v2198, 0.0
        %v2327 = vmax.f32 %v2199, 0.0
        %v2328 = vmax.f32 %v2200, 0.0
        %v2329 = vmax.f32 %v2201, 0.0
        %v2330 = vmax.f32 %v2202, 0.0
        %v2331 = vmax.f32 %v2203, 0.0
        %v2332 = vmax.f32 %v2204, 0.0
        %v2333 = vmax.f32 %v2205, 0.0
        %v2334 = vmax.f32 %v2206, 0.0
        %v2335 = vmax.f32 %v2207, 0.0
        %v2336 = vmax.f32 %v2208, 0.0
        %v2337 = vmax.f32 %v2209, 0.0
        %v2338 = vmax.f32 %v2210, 0.0
        %v2339 = vmax.f32 %v2211, 0.0
        %v2340 = vmax.f32 %v2212, 0.0
        %v2341 = vmax.f32 %v2213, 0.0
        %v2342 = vmax.f32 %v2214, 0.0
        %v2343 = vmax.f32 %v2215, 0.0
        %v2344 = vmax.f32 %v2216, 0.0
        %v2345 = vmax.f32 %v2217, 0.0
        %v2346 = vmax.f32 %v2218, 0.0
        %v2347 = vmax.f32 %v2219, 0.0
        %v2348 = vmax.f32 %v2220, 0.0
        %v2349 = vmax.f32 %v2221, 0.0
        %v2350 = vmax.f32 %v2222, 0.0
        %v2351 = vmax.f32 %v2223, 0.0
        %v2352 = vmax.f32 %v2224, 0.0
        %v2353 = vpack.c.bf16 %v2229, %v2225
        %v2354 = vpack.c.bf16 %v2230, %v2226
        %v2355 = vpack.c.bf16 %v2231, %v2227
        %v2356 = vpack.c.bf16 %v2232, %v2228
        %v2357 = vpack.c.bf16 %v2237, %v2233
        %v2358 = vpack.c.bf16 %v2238, %v2234
        %v2359 = vpack.c.bf16 %v2239, %v2235
        %v2360 = vpack.c.bf16 %v2240, %v2236
        %v2361 = vpack.c.bf16 %v2245, %v2241
        %v2362 = vpack.c.bf16 %v2246, %v2242
        %v2363 = vpack.c.bf16 %v2247, %v2243
        %v2364 = vpack.c.bf16 %v2248, %v2244
        %v2365 = vpack.c.bf16 %v2253, %v2249
        %v2366 = vpack.c.bf16 %v2254, %v2250
        %v2367 = vpack.c.bf16 %v2255, %v2251
        %v2368 = vpack.c.bf16 %v2256, %v2252
        %v2369 = vpack.c.bf16 %v2261, %v2257
        %v2370 = vpack.c.bf16 %v2262, %v2258
        %v2371 = vpack.c.bf16 %v2263, %v2259
        %v2372 = vpack.c.bf16 %v2264, %v2260
        %v2373 = vpack.c.bf16 %v2269, %v2265
        %v2374 = vpack.c.bf16 %v2270, %v2266
        %v2375 = vpack.c.bf16 %v2271, %v2267
        %v2376 = vpack.c.bf16 %v2272, %v2268
        %v2377 = vpack.c.bf16 %v2277, %v2273
        %v2378 = vpack.c.bf16 %v2278, %v2274
        %v2379 = vpack.c.bf16 %v2279, %v2275
        %v2380 = vpack.c.bf16 %v2280, %v2276
        %v2381 = vpack.c.bf16 %v2285, %v2281
        %v2382 = vpack.c.bf16 %v2286, %v2282
        %v2383 = vpack.c.bf16 %v2287, %v2283
        %v2384 = vpack.c.bf16 %v2288, %v2284
        %v2385 = vpack.c.bf16 %v2293, %v2289
        %v2386 = vpack.c.bf16 %v2294, %v2290
        %v2387 = vpack.c.bf16 %v2295, %v2291
        %v2388 = vpack.c.bf16 %v2296, %v2292
        %v2389 = vpack.c.bf16 %v2301, %v2297
        %v2390 = vpack.c.bf16 %v2302, %v2298
        %v2391 = vpack.c.bf16 %v2303, %v2299
        %v2392 = vpack.c.bf16 %v2304, %v2300
        %v2393 = vpack.c.bf16 %v2309, %v2305
        %v2394 = vpack.c.bf16 %v2310, %v2306
        %v2395 = vpack.c.bf16 %v2311, %v2307
        %v2396 = vpack.c.bf16 %v2312, %v2308
        %v2397 = vpack.c.bf16 %v2317, %v2313
        %v2398 = vpack.c.bf16 %v2318, %v2314
        %v2399 = vpack.c.bf16 %v2319, %v2315
        %v2400 = vpack.c.bf16 %v2320, %v2316
        %v2401 = vpack.c.bf16 %v2325, %v2321
        %v2402 = vpack.c.bf16 %v2326, %v2322
        %v2403 = vpack.c.bf16 %v2327, %v2323
        %v2404 = vpack.c.bf16 %v2328, %v2324
        %v2405 = vpack.c.bf16 %v2333, %v2329
        %v2406 = vpack.c.bf16 %v2334, %v2330
        %v2407 = vpack.c.bf16 %v2335, %v2331
        %v2408 = vpack.c.bf16 %v2336, %v2332
        %v2409 = vpack.c.bf16 %v2341, %v2337
        %v2410 = vpack.c.bf16 %v2342, %v2338
        %v2411 = vpack.c.bf16 %v2343, %v2339
        %v2412 = vpack.c.bf16 %v2344, %v2340
        %v2413 = vpack.c.bf16 %v2349, %v2345
        %v2414 = vpack.c.bf16 %v2350, %v2346
        %v2415 = vpack.c.bf16 %v2351, %v2347
        %v2416 = vpack.c.bf16 %v2352, %v2348
        %v2417 = vld [vmem:[#allocation2] sm:$0xf]
        %v2418 = vld [vmem:[#allocation2 + $0x4] sm:$0xf]
        %v2419 = vld [vmem:[#allocation2 + $0x8] sm:$0xf]
        %v2420 = vld [vmem:[#allocation2 + $0xc] sm:$0xf]
        %v2421 = vld [vmem:[#allocation2 + $0x10] sm:$0xf]
        %v2422 = vld [vmem:[#allocation2 + $0x14] sm:$0xf]
        %v2423 = vld [vmem:[#allocation2 + $0x18] sm:$0xf]
        %v2424 = vld [vmem:[#allocation2 + $0x1c] sm:$0xf]
        %v2425 = vld [vmem:[#allocation2 + $0x20] sm:$0xf]
        %v2426 = vld [vmem:[#allocation2 + $0x24] sm:$0xf]
        %v2427 = vld [vmem:[#allocation2 + $0x28] sm:$0xf]
        %v2428 = vld [vmem:[#allocation2 + $0x2c] sm:$0xf]
        %v2429 = vld [vmem:[#allocation2 + $0x30] sm:$0xf]
        %v2430 = vld [vmem:[#allocation2 + $0x34] sm:$0xf]
        %v2431 = vld [vmem:[#allocation2 + $0x38] sm:$0xf]
        %v2432 = vld [vmem:[#allocation2 + $0x3c] sm:$0xf]
        %v2433 = vld [vmem:[#allocation2 + $0x40] sm:$0xf]
        %v2434 = vld [vmem:[#allocation2 + $0x44] sm:$0xf]
        %v2435 = vld [vmem:[#allocation2 + $0x48] sm:$0xf]
        %v2436 = vld [vmem:[#allocation2 + $0x4c] sm:$0xf]
        %v2437 = vld [vmem:[#allocation2 + $0x50] sm:$0xf]
        %v2438 = vld [vmem:[#allocation2 + $0x54] sm:$0xf]
        %v2439 = vld [vmem:[#allocation2 + $0x58] sm:$0xf]
        %v2440 = vld [vmem:[#allocation2 + $0x5c] sm:$0xf]
        %v2441 = vld [vmem:[#allocation2 + $0x60] sm:$0xf]
        %v2442 = vld [vmem:[#allocation2 + $0x64] sm:$0xf]
        %v2443 = vld [vmem:[#allocation2 + $0x68] sm:$0xf]
        %v2444 = vld [vmem:[#allocation2 + $0x6c] sm:$0xf]
        %v2445 = vld [vmem:[#allocation2 + $0x70] sm:$0xf]
        %v2446 = vld [vmem:[#allocation2 + $0x74] sm:$0xf]
        %v2447 = vld [vmem:[#allocation2 + $0x78] sm:$0xf]
        %v2448 = vld [vmem:[#allocation2 + $0x7c] sm:$0xf]
        %v2449 = vld [vmem:[#allocation2 + $0x80] sm:$0xf]
        %v2450 = vld [vmem:[#allocation2 + $0x84] sm:$0xf]
        %v2451 = vld [vmem:[#allocation2 + $0x88] sm:$0xf]
        %v2452 = vld [vmem:[#allocation2 + $0x8c] sm:$0xf]
        %v2453 = vld [vmem:[#allocation2 + $0x90] sm:$0xf]
        %v2454 = vld [vmem:[#allocation2 + $0x94] sm:$0xf]
        %v2455 = vld [vmem:[#allocation2 + $0x98] sm:$0xf]
        %v2456 = vld [vmem:[#allocation2 + $0x9c] sm:$0xf]
        %v2457 = vld [vmem:[#allocation2 + $0xa0] sm:$0xf]
        %v2458 = vld [vmem:[#allocation2 + $0xa4] sm:$0xf]
        %v2459 = vld [vmem:[#allocation2 + $0xa8] sm:$0xf]
        %v2460 = vld [vmem:[#allocation2 + $0xac] sm:$0xf]
        %v2461 = vld [vmem:[#allocation2 + $0xb0] sm:$0xf]
        %v2462 = vld [vmem:[#allocation2 + $0xb4] sm:$0xf]
        %v2463 = vld [vmem:[#allocation2 + $0xb8] sm:$0xf]
        %v2464 = vld [vmem:[#allocation2 + $0xbc] sm:$0xf]
        %v2465 = vld [vmem:[#allocation2 + $0xc0] sm:$0xf]
        %v2466 = vld [vmem:[#allocation2 + $0xc4] sm:$0xf]
        %v2467 = vld [vmem:[#allocation2 + $0xc8] sm:$0xf]
        %v2468 = vld [vmem:[#allocation2 + $0xcc] sm:$0xf]
        %v2469 = vld [vmem:[#allocation2 + $0xd0] sm:$0xf]
        %v2470 = vld [vmem:[#allocation2 + $0xd4] sm:$0xf]
        %v2471 = vld [vmem:[#allocation2 + $0xd8] sm:$0xf]
        %v2472 = vld [vmem:[#allocation2 + $0xdc] sm:$0xf]
        %v2473 = vld [vmem:[#allocation2 + $0xe0] sm:$0xf]
        %v2474 = vld [vmem:[#allocation2 + $0xe4] sm:$0xf]
        %v2475 = vld [vmem:[#allocation2 + $0xe8] sm:$0xf]
        %v2476 = vld [vmem:[#allocation2 + $0xec] sm:$0xf]
        %v2477 = vld [vmem:[#allocation2 + $0xf0] sm:$0xf]
        %v2478 = vld [vmem:[#allocation2 + $0xf4] sm:$0xf]
        %v2479 = vld [vmem:[#allocation2 + $0xf8] sm:$0xf]
        %v2480 = vld [vmem:[#allocation2 + $0xfc] sm:$0xf]
        %v2481 = vld [vmem:[%s4] sm:$0x1]
        %v2483 = vlaneseq
        %v2484 = vshrl.u32 %v2483, 7
        %v2485 = vsub.s32 0, %v2484
        %v2486 = vrot.slane %v2481, %v2485
        %v2552 = vunpack.c.l.b16 %v2417
        %v2553 = vunpack.c.l.b16 %v2418
        %v2554 = vunpack.c.l.b16 %v2419
        %v2555 = vunpack.c.l.b16 %v2420
        %v2556 = vunpack.c.l.b16 %v2421
        %v2557 = vunpack.c.l.b16 %v2422
        %v2558 = vunpack.c.l.b16 %v2423
        %v2559 = vunpack.c.l.b16 %v2424
        %v2560 = vunpack.c.l.b16 %v2425
        %v2561 = vunpack.c.l.b16 %v2426
        %v2562 = vunpack.c.l.b16 %v2427
        %v2563 = vunpack.c.l.b16 %v2428
        %v2564 = vunpack.c.l.b16 %v2429
        %v2565 = vunpack.c.l.b16 %v2430
        %v2566 = vunpack.c.l.b16 %v2431
        %v2567 = vunpack.c.l.b16 %v2432
        %v2568 = vunpack.c.l.b16 %v2433
        %v2569 = vunpack.c.l.b16 %v2434
        %v2570 = vunpack.c.l.b16 %v2435
        %v2571 = vunpack.c.l.b16 %v2436
        %v2572 = vunpack.c.l.b16 %v2437
        %v2573 = vunpack.c.l.b16 %v2438
        %v2574 = vunpack.c.l.b16 %v2439
        %v2575 = vunpack.c.l.b16 %v2440
        %v2576 = vunpack.c.l.b16 %v2441
        %v2577 = vunpack.c.l.b16 %v2442
        %v2578 = vunpack.c.l.b16 %v2443
        %v2579 = vunpack.c.l.b16 %v2444
        %v2580 = vunpack.c.l.b16 %v2445
        %v2581 = vunpack.c.l.b16 %v2446
        %v2582 = vunpack.c.l.b16 %v2447
        %v2583 = vunpack.c.l.b16 %v2448
        %v2584 = vunpack.c.l.b16 %v2449
        %v2585 = vunpack.c.l.b16 %v2450
        %v2586 = vunpack.c.l.b16 %v2451
        %v2587 = vunpack.c.l.b16 %v2452
        %v2588 = vunpack.c.l.b16 %v2453
        %v2589 = vunpack.c.l.b16 %v2454
        %v2590 = vunpack.c.l.b16 %v2455
        %v2591 = vunpack.c.l.b16 %v2456
        %v2592 = vunpack.c.l.b16 %v2457
        %v2593 = vunpack.c.l.b16 %v2458
        %v2594 = vunpack.c.l.b16 %v2459
        %v2595 = vunpack.c.l.b16 %v2460
        %v2596 = vunpack.c.l.b16 %v2461
        %v2597 = vunpack.c.l.b16 %v2462
        %v2598 = vunpack.c.l.b16 %v2463
        %v2599 = vunpack.c.l.b16 %v2464
        %v2600 = vunpack.c.l.b16 %v2465
        %v2601 = vunpack.c.l.b16 %v2466
        %v2602 = vunpack.c.l.b16 %v2467
        %v2603 = vunpack.c.l.b16 %v2468
        %v2604 = vunpack.c.l.b16 %v2469
        %v2605 = vunpack.c.l.b16 %v2470
        %v2606 = vunpack.c.l.b16 %v2471
        %v2607 = vunpack.c.l.b16 %v2472
        %v2608 = vunpack.c.l.b16 %v2473
        %v2609 = vunpack.c.l.b16 %v2474
        %v2610 = vunpack.c.l.b16 %v2475
        %v2611 = vunpack.c.l.b16 %v2476
        %v2612 = vunpack.c.l.b16 %v2477
        %v2613 = vunpack.c.l.b16 %v2478
        %v2614 = vunpack.c.l.b16 %v2479
        %v2615 = vunpack.c.l.b16 %v2480
        %v2616 = vpack.c.b16 %v2553, %v2552
        %v2617 = vpack.c.b16 %v2555, %v2554
        %v2618 = vpack.c.b16 %v2557, %v2556
        %v2619 = vpack.c.b16 %v2559, %v2558
        %v2620 = vpack.c.b16 %v2561, %v2560
        %v2621 = vpack.c.b16 %v2563, %v2562
        %v2622 = vpack.c.b16 %v2565, %v2564
        %v2623 = vpack.c.b16 %v2567, %v2566
        %v2624 = vpack.c.b16 %v2569, %v2568
        %v2625 = vpack.c.b16 %v2571, %v2570
        %v2626 = vpack.c.b16 %v2573, %v2572
        %v2627 = vpack.c.b16 %v2575, %v2574
        %v2628 = vpack.c.b16 %v2577, %v2576
        %v2629 = vpack.c.b16 %v2579, %v2578
        %v2630 = vpack.c.b16 %v2581, %v2580
        %v2631 = vpack.c.b16 %v2583, %v2582
        %v2632 = vpack.c.b16 %v2585, %v2584
        %v2633 = vpack.c.b16 %v2587, %v2586
        %v2634 = vpack.c.b16 %v2589, %v2588
        %v2635 = vpack.c.b16 %v2591, %v2590
        %v2636 = vpack.c.b16 %v2593, %v2592
        %v2637 = vpack.c.b16 %v2595, %v2594
        %v2638 = vpack.c.b16 %v2597, %v2596
        %v2639 = vpack.c.b16 %v2599, %v2598
        %v2640 = vpack.c.b16 %v2601, %v2600
        %v2641 = vpack.c.b16 %v2603, %v2602
        %v2642 = vpack.c.b16 %v2605, %v2604
        %v2643 = vpack.c.b16 %v2607, %v2606
        %v2644 = vpack.c.b16 %v2609, %v2608
        %v2645 = vpack.c.b16 %v2611, %v2610
        %v2646 = vpack.c.b16 %v2613, %v2612
        %v2647 = vpack.c.b16 %v2615, %v2614
        %2680 = vmatprep.subr.bf16.mxu0 0
        %2681 = vmatpush1.bf16.msra.mxu0 %v2616
        %2682 = vmatprep.subr.bf16.mxu0 0
        %2683 = vmatpush1.bf16.msra.mxu0 %v2617
        %2684 = vmatprep.subr.bf16.mxu0 0
        %2685 = vmatpush1.bf16.msra.mxu0 %v2618
        %2686 = vmatprep.subr.bf16.mxu0 0
        %2687 = vmatpush1.bf16.msra.mxu0 %v2619
        %2688 = vmatprep.subr.bf16.mxu0 0
        %2689 = vmatpush1.bf16.msra.mxu0 %v2620
        %2690 = vmatprep.subr.bf16.mxu0 0
        %2691 = vmatpush1.bf16.msra.mxu0 %v2621
        %2692 = vmatprep.subr.bf16.mxu0 0
        %2693 = vmatpush1.bf16.msra.mxu0 %v2622
        %2694 = vmatprep.subr.bf16.mxu0 0
        %2695 = vmatpush1.bf16.msra.mxu0 %v2623
        %2696 = vmatprep.subr.bf16.mxu0 0
        %2697 = vmatpush1.bf16.msra.mxu0 %v2624
        %2698 = vmatprep.subr.bf16.mxu0 0
        %2699 = vmatpush1.bf16.msra.mxu0 %v2625
        %2700 = vmatprep.subr.bf16.mxu0 0
        %2701 = vmatpush1.bf16.msra.mxu0 %v2626
        %2702 = vmatprep.subr.bf16.mxu0 0
        %2703 = vmatpush1.bf16.msra.mxu0 %v2627
        %2704 = vmatprep.subr.bf16.mxu0 0
        %2705 = vmatpush1.bf16.msra.mxu0 %v2628
        %2706 = vmatprep.subr.bf16.mxu0 0
        %2707 = vmatpush1.bf16.msra.mxu0 %v2629
        %2708 = vmatprep.subr.bf16.mxu0 0
        %2709 = vmatpush1.bf16.msra.mxu0 %v2630
        %2710 = vmatprep.subr.bf16.mxu0 0
        %2711 = vmatpush1.bf16.msra.mxu0 %v2631
        %2712 = vmatprep.mubr.bf16.mxu0 %v2354
        %2713 = vmatmul.mubr.bf16.gmra.mrb[0].mxu0 %v2353
        %v2714 = vpop.f32.mrb[0].mxu0
        %v2715 = vadd.f32 %v2486, %v2714
        %v2716 = vpop.f32.mrb[0].mxu0
        %v2717 = vpop.f32.mrb[0].mxu0
        %v2718 = vadd.f32 %v2486, %v2717
        %v2719 = vpop.f32.mrb[0].mxu0
        %2720 = vmatprep.mubr.bf16.mxu0 %v2358
        %2721 = vmatmul.mubr.bf16.gmra.mrb[0].mxu0 %v2357
        %v2722 = vpop.f32.mrb[0].mxu0
        %v2723 = vadd.f32 %v2486, %v2722
        %v2724 = vpop.f32.mrb[0].mxu0
        %v2725 = vpop.f32.mrb[0].mxu0
        %v2726 = vadd.f32 %v2486, %v2725
        %v2727 = vpop.f32.mrb[0].mxu0
        %2728 = vmatprep.mubr.bf16.mxu0 %v2362
        %2729 = vmatmul.mubr.bf16.gmra.mrb[0].mxu0 %v2361
        %v2730 = vpop.f32.mrb[0].mxu0
        %v2731 = vadd.f32 %v2486, %v2730
        %v2732 = vpop.f32.mrb[0].mxu0
        %v2733 = vpop.f32.mrb[0].mxu0
        %v2734 = vadd.f32 %v2486, %v2733
        %v2735 = vpop.f32.mrb[0].mxu0
        %2736 = vmatprep.mubr.bf16.mxu0 %v2366
        %2737 = vmatmul.mubr.bf16.gmra.mrb[0].mxu0 %v2365
        %v2738 = vpop.f32.mrb[0].mxu0
        %v2739 = vadd.f32 %v2486, %v2738
        %v2740 = vpop.f32.mrb[0].mxu0
        %v2741 = vpop.f32.mrb[0].mxu0
        %v2742 = vadd.f32 %v2486, %v2741
        %v2743 = vpop.f32.mrb[0].mxu0
        %2744 = vmatprep.mubr.bf16.mxu0 %v2370
        %2745 = vmatmul.mubr.bf16.gmra.mrb[0].mxu0 %v2369
        %v2746 = vpop.f32.mrb[0].mxu0
        %v2747 = vadd.f32 %v2486, %v2746
        %v2748 = vpop.f32.mrb[0].mxu0
        %v2749 = vpop.f32.mrb[0].mxu0
        %v2750 = vadd.f32 %v2486, %v2749
        %v2751 = vpop.f32.mrb[0].mxu0
        %2752 = vmatprep.mubr.bf16.mxu0 %v2374
        %2753 = vmatmul.mubr.bf16.gmra.mrb[0].mxu0 %v2373
        %v2754 = vpop.f32.mrb[0].mxu0
        %v2755 = vadd.f32 %v2486, %v2754
        %v2756 = vpop.f32.mrb[0].mxu0
        %v2757 = vpop.f32.mrb[0].mxu0
        %v2758 = vadd.f32 %v2486, %v2757
        %v2759 = vpop.f32.mrb[0].mxu0
        %2760 = vmatprep.mubr.bf16.mxu0 %v2378
        %2761 = vmatmul.mubr.bf16.gmra.mrb[0].mxu0 %v2377
        %v2762 = vpop.f32.mrb[0].mxu0
        %v2763 = vadd.f32 %v2486, %v2762
        %v2764 = vpop.f32.mrb[0].mxu0
        %v2765 = vpop.f32.mrb[0].mxu0
        %v2766 = vadd.f32 %v2486, %v2765
        %v2767 = vpop.f32.mrb[0].mxu0
        %2768 = vmatprep.mubr.bf16.mxu0 %v2382
        %2769 = vmatmul.mubr.bf16.gmra.mrb[0].mxu0 %v2381
        %v2770 = vpop.f32.mrb[0].mxu0
        %v2771 = vadd.f32 %v2486, %v2770
        %v2772 = vpop.f32.mrb[0].mxu0
        %v2773 = vpop.f32.mrb[0].mxu0
        %v2774 = vadd.f32 %v2486, %v2773
        %v2775 = vpop.f32.mrb[0].mxu0
        %2776 = vmatprep.mubr.bf16.mxu0 %v2386
        %2777 = vmatmul.mubr.bf16.gmra.mrb[0].mxu0 %v2385
        %v2778 = vpop.f32.mrb[0].mxu0
        %v2779 = vadd.f32 %v2486, %v2778
        %v2780 = vpop.f32.mrb[0].mxu0
        %v2781 = vpop.f32.mrb[0].mxu0
        %v2782 = vadd.f32 %v2486, %v2781
        %v2783 = vpop.f32.mrb[0].mxu0
        %2784 = vmatprep.mubr.bf16.mxu0 %v2390
        %2785 = vmatmul.mubr.bf16.gmra.mrb[0].mxu0 %v2389
        %v2786 = vpop.f32.mrb[0].mxu0
        %v2787 = vadd.f32 %v2486, %v2786
        %v2788 = vpop.f32.mrb[0].mxu0
        %v2789 = vpop.f32.mrb[0].mxu0
        %v2790 = vadd.f32 %v2486, %v2789
        %v2791 = vpop.f32.mrb[0].mxu0
        %2792 = vmatprep.mubr.bf16.mxu0 %v2394
        %2793 = vmatmul.mubr.bf16.gmra.mrb[0].mxu0 %v2393
        %v2794 = vpop.f32.mrb[0].mxu0
        %v2795 = vadd.f32 %v2486, %v2794
        %v2796 = vpop.f32.mrb[0].mxu0
        %v2797 = vpop.f32.mrb[0].mxu0
        %v2798 = vadd.f32 %v2486, %v2797
        %v2799 = vpop.f32.mrb[0].mxu0
        %2800 = vmatprep.mubr.bf16.mxu0 %v2398
        %2801 = vmatmul.mubr.bf16.gmra.mrb[0].mxu0 %v2397
        %v2802 = vpop.f32.mrb[0].mxu0
        %v2803 = vadd.f32 %v2486, %v2802
        %v2804 = vpop.f32.mrb[0].mxu0
        %v2805 = vpop.f32.mrb[0].mxu0
        %v2806 = vadd.f32 %v2486, %v2805
        %v2807 = vpop.f32.mrb[0].mxu0
        %2808 = vmatprep.mubr.bf16.mxu0 %v2402
        %2809 = vmatmul.mubr.bf16.gmra.mrb[0].mxu0 %v2401
        %v2810 = vpop.f32.mrb[0].mxu0
        %v2811 = vadd.f32 %v2486, %v2810
        %v2812 = vpop.f32.mrb[0].mxu0
        %v2813 = vpop.f32.mrb[0].mxu0
        %v2814 = vadd.f32 %v2486, %v2813
        %v2815 = vpop.f32.mrb[0].mxu0
        %2816 = vmatprep.mubr.bf16.mxu0 %v2406
        %2817 = vmatmul.mubr.bf16.gmra.mrb[0].mxu0 %v2405
        %v2818 = vpop.f32.mrb[0].mxu0
        %v2819 = vadd.f32 %v2486, %v2818
        %v2820 = vpop.f32.mrb[0].mxu0
        %v2821 = vpop.f32.mrb[0].mxu0
        %v2822 = vadd.f32 %v2486, %v2821
        %v2823 = vpop.f32.mrb[0].mxu0
        %2824 = vmatprep.mubr.bf16.mxu0 %v2410
        %2825 = vmatmul.mubr.bf16.gmra.mrb[0].mxu0 %v2409
        %v2826 = vpop.f32.mrb[0].mxu0
        %v2827 = vadd.f32 %v2486, %v2826
        %v2828 = vpop.f32.mrb[0].mxu0
        %v2829 = vpop.f32.mrb[0].mxu0
        %v2830 = vadd.f32 %v2486, %v2829
        %v2831 = vpop.f32.mrb[0].mxu0
        %2832 = vmatprep.mubr.bf16.mxu0 %v2414
        %2833 = vmatmul.mubr.bf16.gmra.mrb[0].mxu0 %v2413
        %v2834 = vpop.f32.mrb[0].mxu0
        %v2835 = vadd.f32 %v2486, %v2834
        %v2836 = vpop.f32.mrb[0].mxu0
        %v2837 = vpop.f32.mrb[0].mxu0
        %v2838 = vadd.f32 %v2486, %v2837
        %v2839 = vpop.f32.mrb[0].mxu0
        %2840 = vdwg.mxu0
        %2841 = vmatprep.subr.bf16.mxu0 0
        %2842 = vmatpush1.bf16.msra.mxu0 %v2632
        %2843 = vmatprep.subr.bf16.mxu0 0
        %2844 = vmatpush1.bf16.msra.mxu0 %v2633
        %2845 = vmatprep.subr.bf16.mxu0 0
        %2846 = vmatpush1.bf16.msra.mxu0 %v2634
        %2847 = vmatprep.subr.bf16.mxu0 0
        %2848 = vmatpush1.bf16.msra.mxu0 %v2635
        %2849 = vmatprep.subr.bf16.mxu0 0
        %2850 = vmatpush1.bf16.msra.mxu0 %v2636
        %2851 = vmatprep.subr.bf16.mxu0 0
        %2852 = vmatpush1.bf16.msra.mxu0 %v2637
        %2853 = vmatprep.subr.bf16.mxu0 0
        %2854 = vmatpush1.bf16.msra.mxu0 %v2638
        %2855 = vmatprep.subr.bf16.mxu0 0
        %2856 = vmatpush1.bf16.msra.mxu0 %v2639
        %2857 = vmatprep.subr.bf16.mxu0 0
        %2858 = vmatpush1.bf16.msra.mxu0 %v2640
        %2859 = vmatprep.subr.bf16.mxu0 0
        %2860 = vmatpush1.bf16.msra.mxu0 %v2641
        %2861 = vmatprep.subr.bf16.mxu0 0
        %2862 = vmatpush1.bf16.msra.mxu0 %v2642
        %2863 = vmatprep.subr.bf16.mxu0 0
        %2864 = vmatpush1.bf16.msra.mxu0 %v2643
        %2865 = vmatprep.subr.bf16.mxu0 0
        %2866 = vmatpush1.bf16.msra.mxu0 %v2644
        %2867 = vmatprep.subr.bf16.mxu0 0
        %2868 = vmatpush1.bf16.msra.mxu0 %v2645
        %2869 = vmatprep.subr.bf16.mxu0 0
        %2870 = vmatpush1.bf16.msra.mxu0 %v2646
        %2871 = vmatprep.subr.bf16.mxu0 0
        %2872 = vmatpush1.bf16.msra.mxu0 %v2647
        %2873 = vmatprep.mubr.bf16.mxu0 %v2356
        %2874 = vmatmul.mubr.bf16.gmra.mrb[0].mxu0 %v2355
        %v2875 = vpop.f32.mrb[0].mxu0
        %v2876 = vadd.f32 %v2715, %v2875
        %v2877 = vpop.f32.mrb[0].mxu0
        %v2878 = vpop.f32.mrb[0].mxu0
        %v2879 = vadd.f32 %v2718, %v2878
        %v2880 = vpop.f32.mrb[0].mxu0
        %2881 = vmatprep.mubr.bf16.mxu0 %v2360
        %2882 = vmatmul.mubr.bf16.gmra.mrb[0].mxu0 %v2359
        %v2883 = vpop.f32.mrb[0].mxu0
        %v2884 = vadd.f32 %v2723, %v2883
        %v2885 = vpop.f32.mrb[0].mxu0
        %v2886 = vpop.f32.mrb[0].mxu0
        %v2887 = vadd.f32 %v2726, %v2886
        %v2888 = vpop.f32.mrb[0].mxu0
        %2889 = vmatprep.mubr.bf16.mxu0 %v2364
        %2890 = vmatmul.mubr.bf16.gmra.mrb[0].mxu0 %v2363
        %v2891 = vpop.f32.mrb[0].mxu0
        %v2892 = vadd.f32 %v2731, %v2891
        %v2893 = vpop.f32.mrb[0].mxu0
        %v2894 = vpop.f32.mrb[0].mxu0
        %v2895 = vadd.f32 %v2734, %v2894
        %v2896 = vpop.f32.mrb[0].mxu0
        %2897 = vmatprep.mubr.bf16.mxu0 %v2368
        %2898 = vmatmul.mubr.bf16.gmra.mrb[0].mxu0 %v2367
        %v2899 = vpop.f32.mrb[0].mxu0
        %v2900 = vadd.f32 %v2739, %v2899
        %v2901 = vpop.f32.mrb[0].mxu0
        %v2902 = vpop.f32.mrb[0].mxu0
        %v2903 = vadd.f32 %v2742, %v2902
        %v2904 = vpop.f32.mrb[0].mxu0
        %2905 = vmatprep.mubr.bf16.mxu0 %v2372
        %2906 = vmatmul.mubr.bf16.gmra.mrb[0].mxu0 %v2371
        %v2907 = vpop.f32.mrb[0].mxu0
        %v2908 = vadd.f32 %v2747, %v2907
        %v2909 = vpop.f32.mrb[0].mxu0
        %v2910 = vpop.f32.mrb[0].mxu0
        %v2911 = vadd.f32 %v2750, %v2910
        %v2912 = vpop.f32.mrb[0].mxu0
        %2913 = vmatprep.mubr.bf16.mxu0 %v2376
        %2914 = vmatmul.mubr.bf16.gmra.mrb[0].mxu0 %v2375
        %v2915 = vpop.f32.mrb[0].mxu0
        %v2916 = vadd.f32 %v2755, %v2915
        %v2917 = vpop.f32.mrb[0].mxu0
        %v2918 = vpop.f32.mrb[0].mxu0
        %v2919 = vadd.f32 %v2758, %v2918
        %v2920 = vpop.f32.mrb[0].mxu0
        %2921 = vmatprep.mubr.bf16.mxu0 %v2380
        %2922 = vmatmul.mubr.bf16.gmra.mrb[0].mxu0 %v2379
        %v2923 = vpop.f32.mrb[0].mxu0
        %v2924 = vadd.f32 %v2763, %v2923
        %v2925 = vpop.f32.mrb[0].mxu0
        %v2926 = vpop.f32.mrb[0].mxu0
        %v2927 = vadd.f32 %v2766, %v2926
        %v2928 = vpop.f32.mrb[0].mxu0
        %2929 = vmatprep.mubr.bf16.mxu0 %v2384
        %2930 = vmatmul.mubr.bf16.gmra.mrb[0].mxu0 %v2383
        %v2931 = vpop.f32.mrb[0].mxu0
        %v2932 = vadd.f32 %v2771, %v2931
        %v2933 = vpop.f32.mrb[0].mxu0
        %v2934 = vpop.f32.mrb[0].mxu0
        %v2935 = vadd.f32 %v2774, %v2934
        %v2936 = vpop.f32.mrb[0].mxu0
        %2937 = vmatprep.mubr.bf16.mxu0 %v2388
        %2938 = vmatmul.mubr.bf16.gmra.mrb[0].mxu0 %v2387
        %v2939 = vpop.f32.mrb[0].mxu0
        %v2940 = vadd.f32 %v2779, %v2939
        %v2941 = vpop.f32.mrb[0].mxu0
        %v2942 = vpop.f32.mrb[0].mxu0
        %v2943 = vadd.f32 %v2782, %v2942
        %v2944 = vpop.f32.mrb[0].mxu0
        %2945 = vmatprep.mubr.bf16.mxu0 %v2392
        %2946 = vmatmul.mubr.bf16.gmra.mrb[0].mxu0 %v2391
        %v2947 = vpop.f32.mrb[0].mxu0
        %v2948 = vadd.f32 %v2787, %v2947
        %v2949 = vpop.f32.mrb[0].mxu0
        %v2950 = vpop.f32.mrb[0].mxu0
        %v2951 = vadd.f32 %v2790, %v2950
        %v2952 = vpop.f32.mrb[0].mxu0
        %2953 = vmatprep.mubr.bf16.mxu0 %v2396
        %2954 = vmatmul.mubr.bf16.gmra.mrb[0].mxu0 %v2395
        %v2955 = vpop.f32.mrb[0].mxu0
        %v2956 = vadd.f32 %v2795, %v2955
        %v2957 = vpop.f32.mrb[0].mxu0
        %v2958 = vpop.f32.mrb[0].mxu0
        %v2959 = vadd.f32 %v2798, %v2958
        %v2960 = vpop.f32.mrb[0].mxu0
        %2961 = vmatprep.mubr.bf16.mxu0 %v2400
        %2962 = vmatmul.mubr.bf16.gmra.mrb[0].mxu0 %v2399
        %v2963 = vpop.f32.mrb[0].mxu0
        %v2964 = vadd.f32 %v2803, %v2963
        %v2965 = vpop.f32.mrb[0].mxu0
        %v2966 = vpop.f32.mrb[0].mxu0
        %v2967 = vadd.f32 %v2806, %v2966
        %v2968 = vpop.f32.mrb[0].mxu0
        %2969 = vmatprep.mubr.bf16.mxu0 %v2404
        %2970 = vmatmul.mubr.bf16.gmra.mrb[0].mxu0 %v2403
        %v2971 = vpop.f32.mrb[0].mxu0
        %v2972 = vadd.f32 %v2811, %v2971
        %v2973 = vpop.f32.mrb[0].mxu0
        %v2974 = vpop.f32.mrb[0].mxu0
        %v2975 = vadd.f32 %v2814, %v2974
        %v2976 = vpop.f32.mrb[0].mxu0
        %2977 = vmatprep.mubr.bf16.mxu0 %v2408
        %2978 = vmatmul.mubr.bf16.gmra.mrb[0].mxu0 %v2407
        %v2979 = vpop.f32.mrb[0].mxu0
        %v2980 = vadd.f32 %v2819, %v2979
        %v2981 = vpop.f32.mrb[0].mxu0
        %v2982 = vpop.f32.mrb[0].mxu0
        %v2983 = vadd.f32 %v2822, %v2982
        %v2984 = vpop.f32.mrb[0].mxu0
        %2985 = vmatprep.mubr.bf16.mxu0 %v2412
        %2986 = vmatmul.mubr.bf16.gmra.mrb[0].mxu0 %v2411
        %v2987 = vpop.f32.mrb[0].mxu0
        %v2988 = vadd.f32 %v2827, %v2987
        %v2989 = vpop.f32.mrb[0].mxu0
        %v2990 = vpop.f32.mrb[0].mxu0
        %v2991 = vadd.f32 %v2830, %v2990
        %v2992 = vpop.f32.mrb[0].mxu0
        %2993 = vmatprep.mubr.bf16.mxu0 %v2416
        %2994 = vmatmul.mubr.bf16.gmra.mrb[0].mxu0 %v2415
        %v2995 = vpop.f32.mrb[0].mxu0
        %v2996 = vadd.f32 %v2835, %v2995
        %v2997 = vpop.f32.mrb[0].mxu0
        %v2998 = vpop.f32.mrb[0].mxu0
        %v2999 = vadd.f32 %v2838, %v2998
        %v3000 = vpop.f32.mrb[0].mxu0
        %3001 = vdwg.mxu0
        %v3002 = vsub.f32 0.0, %v2876
        %v3003 = vsub.f32 0.0, %v2879
        %v3004 = vsub.f32 0.0, %v2884
        %v3005 = vsub.f32 0.0, %v2887
        %v3006 = vsub.f32 0.0, %v2892
        %v3007 = vsub.f32 0.0, %v2895
        %v3008 = vsub.f32 0.0, %v2900
        %v3009 = vsub.f32 0.0, %v2903
        %v3010 = vsub.f32 0.0, %v2908
        %v3011 = vsub.f32 0.0, %v2911
        %v3012 = vsub.f32 0.0, %v2916
        %v3013 = vsub.f32 0.0, %v2919
        %v3014 = vsub.f32 0.0, %v2924
        %v3015 = vsub.f32 0.0, %v2927
        %v3016 = vsub.f32 0.0, %v2932
        %v3017 = vsub.f32 0.0, %v2935
        %v3018 = vsub.f32 0.0, %v2940
        %v3019 = vsub.f32 0.0, %v2943
        %v3020 = vsub.f32 0.0, %v2948
        %v3021 = vsub.f32 0.0, %v2951
        %v3022 = vsub.f32 0.0, %v2956
        %v3023 = vsub.f32 0.0, %v2959
        %v3024 = vsub.f32 0.0, %v2964
        %v3025 = vsub.f32 0.0, %v2967
        %v3026 = vsub.f32 0.0, %v2972
        %v3027 = vsub.f32 0.0, %v2975
        %v3028 = vsub.f32 0.0, %v2980
        %v3029 = vsub.f32 0.0, %v2983
        %v3030 = vsub.f32 0.0, %v2988
        %v3031 = vsub.f32 0.0, %v2991
        %v3032 = vsub.f32 0.0, %v2996
        %v3033 = vsub.f32 0.0, %v2999
        %v3034 = vmul.f32 %v3002, 1.442695
        %v3035 = vpow.pop %v3034
        %v3036 = vmul.f32 %v3003, 1.442695
        %v3037 = vpow.pop %v3036
        %v3038 = vmul.f32 %v3004, 1.442695
        %v3039 = vpow.pop %v3038
        %v3040 = vmul.f32 %v3005, 1.442695
        %v3041 = vpow.pop %v3040
        %v3042 = vmul.f32 %v3006, 1.442695
        %v3043 = vpow.pop %v3042
        %v3044 = vmul.f32 %v3007, 1.442695
        %v3045 = vpow.pop %v3044
        %v3046 = vmul.f32 %v3008, 1.442695
        %v3047 = vpow.pop %v3046
        %v3048 = vmul.f32 %v3009, 1.442695
        %v3049 = vpow.pop %v3048
        %v3050 = vmul.f32 %v3010, 1.442695
        %v3051 = vpow.pop %v3050
        %v3052 = vmul.f32 %v3011, 1.442695
        %v3053 = vpow.pop %v3052
        %v3054 = vmul.f32 %v3012, 1.442695
        %v3055 = vpow.pop %v3054
        %v3056 = vmul.f32 %v3013, 1.442695
        %v3057 = vpow.pop %v3056
        %v3058 = vmul.f32 %v3014, 1.442695
        %v3059 = vpow.pop %v3058
        %v3060 = vmul.f32 %v3015, 1.442695
        %v3061 = vpow.pop %v3060
        %v3062 = vmul.f32 %v3016, 1.442695
        %v3063 = vpow.pop %v3062
        %v3064 = vmul.f32 %v3017, 1.442695
        %v3065 = vpow.pop %v3064
        %v3066 = vmul.f32 %v3018, 1.442695
        %v3067 = vpow.pop %v3066
        %v3068 = vmul.f32 %v3019, 1.442695
        %v3069 = vpow.pop %v3068
        %v3070 = vmul.f32 %v3020, 1.442695
        %v3071 = vpow.pop %v3070
        %v3072 = vmul.f32 %v3021, 1.442695
        %v3073 = vpow.pop %v3072
        %v3074 = vmul.f32 %v3022, 1.442695
        %v3075 = vpow.pop %v3074
        %v3076 = vmul.f32 %v3023, 1.442695
        %v3077 = vpow.pop %v3076
        %v3078 = vmul.f32 %v3024, 1.442695
        %v3079 = vpow.pop %v3078
        %v3080 = vmul.f32 %v3025, 1.442695
        %v3081 = vpow.pop %v3080
        %v3082 = vmul.f32 %v3026, 1.442695
        %v3083 = vpow.pop %v3082
        %v3084 = vmul.f32 %v3027, 1.442695
        %v3085 = vpow.pop %v3084
        %v3086 = vmul.f32 %v3028, 1.442695
        %v3087 = vpow.pop %v3086
        %v3088 = vmul.f32 %v3029, 1.442695
        %v3089 = vpow.pop %v3088
        %v3090 = vmul.f32 %v3030, 1.442695
        %v3091 = vpow.pop %v3090
        %v3092 = vmul.f32 %v3031, 1.442695
        %v3093 = vpow.pop %v3092
        %v3094 = vmul.f32 %v3032, 1.442695
        %v3095 = vpow.pop %v3094
        %v3096 = vmul.f32 %v3033, 1.442695
        %v3097 = vpow.pop %v3096
        %v3098 = vadd.f32 %v3035, 1.0
        %v3099 = vadd.f32 %v3037, 1.0
        %v3100 = vadd.f32 %v3039, 1.0
        %v3101 = vadd.f32 %v3041, 1.0
        %v3102 = vadd.f32 %v3043, 1.0
        %v3103 = vadd.f32 %v3045, 1.0
        %v3104 = vadd.f32 %v3047, 1.0
        %v3105 = vadd.f32 %v3049, 1.0
        %v3106 = vadd.f32 %v3051, 1.0
        %v3107 = vadd.f32 %v3053, 1.0
        %v3108 = vadd.f32 %v3055, 1.0
        %v3109 = vadd.f32 %v3057, 1.0
        %v3110 = vadd.f32 %v3059, 1.0
        %v3111 = vadd.f32 %v3061, 1.0
        %v3112 = vadd.f32 %v3063, 1.0
        %v3113 = vadd.f32 %v3065, 1.0
        %v3114 = vadd.f32 %v3067, 1.0
        %v3115 = vadd.f32 %v3069, 1.0
        %v3116 = vadd.f32 %v3071, 1.0
        %v3117 = vadd.f32 %v3073, 1.0
        %v3118 = vadd.f32 %v3075, 1.0
        %v3119 = vadd.f32 %v3077, 1.0
        %v3120 = vadd.f32 %v3079, 1.0
        %v3121 = vadd.f32 %v3081, 1.0
        %v3122 = vadd.f32 %v3083, 1.0
        %v3123 = vadd.f32 %v3085, 1.0
        %v3124 = vadd.f32 %v3087, 1.0
        %v3125 = vadd.f32 %v3089, 1.0
        %v3126 = vadd.f32 %v3091, 1.0
        %v3127 = vadd.f32 %v3093, 1.0
        %v3128 = vadd.f32 %v3095, 1.0
        %v3129 = vadd.f32 %v3097, 1.0
        %v3130 = vrcp.pop %v3098
        %v3131 = vrcp.pop %v3099
        %v3132 = vrcp.pop %v3100
        %v3133 = vrcp.pop %v3101
        %v3134 = vrcp.pop %v3102
        %v3135 = vrcp.pop %v3103
        %v3136 = vrcp.pop %v3104
        %v3137 = vrcp.pop %v3105
        %v3138 = vrcp.pop %v3106
        %v3139 = vrcp.pop %v3107
        %v3140 = vrcp.pop %v3108
        %v3141 = vrcp.pop %v3109
        %v3142 = vrcp.pop %v3110
        %v3143 = vrcp.pop %v3111
        %v3144 = vrcp.pop %v3112
        %v3145 = vrcp.pop %v3113
        %v3146 = vrcp.pop %v3114
        %v3147 = vrcp.pop %v3115
        %v3148 = vrcp.pop %v3116
        %v3149 = vrcp.pop %v3117
        %v3150 = vrcp.pop %v3118
        %v3151 = vrcp.pop %v3119
        %v3152 = vrcp.pop %v3120
        %v3153 = vrcp.pop %v3121
        %v3154 = vrcp.pop %v3122
        %v3155 = vrcp.pop %v3123
        %v3156 = vrcp.pop %v3124
        %v3157 = vrcp.pop %v3125
        %v3158 = vrcp.pop %v3126
        %v3159 = vrcp.pop %v3127
        %v3160 = vrcp.pop %v3128
        %v3161 = vrcp.pop %v3129
        %v3162 = vlaneseq
        %v3163 = vand.u32 %v3162, 127
        %vm3164 = vcmp.lt.s32.totalorder %v3163, 3
        %v3165 = vsel %vm3164, %v3130, %v2876
        %v3166 = vsel %vm3164, %v3131, %v2879
        %v3167 = vsel %vm3164, %v3132, %v2884
        %v3168 = vsel %vm3164, %v3133, %v2887
        %v3169 = vsel %vm3164, %v3134, %v2892
        %v3170 = vsel %vm3164, %v3135, %v2895
        %v3171 = vsel %vm3164, %v3136, %v2900
        %v3172 = vsel %vm3164, %v3137, %v2903
        %v3173 = vsel %vm3164, %v3138, %v2908
        %v3174 = vsel %vm3164, %v3139, %v2911
        %v3175 = vsel %vm3164, %v3140, %v2916
        %v3176 = vsel %vm3164, %v3141, %v2919
        %v3177 = vsel %vm3164, %v3142, %v2924
        %v3178 = vsel %vm3164, %v3143, %v2927
        %v3179 = vsel %vm3164, %v3144, %v2932
        %v3180 = vsel %vm3164, %v3145, %v2935
        %v3181 = vsel %vm3164, %v3146, %v2940
        %v3182 = vsel %vm3164, %v3147, %v2943
        %v3183 = vsel %vm3164, %v3148, %v2948
        %v3184 = vsel %vm3164, %v3149, %v2951
        %v3185 = vsel %vm3164, %v3150, %v2956
        %v3186 = vsel %vm3164, %v3151, %v2959
        %v3187 = vsel %vm3164, %v3152, %v2964
        %v3188 = vsel %vm3164, %v3153, %v2967
        %v3189 = vsel %vm3164, %v3154, %v2972
        %v3190 = vsel %vm3164, %v3155, %v2975
        %v3191 = vsel %vm3164, %v3156, %v2980
        %v3192 = vsel %vm3164, %v3157, %v2983
        %v3193 = vsel %vm3164, %v3158, %v2988
        %v3194 = vsel %vm3164, %v3159, %v2991
        %v3195 = vsel %vm3164, %v3160, %v2996
        %v3196 = vsel %vm3164, %v3161, %v2999
        %3197 = vst [vmem:[%s232] sm:$0xff] %v3165
        %3198 = vst [vmem:[%s232 + $0x8] sm:$0xff] %v3166
        %3199 = vst [vmem:[%s232 + $0x10] sm:$0xff] %v3167
        %3200 = vst [vmem:[%s232 + $0x18] sm:$0xff] %v3168
        %3201 = vst [vmem:[%s232 + $0x20] sm:$0xff] %v3169
        %3202 = vst [vmem:[%s232 + $0x28] sm:$0xff] %v3170
        %3203 = vst [vmem:[%s232 + $0x30] sm:$0xff] %v3171
        %3204 = vst [vmem:[%s232 + $0x38] sm:$0xff] %v3172
        %3205 = vst [vmem:[%s232 + $0x40] sm:$0xff] %v3173
        %3206 = vst [vmem:[%s232 + $0x48] sm:$0xff] %v3174
        %3207 = vst [vmem:[%s232 + $0x50] sm:$0xff] %v3175
        %3208 = vst [vmem:[%s232 + $0x58] sm:$0xff] %v3176
        %3209 = vst [vmem:[%s232 + $0x60] sm:$0xff] %v3177
        %3210 = vst [vmem:[%s232 + $0x68] sm:$0xff] %v3178
        %3211 = vst [vmem:[%s232 + $0x70] sm:$0xff] %v3179
        %3212 = vst [vmem:[%s232 + $0x78] sm:$0xff] %v3180
        %3213 = vst [vmem:[%s232 + $0x80] sm:$0xff] %v3181
        %3214 = vst [vmem:[%s232 + $0x88] sm:$0xff] %v3182
        %3215 = vst [vmem:[%s232 + $0x90] sm:$0xff] %v3183
        %3216 = vst [vmem:[%s232 + $0x98] sm:$0xff] %v3184
        %3217 = vst [vmem:[%s232 + $0xa0] sm:$0xff] %v3185
        %3218 = vst [vmem:[%s232 + $0xa8] sm:$0xff] %v3186
        %3219 = vst [vmem:[%s232 + $0xb0] sm:$0xff] %v3187
        %3220 = vst [vmem:[%s232 + $0xb8] sm:$0xff] %v3188
        %3221 = vst [vmem:[%s232 + $0xc0] sm:$0xff] %v3189
        %3222 = vst [vmem:[%s232 + $0xc8] sm:$0xff] %v3190
        %3223 = vst [vmem:[%s232 + $0xd0] sm:$0xff] %v3191
        %3224 = vst [vmem:[%s232 + $0xd8] sm:$0xff] %v3192
        %3225 = vst [vmem:[%s232 + $0xe0] sm:$0xff] %v3193
        %3226 = vst [vmem:[%s232 + $0xe8] sm:$0xff] %v3194
        %3227 = vst [vmem:[%s232 + $0xf0] sm:$0xff] %v3195
        %3228 = vst [vmem:[%s232 + $0xf8] sm:$0xff] %v3196
        %s3229 = sand.u32 %s138, 1
        %s3230 = scalar_lea.sflag [#allocation4], %s3229
        %s3231 = sand.u32 %s138, 1
        %s3232 = smul.addr %s3231, 256
        %s3233 = scalar_lea.vmem [#allocation5], %s3232
        // Predicated region
        $region45: #{tpu_custom_call.1} parent=39 // pred_check
          %p3234 = pneg %p148
        $region46: #{tpu_custom_call.1} parent=39 // pred_check_branch
          %3236 = sbr.rel (%p3234) target = $region48
        $region47: #{tpu_custom_call.1} parent=39 // pred_region
          %s3237 = smul.u32 32, %s20
          %s3239 = ssub.s32 4096, 4096
          %3240 = vsyncadd %s3230, %s3239
          %s3241 = smul.addr %s3237, 128
          %s3242 = scalar_lea.hbm %s5, %s3241
          %s3243 = sshll.u32 %s3233, 4
          %s3244 = int_to_ptr.vmem [resolvable:$true] %s3243
          %3249 = dma.vmem_to_hbm [thread:$0]  %s3244, 4096, %s3242, %s3230, 128, 128, 8
        $region48: #{tpu_custom_call.1} parent=39 // pred_fallthru
          _
      $region40: #{tpu_custom_call.1} parent=5 // pred_fallthru
        _
      %p3250 = scmp.le.s32.totalorder 2, %s15
      // Predicated region
      $region49: #{tpu_custom_call.1} parent=5 // pred_check
        %p3251 = pneg %p3250
      $region50: #{tpu_custom_call.1} parent=5 // pred_check_branch
        %3253 = sbr.rel (%p3251) target = $region52
      $region51: #{tpu_custom_call.1} parent=5 // pred_region
        %s3254 = ssub.s32 %s15, 2
        // Predicated region
        $region53: #{tpu_custom_call.1} parent=51 // pred_check
          %p3255 = pneg %p154
        $region54: #{tpu_custom_call.1} parent=51 // pred_check_branch
          %3257 = sbr.rel (%p3255) target = $region56
        $region55: #{tpu_custom_call.1} parent=51 // pred_region
          %s3258 = sand.u32 %s139, 1
          %s3259 = scalar_lea.sflag [#allocation4], %s3258
          %s3260 = sand.u32 %s139, 1
          %s3261 = smul.addr %s3260, 256
          %s3262 = scalar_lea.vmem [#allocation5], %s3261
          %3263 = dma.done %s3259, 4096
        $region56: #{tpu_custom_call.1} parent=51 // pred_fallthru
          _
      $region52: #{tpu_custom_call.1} parent=5 // pred_fallthru
        _
    $region6: #{tpu_custom_call.1} parent=1 // loop_footer
      %s19 = sadd.s32 1, %s15
    $region7: #{tpu_custom_call.1} parent=1 // loop_footer_branch
      %14 = sbr.rel target = $region3
    $region8: #{tpu_custom_call.1} parent=1 // loop_exit
      _
    %3264 = vsyncpa [#allocation3], 1
    %s3265 = scalar_lea.sflag [#allocation3], 1
    %3266 = vsyncpa %s3265, 1
    %3267 = vsyncpa [#allocation4], 1
    %s3268 = scalar_lea.sflag [#allocation4], 1
    %3269 = vsyncpa %s3268, 1

</llo_original>
